<compile_context>
chip_gen: v5e
topology: v5e:2x2
jax: 0.10.0
libtpu: 0.0.40
codegen_flags: <defaults>
</compile_context>

<pallas_src>
import numpy as np
import jax
import jax.numpy as jnp
from jax.experimental import pallas as pl
from jax.experimental.pallas import tpu as pltpu

_MIB = 1024 * 1024


# ----------------------------------------------------------------------------
# Bilinear interpolation matrices (match F.interpolate, align_corners=False)
# ----------------------------------------------------------------------------
def _interp_matrix(in_size, out_size):
    """Row-stochastic (out_size, in_size) matrix matching F.interpolate
    (mode='bilinear', align_corners=False) along one axis."""
    scale = in_size / out_size
    dst = np.arange(out_size, dtype=np.float64)
    src = (dst + 0.5) * scale - 0.5
    src = np.clip(src, 0.0, None)             # PyTorch clamps lower side to 0
    i0 = np.minimum(np.floor(src).astype(np.int64), in_size - 1)
    i1 = np.minimum(i0 + 1, in_size - 1)
    w1 = (src - i0).astype(np.float64)
    w0 = 1.0 - w1
    A = np.zeros((out_size, in_size), dtype=np.float32)
    np.add.at(A, (np.arange(out_size), i0), w0)
    np.add.at(A, (np.arange(out_size), i1), w1)
    return A


# ----------------------------------------------------------------------------
# Kernels
# ----------------------------------------------------------------------------
def _proj_kernel(x_ref, w_ref, o_ref):
    # x_ref: (1, C_in, tS); w_ref: (tC, C_in); o_ref: (1, tC, tS)
    o_ref[0] = jnp.dot(
        w_ref[...], x_ref[0], preferred_element_type=jnp.float32
    ).astype(o_ref.dtype)


def _proj_upsample_kron_kernel(x_ref, w_ref, ahw_ref, o_ref):
    # x_ref:   (1, C_in, H*W)
    # w_ref:   (tC, C_in)
    # ahw_ref: (H*W, H_out*W_out)   -- kron(A_h, A_w)^T, grid-invariant
    # o_ref:   (1, tC, H_out*W_out)
    # 1x1 conv: contract channels, spatial stays on the lane axis.
    y = jnp.dot(w_ref[...], x_ref[0], preferred_element_type=jnp.float32)
    # Fused (height x width) bilinear interp as a single lane-dense matmul;
    # the result is already in the store layout -> no in-kernel reshapes.
    o_ref[0] = jnp.dot(
        y, ahw_ref[...], preferred_element_type=jnp.float32
    ).astype(o_ref.dtype)


def _proj_upsample_sep_kernel(x_ref, w_ref, ah_ref, awt_ref, o_ref):
    # Separable fallback for large spatial sizes (kron matrix too big).
    # x_ref: (1, C_in, H*W); w_ref: (tC, C_in); ah_ref: (H_out, H);
    # awt_ref: (W, W_out); o_ref: (1, tC, H_out*W_out)
    tc = w_ref.shape[0]
    h_out, h_in = ah_ref.shape
    w_in, w_out = awt_ref.shape

    y = jnp.dot(w_ref[...], x_ref[0], preferred_element_type=jnp.float32)   # (tC, H*W)
    # Width interpolation: rows indexed (c, h), right-multiply by A_w^T.
    u = jnp.dot(y.reshape(tc * h_in, w_in), awt_ref[...],
                preferred_element_type=jnp.float32)                         # (tC*H, W_out)
    u3 = u.reshape(tc, h_in, w_out)                                         # (tC, H, W_out)
    # Height interpolation: channel-batched MXU matmul. The broadcast is only
    # tC (tiled) copies of A_h, so its VMEM cost is small.
    ah = jnp.broadcast_to(ah_ref[...], (tc, h_out, h_in))
    z = jnp.einsum("coh,chw->cow", ah, u3,
                   preferred_element_type=jnp.float32)                      # (tC, H_out, W_out)
    o_ref[0] = z.reshape(tc, h_out * w_out).astype(o_ref.dtype)


# ----------------------------------------------------------------------------
# VMEM budgeting / tile selection
# ----------------------------------------------------------------------------
def _kron_step_bytes(c_in, tc, s_in, s_out):
    blocks = 2 * (c_in * s_in + tc * c_in + s_in * s_out + tc * s_out)  # double-buffered
    inter = tc * s_in + 2 * tc * s_out                                   # f32 intermediates
    return 4 * (blocks + inter)


def _sep_step_bytes(c_in, tc, h, w, h_out, w_out):
    s_in, s_out = h * w, h_out * w_out
    blocks = 2 * (c_in * s_in + tc * c_in + h_out * h + w * w_out + tc * s_out)
    inter = tc * s_in + tc * h * w_out + tc * h_out * h + 2 * tc * s_out
    return 4 * (blocks + inter)


def _proj_step_bytes(c_in, tc, ts):
    blocks = 2 * (c_in * ts + tc * c_in + tc * ts)
    inter = tc * ts
    return 4 * (blocks + inter)


def _choose_c_tile(c_out, est_fn, requested=None, target_bytes=40 * _MIB):
    """Pick a C_out tile: full C_out if small, else the largest multiple of 8
    whose per-step VMEM estimate stays under the target."""
    def legalize(t):
        t = min(t, c_out)
        if t != c_out and t % 8 != 0:
            t = max(8, (t // 8) * 8)
        return t

    if requested is not None:
        return legalize(requested)
    t = c_out
    while t > 8 and est_fn(t) > target_bytes:
        t = legalize(max(8, t // 2))
    return t


def _vmem_limit(step_bytes):
    # Generous headroom, but never above v7x's 64 MiB physical VMEM so the same
    # setting is valid on every generation. v5e/v6e could go higher if needed.
    return int(min(64 * _MIB, max(32 * _MIB, 2 * step_bytes)))


# ----------------------------------------------------------------------------
# Wrapper
# ----------------------------------------------------------------------------
def feature_pyramid_forward(x_nchw, weight_oi, scale, *, c_tile=None,
                            max_kron_bytes=8 * _MIB):
    """x: (B, C_in, H, W); weight_oi: (C_out, C_in); returns NCHW output."""
    B, C_in, H, W = map(int, x_nchw.shape)
    C_out = int(weight_oi.shape[0])
    S_in = H * W
    x2 = x_nchw.reshape(B, C_in, S_in)   # free (contiguous) reshape, no transpose

    # ------------------------------------------------------------------ scale == 1
    if scale == 1:
        tS = S_in if S_in <= 2048 else 2048          # lane-aligned spatial tile
        tC = _choose_c_tile(C_out, lambda t: _proj_step_bytes(C_in, t, tS),
                            requested=c_tile)
        nC, nS = pl.cdiv(C_out, tC), pl.cdiv(S_in, tS)
        step_bytes = _proj_step_bytes(C_in, tC, tS)
        cost = pl.CostEstimate(
            flops=2 * B * C_out * C_in * S_in,
            transcendentals=0,
            bytes_accessed=4 * (B * C_in * S_in + B * C_out * S_in + C_out * C_in))
        out = pl.pallas_call(
            _proj_kernel,
            out_shape=jax.ShapeDtypeStruct((B, C_out, S_in), x_nchw.dtype),
            grid_spec=pltpu.PrefetchScalarGridSpec(
                num_scalar_prefetch=0,
                grid=(B, nC, nS),
                in_specs=[
                    pl.BlockSpec((1, C_in, tS), lambda b, c, s: (b, 0, s)),
                    pl.BlockSpec((tC, C_in), lambda b, c, s: (c, 0)),
                ],
                out_specs=pl.BlockSpec((1, tC, tS), lambda b, c, s: (b, c, s)),
            ),
            compiler_params=pltpu.CompilerParams(
                dimension_semantics=("parallel", "parallel", "parallel"),
                vmem_limit_bytes=_vmem_limit(step_bytes)),
            cost_estimate=cost,
        )(x2, weight_oi)
        return out.reshape(B, C_out, H, W)

    # ------------------------------------------------------------------ scale != 1
    H_out, W_out = H * scale, W * scale
    S_out = H_out * W_out
    A_h = _interp_matrix(H, H_out)        # (H_out, H)
    A_w = _interp_matrix(W, W_out)        # (W_out, W)

    kron_bytes = 4 * S_in * S_out
    if kron_bytes <= max_kron_bytes:
        # --- Fused kron path: single interpolation matmul, no in-kernel reshapes.
        A_hw = jnp.asarray(np.ascontiguousarray(np.kron(A_h, A_w).T))  # (S_in, S_out)
        tC = _choose_c_tile(
            C_out, lambda t: _kron_step_bytes(C_in, t, S_in, S_out), requested=c_tile)
        nC = pl.cdiv(C_out, tC)
        step_bytes = _kron_step_bytes(C_in, tC, S_in, S_out)
        cost = pl.CostEstimate(
            flops=2 * B * (C_out * C_in * S_in + C_out * S_in * S_out),
            transcendentals=0,
            bytes_accessed=4 * (B * C_in * S_in + B * C_out * S_out
                                + C_out * C_in + S_in * S_out))
        out = pl.pallas_call(
            _proj_upsample_kron_kernel,
            out_shape=jax.ShapeDtypeStruct((B, C_out, S_out), x_nchw.dtype),
            grid_spec=pltpu.PrefetchScalarGridSpec(
                num_scalar_prefetch=0,
                grid=(B, nC),
                in_specs=[
                    pl.BlockSpec((1, C_in, S_in), lambda b, c: (b, 0, 0)),
                    pl.BlockSpec((tC, C_in), lambda b, c: (c, 0)),
                    pl.BlockSpec((S_in, S_out), lambda b, c: (0, 0)),
                ],
                out_specs=pl.BlockSpec((1, tC, S_out), lambda b, c: (b, c, 0)),
            ),
            compiler_params=pltpu.CompilerParams(
                dimension_semantics=("parallel", "parallel"),
                vmem_limit_bytes=_vmem_limit(step_bytes)),
            cost_estimate=cost,
        )(x2, weight_oi, A_hw)
        return out.reshape(B, C_out, H_out, W_out)

    # --- Separable fallback for large spatial sizes.
    A_hj = jnp.asarray(A_h)                              # (H_out, H)
    A_wT = jnp.asarray(np.ascontiguousarray(A_w.T))      # (W, W_out)
    tC = _choose_c_tile(
        C_out, lambda t: _sep_step_bytes(C_in, t, H, W, H_out, W_out),
        requested=c_tile)
    nC = pl.cdiv(C_out, tC)
    step_bytes = _sep_step_bytes(C_in, tC, H, W, H_out, W_out)
    cost = pl.CostEstimate(
        flops=2 * B * (C_out * C_in * S_in + C_out * H * W * W_out
                       + C_out * H_out * H * W_out),
        transcendentals=0,
        bytes_accessed=4 * (B * C_in * S_in + B * C_out * S_out
                            + C_out * C_in + H_out * H + W * W_out))
    out = pl.pallas_call(
        _proj_upsample_sep_kernel,
        out_shape=jax.ShapeDtypeStruct((B, C_out, S_out), x_nchw.dtype),
        grid_spec=pltpu.PrefetchScalarGridSpec(
            num_scalar_prefetch=0,
            grid=(B, nC),
            in_specs=[
                pl.BlockSpec((1, C_in, S_in), lambda b, c: (b, 0, 0)),
                pl.BlockSpec((tC, C_in), lambda b, c: (c, 0)),
                pl.BlockSpec((H_out, H), lambda b, c: (0, 0)),
                pl.BlockSpec((W, W_out), lambda b, c: (0, 0)),
            ],
            out_specs=pl.BlockSpec((1, tC, S_out), lambda b, c: (b, c, 0)),
        ),
        compiler_params=pltpu.CompilerParams(
            dimension_semantics=("parallel", "parallel"),
            vmem_limit_bytes=_vmem_limit(step_bytes)),
        cost_estimate=cost,
    )(x2, weight_oi, A_hj, A_wT)
    return out.reshape(B, C_out, H_out, W_out)


class FeaturePyramid:
    """JAX/Pallas port of the PyTorch FeaturePyramid module (Conv2d bias=False)."""

    def __init__(self, stage, in_channel, key):
        self.scale = 2 ** stage
        c_out = in_channel // self.scale
        # Deterministic init (Kaiming-uniform-like bound, k=1 conv, no bias).
        bound = 1.0 / np.sqrt(in_channel)
        self.weight = jax.random.uniform(
            key, (c_out, in_channel), dtype=jnp.float32, minval=-bound, maxval=bound)

    def __call__(self, x_nchw, **kw):
        return feature_pyramid_forward(x_nchw, self.weight, self.scale, **kw)


# ----------------------------------------------------------------------------
# Pure-JAX reference (same interpolation matrices, plain XLA ops)
# ----------------------------------------------------------------------------
def _reference(x_nchw, weight_oi, scale):
    y = jnp.einsum("oc,bchw->bohw", weight_oi, x_nchw)
    if scale == 1:
        return y
    B, C, H, W = y.shape
    A_h = jnp.asarray(_interp_matrix(H, H * scale))
    A_w = jnp.asarray(_interp_matrix(W, W * scale))
    return jnp.einsum("ph,bchw,qw->bcpq", A_h, y, A_w)


if __name__ == "__main__":
    key = jax.random.PRNGKey(0)
    k_w, k_w0, k_w1, k_x, k_x1 = jax.random.split(key, 5)

    # --- Test 1: fused conv + bilinear upsample, kron path (small spatial). ---
    B, C_in, H, W = 2, 16, 16, 16
    stage = 2                                  # scale=4, C_out=4
    x = jax.random.normal(k_x, (B, C_in, H, W), dtype=jnp.float32)
    fp = FeaturePyramid(stage, C_in, k_w)
    out = jax.block_until_ready(fp(x))
    assert out.shape == (B, C_in // 4, H * 4, W * 4), out.shape
    ref = _reference(x, fp.weight, fp.scale)
    np.testing.assert_allclose(np.asarray(out), np.asarray(ref), rtol=1e-3, atol=1e-3)

    # --- Test 2: same shapes, force the separable fallback path. ---
    out_sep = jax.block_until_ready(fp(x, max_kron_bytes=0))
    np.testing.assert_allclose(np.asarray(out_sep), np.asarray(ref),
                               rtol=1e-3, atol=1e-3)

    # --- Test 3: C_out tiling exercised (B=1, the c axis carries megacore). ---
    C_in1, stage1 = 64, 1                      # scale=2, C_out=32, tC=8 -> 4 tiles
    x1 = jax.random.normal(k_x1, (1, C_in1, 16, 16), dtype=jnp.float32)
    fp1 = FeaturePyramid(stage1, C_in1, k_w1)
    out1 = jax.block_until_ready(fp1(x1, c_tile=8))
    assert out1.shape == (1, C_in1 // 2, 32, 32), out1.shape
    ref1 = _reference(x1, fp1.weight, fp1.scale)
    np.testing.assert_allclose(np.asarray(out1), np.asarray(ref1),
                               rtol=1e-3, atol=1e-3)

    # --- Test 4: projection-only path (stage=0 -> scale=1). ---
    fp0 = FeaturePyramid(0, C_in, k_w0)
    out0 = jax.block_until_ready(fp0(x))
    assert out0.shape == (B, C_in, H, W), out0.shape
    ref0 = _reference(x, fp0.weight, fp0.scale)
    np.testing.assert_allclose(np.asarray(out0), np.asarray(ref0),
                               rtol=1e-3, atol=1e-3)

    print("KERNEL_OK")
</pallas_src>

<mosaic_0001>
module attributes {stable_mosaic.version = 11 : i64} {
  func.func @_proj_upsample_kron_kernel(%arg0: i32, %arg1: i32, %arg2: memref<1x16x256xf32, #tpu.memory_space<vmem>>, %arg3: memref<4x16xf32, #tpu.memory_space<vmem>>, %arg4: memref<256x4096xf32, #tpu.memory_space<vmem>>, %arg5: memref<1x4x4096xf32, #tpu.memory_space<vmem>>) attributes {dimension_semantics = [#tpu.dimension_semantics<parallel>, #tpu.dimension_semantics<parallel>], iteration_bounds = array<i64: 2, 1>, scalar_prefetch = 0 : i64, scratch_operands = 0 : i64, tpu.core_type = #tpu.core_type<tc>, window_params = [{transform_indices = @transform_0, window_bounds = array<i64: 1, 16, 256>}, {transform_indices = @transform_1, window_bounds = array<i64: 4, 16>}, {pipeline_mode = #tpu.pipeline_mode<synchronous>, transform_indices = @transform_2, window_bounds = array<i64: 256, 4096>}, {transform_indices = @transform_3, window_bounds = array<i64: 1, 4, 4096>}]} {
    %c0 = arith.constant 0 : index
    %c0_0 = arith.constant 0 : index
    %0 = vector.load %arg3[%c0, %c0_0] : memref<4x16xf32, #tpu.memory_space<vmem>>, vector<4x16xf32>
    %c0_1 = arith.constant 0 : index
    %c0_2 = arith.constant 0 : index
    %c0_3 = arith.constant 0 : index
    %1 = vector.load %arg2[%c0_1, %c0_2, %c0_3] : memref<1x16x256xf32, #tpu.memory_space<vmem>>, vector<1x16x256xf32>
    %2 = vector.shape_cast %1 : vector<1x16x256xf32> to vector<16x256xf32>
    %cst = arith.constant dense<0.000000e+00> : vector<4x256xf32>
    %3 = tpu.matmul %0, %2, %cst {dimension_numbers = #tpu.dot_dimension_numbers<[1], [0], [0], [1], [0, 0, 1, 1], [], []>} : vector<4x16xf32>, vector<16x256xf32>, vector<4x256xf32> -> vector<4x256xf32>
    %c0_4 = arith.constant 0 : index
    %c0_5 = arith.constant 0 : index
    %4 = vector.load %arg4[%c0_4, %c0_5] : memref<256x4096xf32, #tpu.memory_space<vmem>>, vector<256x4096xf32>
    %cst_6 = arith.constant dense<0.000000e+00> : vector<4x4096xf32>
    %5 = tpu.matmul %3, %4, %cst_6 {dimension_numbers = #tpu.dot_dimension_numbers<[1], [0], [0], [1], [0, 0, 1, 1], [], []>} : vector<4x256xf32>, vector<256x4096xf32>, vector<4x4096xf32> -> vector<4x4096xf32>
    %c0_7 = arith.constant 0 : index
    %c0_8 = arith.constant 0 : index
    %c0_9 = arith.constant 0 : index
    %6 = vector.load %arg5[%c0_7, %c0_8, %c0_9] : memref<1x4x4096xf32, #tpu.memory_space<vmem>>, vector<1x4x4096xf32>
    %7 = vector.shape_cast %6 : vector<1x4x4096xf32> to vector<4x4096xf32>
    %8 = vector.shape_cast %5 : vector<4x4096xf32> to vector<1x4x4096xf32>
    tpu.vector_store %arg5[%c0_7, %c0_8, %c0_9], %8 {strides = array<i32>} : memref<1x4x4096xf32, #tpu.memory_space<vmem>>, vector<1x4x4096xf32>,
    return
  }
  func.func @transform_0(%arg0: i32, %arg1: i32) -> (i32, i32, i32) {
    %c0_i32 = arith.constant 0 : i32
    %c0_i32_0 = arith.constant 0 : i32
    %c0_i32_1 = arith.constant 0 : i32
    return %arg0, %c0_i32, %c0_i32_0 : i32, i32, i32
  }
  func.func @transform_1(%arg0: i32, %arg1: i32) -> (i32, i32) {
    %c0_i32 = arith.constant 0 : i32
    %c0_i32_0 = arith.constant 0 : i32
    return %arg1, %c0_i32 : i32, i32
  }
  func.func @transform_2(%arg0: i32, %arg1: i32) -> (i32, i32) {
    %c0_i32 = arith.constant 0 : i32
    %c0_i32_0 = arith.constant 0 : i32
    %c0_i32_1 = arith.constant 0 : i32
    return %c0_i32, %c0_i32_0 : i32, i32
  }
  func.func @transform_3(%arg0: i32, %arg1: i32) -> (i32, i32, i32) {
    %c0_i32 = arith.constant 0 : i32
    %c0_i32_0 = arith.constant 0 : i32
    return %arg0, %arg1, %c0_i32 : i32, i32, i32
  }
}

</mosaic_0001>

<llo_original>
// kernel: tpu_custom_call.1
$region0: #{tpu_custom_call.1}
  #allocation0 [shape = 'u32[]', space=smem, size = 0x4, offset = 0x4, fixed_abs, tag = 'smem constant byte address 0x4 - core index']
  #allocation1 [shape = 'u32[72,128]{1,0:T(1,128)}', space=vmem, size = 0x9000, scoped, tag = 'internal scratch']
  %s0 = inlined_call_operand.hbm [shape: f32[2,16,256], index: 0, kind: input, shape index: {}]
  %s1 = inlined_call_operand.hbm [shape: f32[4,16], index: 1, kind: input, shape index: {}]
  %s2 = inlined_call_operand.hbm [shape: f32[256,4096], index: 2, kind: input, shape index: {}]
  %s3 = inlined_call_operand.hbm [shape: f32[2,4,4096], index: 3, kind: output, shape index: {}]
  %s4 = sld [smem:[#allocation0]]
  $region57: #{tpu_custom_call.1} parent=0
    _
  %s6 = ssub.s32 1, %s4
  %s7 = scalar_select 0, %s6, %s4
  $region1: #{tpu_custom_call.1} parent=0
    #allocation2 [shape = 'u8[32768]{0}', space=vmem, size = 0x8000, scoped, tag = 'input window, operand 0']
    #allocation3 [shape = 's32[2]{0}', space=sflag, size = 0x8, scoped, tag = 'scoped memory for tpu_custom_call.1']
    #allocation4 [shape = 's32[2]{0}', space=sflag, size = 0x8, scoped, tag = 'scoped memory for tpu_custom_call.1']
    #allocation5 [shape = 'u8[2048]{0}', space=vmem, size = 0x800, scoped, tag = 'input window, operand 1, single buffered']
    #allocation6 [shape = 's32[1]{0}', space=sflag, size = 0x4, scoped, tag = 'scoped memory for tpu_custom_call.1']
    #allocation7 [shape = 'u8[4194304]{0}', space=vmem, size = 0x400000, scoped, tag = 'input window, operand 2, single buffered']
    #allocation8 [shape = 'u8[131072]{0}', space=vmem, size = 0x20000, scoped, tag = 'output window, operand 0']
    %8 = vsyncpa [#allocation3], 0
    %s9 = scalar_lea.sflag [#allocation3], 1
    %10 = vsyncpa %s9, 0
    %11 = vsyncpa [#allocation6], 0
    %12 = vsyncpa [#allocation4], 0
    %s13 = scalar_lea.sflag [#allocation4], 1
    %14 = vsyncpa %s13, 0
    loop: start=0, step=1, limit=4
    $region2: #{tpu_custom_call.1} parent=1 // loop_pre_header
      _
    $region3: #{tpu_custom_call.1} parent=1 // loop_header
      %s16 = sphi 0, %s20
      %p17 = scmp.ge.s32.totalorder %s16, 4
      %s23 = sphi 0, %s35
      %s24 = sphi 0, %s31
      %s25 = sphi 0, %s23
      %s26 = sphi 0, %s24
      %s27 = sphi 0, %s25
      %s28 = sphi 0, %s26
      %s38 = sphi 0, %s40
      %s41 = sphi 0, %s38
      %s42 = sphi 0, %s41
      %s58 = sphi 0, %s42
      %s64 = sphi 0, %s66
      %s67 = sphi 0, %s64
      %s68 = sphi 0, %s67
      %s84 = sphi 0, %s68
      %s88 = sphi 0, %s88
      %s90 = sphi 0, %s88
      %s91 = sphi 0, %s90
      %s105 = sphi 0, %s91
      %s113 = sphi 0, %s115
      %s116 = sphi 0, %s113
      %s117 = sphi 0, %s116
      %s133 = sphi 0, %s117
    $region4: #{tpu_custom_call.1} parent=1 // loop_header_branch
      %19 = sbr.rel (%p17) target = $region8
    $region5: #{tpu_custom_call.1} parent=1 // loop_body
      %s21 = ssub.s32 %s16, 1
      %s22 = ssub.s32 %s16, 2
      %s29 = sadd.s32 1, %s24
      %p30 = scmp.ge.s32.totalorder %s29, 1
      %s31 = scalar_select %p30, 0, %s29
      %s32 = sadd.s32 1, %s23
      %s33 = scalar_select %p30, %s32, %s23
      %p34 = scmp.ge.s32.totalorder %s33, 2
      %s35 = scalar_select %p34, 0, %s33
      %s36 = ssub.s32 %s23, %s35
      %p37 = scmp.eq.s32.totalorder %s36, 0
      %s39 = sadd.s32 %s38, 1
      %s40 = scalar_select %p37, %s38, %s39
      %p43 = pneg %p37
      %p44 = scmp.eq.s32.totalorder %s16, 1
      %p45 = por %p43, %p44
      %p46 = scmp.ne.s32.totalorder %s38, %s41
      %p47 = scmp.eq.s32.totalorder %s16, 0
      %p48 = por %p46, %p47
      %p49 = scmp.ne.s32.totalorder %s38, %s41
      %p50 = scmp.eq.s32.totalorder %s21, 1
      %p51 = por %p49, %p50
      %p52 = scmp.ne.s32.totalorder %s41, %s42
      %p53 = scmp.eq.s32.totalorder %s21, 0
      %p54 = por %p52, %p53
      %p55 = scmp.ne.s32.totalorder %s41, %s42
      %p56 = scmp.eq.s32.totalorder %s22, 1
      %p57 = por %p55, %p56
      %p59 = scmp.ne.s32.totalorder %s42, %s58
      %p60 = scmp.eq.s32.totalorder %s22, 0
      %p61 = por %p59, %p60
      %s62 = ssub.s32 %s24, %s31
      %p63 = scmp.eq.s32.totalorder %s62, 0
      %s65 = sadd.s32 %s64, 1
      %s66 = scalar_select %p63, %s64, %s65
      %p69 = pneg %p63
      %p70 = scmp.eq.s32.totalorder %s16, 1
      %p71 = por %p69, %p70
      %p72 = scmp.ne.s32.totalorder %s64, %s67
      %p73 = scmp.eq.s32.totalorder %s16, 0
      %p74 = por %p72, %p73
      %p75 = scmp.ne.s32.totalorder %s64, %s67
      %p76 = scmp.eq.s32.totalorder %s21, 1
      %p77 = por %p75, %p76
      %p78 = scmp.ne.s32.totalorder %s67, %s68
      %p79 = scmp.eq.s32.totalorder %s21, 0
      %p80 = por %p78, %p79
      %p81 = scmp.ne.s32.totalorder %s67, %s68
      %p82 = scmp.eq.s32.totalorder %s22, 1
      %p83 = por %p81, %p82
      %p85 = scmp.ne.s32.totalorder %s68, %s84
      %p86 = scmp.eq.s32.totalorder %s22, 0
      %p87 = por %p85, %p86
      %s89 = sadd.s32 %s88, 1
      %p92 = scmp.eq.s32.totalorder %s16, 1
      %p93 = scmp.ne.s32.totalorder %s88, %s90
      %p94 = scmp.eq.s32.totalorder %s16, 0
      %p95 = por %p93, %p94
      %p96 = scmp.ne.s32.totalorder %s88, %s90
      %p97 = scmp.eq.s32.totalorder %s21, 1
      %p98 = por %p96, %p97
      %p99 = scmp.ne.s32.totalorder %s90, %s91
      %p100 = scmp.eq.s32.totalorder %s21, 0
      %p101 = por %p99, %p100
      %p102 = scmp.ne.s32.totalorder %s90, %s91
      %p103 = scmp.eq.s32.totalorder %s22, 1
      %p104 = por %p102, %p103
      %p106 = scmp.ne.s32.totalorder %s91, %s105
      %p107 = scmp.eq.s32.totalorder %s22, 0
      %p108 = por %p106, %p107
      %s109 = ssub.s32 %s23, %s35
      %s110 = ssub.s32 %s24, %s31
      %s111 = sor.u32 %s109, %s110
      %p112 = scmp.eq.s32.totalorder %s111, 0
      %s114 = sadd.s32 %s113, 1
      %s115 = scalar_select %p112, %s113, %s114
      %p118 = pneg %p112
      %p119 = scmp.eq.s32.totalorder %s16, 1
      %p120 = por %p118, %p119
      %p121 = scmp.ne.s32.totalorder %s113, %s116
      %p122 = scmp.eq.s32.totalorder %s16, 0
      %p123 = por %p121, %p122
      %p124 = scmp.ne.s32.totalorder %s113, %s116
      %p125 = scmp.eq.s32.totalorder %s21, 1
      %p126 = por %p124, %p125
      %p127 = scmp.ne.s32.totalorder %s116, %s117
      %p128 = scmp.eq.s32.totalorder %s21, 0
      %p129 = por %p127, %p128
      %p130 = scmp.ne.s32.totalorder %s116, %s117
      %p131 = scmp.eq.s32.totalorder %s22, 1
      %p132 = por %p130, %p131
      %p134 = scmp.ne.s32.totalorder %s117, %s133
      %p135 = scmp.eq.s32.totalorder %s22, 0
      %p136 = por %p134, %p135
      %p137 = scmp.le.s32.totalorder 1, %s16
      %p138 = scmp.lt.s32.totalorder %s16, 3
      %p139 = pnand %p137, %p138
      %p140 = pneg %p139
      // Predicated region
      $region9: #{tpu_custom_call.1} parent=5 // pred_check
        _
      $region10: #{tpu_custom_call.1} parent=5 // pred_check_branch
        %142 = sbr.rel (%p139) target = $region12
      $region11: #{tpu_custom_call.1} parent=5 // pred_region
        %s143 = ssub.s32 %s16, 1
        // Predicated region
        $region13: #{tpu_custom_call.1} parent=11 // pred_check
          %p144 = pneg %p80
        $region14: #{tpu_custom_call.1} parent=11 // pred_check_branch
          %146 = sbr.rel (%p144) target = $region16
        $region15: #{tpu_custom_call.1} parent=11 // pred_region
          %148 = vsyncadd [#allocation6], 0
          %s149 = smul.addr %s26, 4
          %s150 = scalar_lea.hbm %s1, %s149
          %s152 = sshll.u32 %s150, 4
          %s153 = int_to_ptr.hbm [resolvable:$true] %s152
          %s154 = sshll.u32 [#allocation5], 4
          %s155 = int_to_ptr.vmem [resolvable:$true] %s154
          %157 = dma.hbm_to_vmem [thread:$0]  %s153, 64, %s155, [#allocation6]
        $region16: #{tpu_custom_call.1} parent=11 // pred_fallthru
          _
        // Predicated region
        $region17: #{tpu_custom_call.1} parent=11 // pred_check
          %p158 = pneg %p101
        $region18: #{tpu_custom_call.1} parent=11 // pred_check_branch
          %160 = sbr.rel (%p158) target = $region20
        $region19: #{tpu_custom_call.1} parent=11 // pred_region
          %162 = vsyncadd [#allocation6], 0
          %s163 = sshll.u32 %s2, 4
          %s164 = int_to_ptr.hbm [resolvable:$true] %s163
          %s165 = sshll.u32 [#allocation7], 4
          %s166 = int_to_ptr.vmem [resolvable:$true] %s165
          %171 = dma.hbm_to_vmem [thread:$0]  %s164, 131072, %s166, [#allocation6], 4096, 4096, 256
        $region20: #{tpu_custom_call.1} parent=11 // pred_fallthru
          _
      $region12: #{tpu_custom_call.1} parent=5 // pred_fallthru
        _
      %p172 = scmp.lt.s32.totalorder %s16, 2
      // Predicated region
      $region21: #{tpu_custom_call.1} parent=5 // pred_check
        %p173 = pneg %p172
      $region22: #{tpu_custom_call.1} parent=5 // pred_check_branch
        %175 = sbr.rel (%p173) target = $region24
      $region23: #{tpu_custom_call.1} parent=5 // pred_region
        // Predicated region
        $region25: #{tpu_custom_call.1} parent=23 // pred_check
          %p176 = pneg %p48
        $region26: #{tpu_custom_call.1} parent=23 // pred_check_branch
          %178 = sbr.rel (%p176) target = $region28
        $region27: #{tpu_custom_call.1} parent=23 // pred_region
          %s179 = sand.u32 %s38, 1
          %s180 = scalar_lea.sflag [#allocation3], %s179
          %s181 = sand.u32 %s38, 1
          %s182 = smul.addr %s181, 32
          %s183 = scalar_lea.vmem [#allocation2], %s182
          %185 = vsyncadd %s180, 0
          %s186 = smul.addr %s23, 4
          %s187 = smul.addr %s186, 8
          %s188 = scalar_lea.hbm %s0, %s187
          %s189 = sshll.u32 %s188, 4
          %s190 = int_to_ptr.hbm [resolvable:$true] %s189
          %s191 = sshll.u32 %s183, 4
          %s192 = int_to_ptr.vmem [resolvable:$true] %s191
          %197 = dma.hbm_to_vmem [thread:$0]  %s190, 512, %s192, %s180, 256, 256, 16
        $region28: #{tpu_custom_call.1} parent=23 // pred_fallthru
          _
      $region24: #{tpu_custom_call.1} parent=5 // pred_fallthru
        _
      %p198 = scmp.le.s32.totalorder 1, %s16
      %p199 = scmp.lt.s32.totalorder %s16, 3
      %p200 = pnand %p198, %p199
      %p201 = pneg %p200
      // Predicated region
      $region29: #{tpu_custom_call.1} parent=5 // pred_check
        _
      $region30: #{tpu_custom_call.1} parent=5 // pred_check_branch
        %203 = sbr.rel (%p200) target = $region32
      $region31: #{tpu_custom_call.1} parent=5 // pred_region
        %s204 = ssub.s32 %s16, 1
        %s205 = sand.u32 %s41, 1
        %s206 = scalar_lea.sflag [#allocation3], %s205
        %s207 = sand.u32 %s41, 1
        %s208 = smul.addr %s207, 32
        %s209 = scalar_lea.vmem [#allocation2], %s208
        // Predicated region
        $region33: #{tpu_custom_call.1} parent=31 // pred_check
          %p210 = pneg %p54
        $region34: #{tpu_custom_call.1} parent=31 // pred_check_branch
          %212 = sbr.rel (%p210) target = $region36
        $region35: #{tpu_custom_call.1} parent=31 // pred_region
          %214 = dma.done %s206, 512
        $region36: #{tpu_custom_call.1} parent=31 // pred_fallthru
          _
        // Predicated region
        $region37: #{tpu_custom_call.1} parent=31 // pred_check
          %p215 = pneg %p80
        $region38: #{tpu_custom_call.1} parent=31 // pred_check_branch
          %217 = sbr.rel (%p215) target = $region40
        $region39: #{tpu_custom_call.1} parent=31 // pred_region
          %219 = dma.done [#allocation6], 64
        $region40: #{tpu_custom_call.1} parent=31 // pred_fallthru
          _
        // Predicated region
        $region41: #{tpu_custom_call.1} parent=31 // pred_check
          %p220 = pneg %p101
        $region42: #{tpu_custom_call.1} parent=31 // pred_check_branch
          %222 = sbr.rel (%p220) target = $region44
        $region43: #{tpu_custom_call.1} parent=31 // pred_region
          %224 = dma.done [#allocation6], 131072
        $region44: #{tpu_custom_call.1} parent=31 // pred_fallthru
          _
        %s225 = sand.u32 %s41, 1
        %s226 = scalar_lea.sflag [#allocation3], %s225
        %s227 = sand.u32 %s41, 1
        %s228 = smul.addr %s227, 32
        %s229 = scalar_lea.vmem [#allocation2], %s228
        %p230 = pneg %p54
        %p231 = pneg %p51
        %p232 = pneg %p80
        %p233 = pneg %p77
        %p234 = pneg %p101
        %p235 = pneg %p98
        %p236 = pneg %p129
        %p237 = pneg %p126
        %s238 = sand.u32 %s116, 1
        %s239 = scalar_lea.sflag [#allocation4], %s238
        %s240 = sand.u32 %s116, 1
        %s241 = smul.addr %s240, 128
        %s242 = scalar_lea.vmem [#allocation8], %s241
        %v243 = vld [vmem:[#allocation5] sm:$0xf]
        %v244 = vld [vmem:[%s209] sm:$0xff]
        %v245 = vld [vmem:[%s209 + $0x8] sm:$0xff]
        %v246 = vld [vmem:[%s209 + $0x10] sm:$0xff]
        %v247 = vld [vmem:[%s209 + $0x18] sm:$0xff]
        %vm248 = vcmask 130048
        %v250 = vsel %vm248, %v243, 0
        %252 = vmatpush.msra.mxu0 0.0
        %253 = vmatpush.msra.mxu0 0.0
        %254 = vmatpush.msra.mxu0 0.0
        %255 = vmatpush.msra.mxu0 0.0
        %256 = vmatpush.msra.mxu0 0.0
        %257 = vmatpush.msra.mxu0 0.0
        %258 = vmatpush.msra.mxu0 0.0
        %259 = vmatpush.msra.mxu0 0.0
        %260 = vmatpush.msra.mxu0 0.0
        %261 = vmatpush.msra.mxu0 0.0
        %262 = vmatpush.msra.mxu0 0.0
        %263 = vmatpush.msra.mxu0 0.0
        %264 = vmatpush.msra.mxu0 0.0
        %265 = vmatpush.msra.mxu0 0.0
        %266 = vmatpush.msra.mxu0 %v246
        %267 = vmatpush.msra.mxu0 %v244
        %268 = vmatmul.f32.gmra.mxu0 %v250
        %v269 = vpop.f32.mrf.mxu0
        %v270 = vadd.f32 0.0, %v269
        %271 = vdwg.mxu0
        %272 = vmatpush.msra.mxu0 0.0
        %273 = vmatpush.msra.mxu0 0.0
        %274 = vmatpush.msra.mxu0 0.0
        %275 = vmatpush.msra.mxu0 0.0
        %276 = vmatpush.msra.mxu0 0.0
        %277 = vmatpush.msra.mxu0 0.0
        %278 = vmatpush.msra.mxu0 0.0
        %279 = vmatpush.msra.mxu0 0.0
        %280 = vmatpush.msra.mxu0 0.0
        %281 = vmatpush.msra.mxu0 0.0
        %282 = vmatpush.msra.mxu0 0.0
        %283 = vmatpush.msra.mxu0 0.0
        %284 = vmatpush.msra.mxu0 0.0
        %285 = vmatpush.msra.mxu0 0.0
        %286 = vmatpush.msra.mxu0 %v247
        %287 = vmatpush.msra.mxu0 %v245
        %288 = vmatmul.f32.gmra.mxu0 %v250
        %v289 = vpop.f32.mrf.mxu0
        %v290 = vadd.f32 0.0, %v289
        %291 = vdwg.mxu0
        %v292 = vld [vmem:[#allocation7] sm:$0xff]
        %v293 = vld [vmem:[#allocation7 + $0x8] sm:$0xff]
        %v294 = vld [vmem:[#allocation7 + $0x10] sm:$0xff]
        %v295 = vld [vmem:[#allocation7 + $0x18] sm:$0xff]
        %v296 = vld [vmem:[#allocation7 + $0x20] sm:$0xff]
        %v297 = vld [vmem:[#allocation7 + $0x28] sm:$0xff]
        %v298 = vld [vmem:[#allocation7 + $0x30] sm:$0xff]
        %v299 = vld [vmem:[#allocation7 + $0x38] sm:$0xff]
        %v300 = vld [vmem:[#allocation7 + $0x40] sm:$0xff]
        %v301 = vld [vmem:[#allocation7 + $0x48] sm:$0xff]
        %v302 = vld [vmem:[#allocation7 + $0x50] sm:$0xff]
        %v303 = vld [vmem:[#allocation7 + $0x58] sm:$0xff]
        %v304 = vld [vmem:[#allocation7 + $0x60] sm:$0xff]
        %v305 = vld [vmem:[#allocation7 + $0x68] sm:$0xff]
        %v306 = vld [vmem:[#allocation7 + $0x70] sm:$0xff]
        %v307 = vld [vmem:[#allocation7 + $0x78] sm:$0xff]
        %v308 = vld [vmem:[#allocation7 + $0x80] sm:$0xff]
        %v309 = vld [vmem:[#allocation7 + $0x88] sm:$0xff]
        %v310 = vld [vmem:[#allocation7 + $0x90] sm:$0xff]
        %v311 = vld [vmem:[#allocation7 + $0x98] sm:$0xff]
        %v312 = vld [vmem:[#allocation7 + $0xa0] sm:$0xff]
        %v313 = vld [vmem:[#allocation7 + $0xa8] sm:$0xff]
        %v314 = vld [vmem:[#allocation7 + $0xb0] sm:$0xff]
        %v315 = vld [vmem:[#allocation7 + $0xb8] sm:$0xff]
        %v316 = vld [vmem:[#allocation7 + $0xc0] sm:$0xff]
        %v317 = vld [vmem:[#allocation7 + $0xc8] sm:$0xff]
        %v318 = vld [vmem:[#allocation7 + $0xd0] sm:$0xff]
        %v319 = vld [vmem:[#allocation7 + $0xd8] sm:$0xff]
        %v320 = vld [vmem:[#allocation7 + $0xe0] sm:$0xff]
        %v321 = vld [vmem:[#allocation7 + $0xe8] sm:$0xff]
        %v322 = vld [vmem:[#allocation7 + $0xf0] sm:$0xff]
        %v323 = vld [vmem:[#allocation7 + $0xf8] sm:$0xff]
        %v324 = vld [vmem:[#allocation7 + $0x100] sm:$0xff]
        %v325 = vld [vmem:[#allocation7 + $0x108] sm:$0xff]
        %v326 = vld [vmem:[#allocation7 + $0x110] sm:$0xff]
        %v327 = vld [vmem:[#allocation7 + $0x118] sm:$0xff]
        %v328 = vld [vmem:[#allocation7 + $0x120] sm:$0xff]
        %v329 = vld [vmem:[#allocation7 + $0x128] sm:$0xff]
        %v330 = vld [vmem:[#allocation7 + $0x130] sm:$0xff]
        %v331 = vld [vmem:[#allocation7 + $0x138] sm:$0xff]
        %v332 = vld [vmem:[#allocation7 + $0x140] sm:$0xff]
        %v333 = vld [vmem:[#allocation7 + $0x148] sm:$0xff]
        %v334 = vld [vmem:[#allocation7 + $0x150] sm:$0xff]
        %v335 = vld [vmem:[#allocation7 + $0x158] sm:$0xff]
        %v336 = vld [vmem:[#allocation7 + $0x160] sm:$0xff]
        %v337 = vld [vmem:[#allocation7 + $0x168] sm:$0xff]
        %v338 = vld [vmem:[#allocation7 + $0x170] sm:$0xff]
        %v339 = vld [vmem:[#allocation7 + $0x178] sm:$0xff]
        %v340 = vld [vmem:[#allocation7 + $0x180] sm:$0xff]
        %v341 = vld [vmem:[#allocation7 + $0x188] sm:$0xff]
        %v342 = vld [vmem:[#allocation7 + $0x190] sm:$0xff]
        %v343 = vld [vmem:[#allocation7 + $0x198] sm:$0xff]
        %v344 = vld [vmem:[#allocation7 + $0x1a0] sm:$0xff]
        %v345 = vld [vmem:[#allocation7 + $0x1a8] sm:$0xff]
        %v346 = vld [vmem:[#allocation7 + $0x1b0] sm:$0xff]
        %v347 = vld [vmem:[#allocation7 + $0x1b8] sm:$0xff]
        %v348 = vld [vmem:[#allocation7 + $0x1c0] sm:$0xff]
        %v349 = vld [vmem:[#allocation7 + $0x1c8] sm:$0xff]
        %v350 = vld [vmem:[#allocation7 + $0x1d0] sm:$0xff]
        %v351 = vld [vmem:[#allocation7 + $0x1d8] sm:$0xff]
        %v352 = vld [vmem:[#allocation7 + $0x1e0] sm:$0xff]
        %v353 = vld [vmem:[#allocation7 + $0x1e8] sm:$0xff]
        %v354 = vld [vmem:[#allocation7 + $0x1f0] sm:$0xff]
        %v355 = vld [vmem:[#allocation7 + $0x1f8] sm:$0xff]
        %v356 = vld [vmem:[#allocation7 + $0x200] sm:$0xff]
        %v357 = vld [vmem:[#allocation7 + $0x208] sm:$0xff]
        %v358 = vld [vmem:[#allocation7 + $0x210] sm:$0xff]
        %v359 = vld [vmem:[#allocation7 + $0x218] sm:$0xff]
        %v360 = vld [vmem:[#allocation7 + $0x220] sm:$0xff]
        %v361 = vld [vmem:[#allocation7 + $0x228] sm:$0xff]
        %v362 = vld [vmem:[#allocation7 + $0x230] sm:$0xff]
        %v363 = vld [vmem:[#allocation7 + $0x238] sm:$0xff]
        %v364 = vld [vmem:[#allocation7 + $0x240] sm:$0xff]
        %v365 = vld [vmem:[#allocation7 + $0x248] sm:$0xff]
        %v366 = vld [vmem:[#allocation7 + $0x250] sm:$0xff]
        %v367 = vld [vmem:[#allocation7 + $0x258] sm:$0xff]
        %v368 = vld [vmem:[#allocation7 + $0x260] sm:$0xff]
        %v369 = vld [vmem:[#allocation7 + $0x268] sm:$0xff]
        %v370 = vld [vmem:[#allocation7 + $0x270] sm:$0xff]
        %v371 = vld [vmem:[#allocation7 + $0x278] sm:$0xff]
        %v372 = vld [vmem:[#allocation7 + $0x280] sm:$0xff]
        %v373 = vld [vmem:[#allocation7 + $0x288] sm:$0xff]
        %v374 = vld [vmem:[#allocation7 + $0x290] sm:$0xff]
        %v375 = vld [vmem:[#allocation7 + $0x298] sm:$0xff]
        %v376 = vld [vmem:[#allocation7 + $0x2a0] sm:$0xff]
        %v377 = vld [vmem:[#allocation7 + $0x2a8] sm:$0xff]
        %v378 = vld [vmem:[#allocation7 + $0x2b0] sm:$0xff]
        %v379 = vld [vmem:[#allocation7 + $0x2b8] sm:$0xff]
        %v380 = vld [vmem:[#allocation7 + $0x2c0] sm:$0xff]
        %v381 = vld [vmem:[#allocation7 + $0x2c8] sm:$0xff]
        %v382 = vld [vmem:[#allocation7 + $0x2d0] sm:$0xff]
        %v383 = vld [vmem:[#allocation7 + $0x2d8] sm:$0xff]
        %v384 = vld [vmem:[#allocation7 + $0x2e0] sm:$0xff]
        %v385 = vld [vmem:[#allocation7 + $0x2e8] sm:$0xff]
        %v386 = vld [vmem:[#allocation7 + $0x2f0] sm:$0xff]
        %v387 = vld [vmem:[#allocation7 + $0x2f8] sm:$0xff]
        %v388 = vld [vmem:[#allocation7 + $0x300] sm:$0xff]
        %v389 = vld [vmem:[#allocation7 + $0x308] sm:$0xff]
        %v390 = vld [vmem:[#allocation7 + $0x310] sm:$0xff]
        %v391 = vld [vmem:[#allocation7 + $0x318] sm:$0xff]
        %v392 = vld [vmem:[#allocation7 + $0x320] sm:$0xff]
        %v393 = vld [vmem:[#allocation7 + $0x328] sm:$0xff]
        %v394 = vld [vmem:[#allocation7 + $0x330] sm:$0xff]
        %v395 = vld [vmem:[#allocation7 + $0x338] sm:$0xff]
        %v396 = vld [vmem:[#allocation7 + $0x340] sm:$0xff]
        %v397 = vld [vmem:[#allocation7 + $0x348] sm:$0xff]
        %v398 = vld [vmem:[#allocation7 + $0x350] sm:$0xff]
        %v399 = vld [vmem:[#allocation7 + $0x358] sm:$0xff]
        %v400 = vld [vmem:[#allocation7 + $0x360] sm:$0xff]
        %v401 = vld [vmem:[#allocation7 + $0x368] sm:$0xff]
        %v402 = vld [vmem:[#allocation7 + $0x370] sm:$0xff]
        %v403 = vld [vmem:[#allocation7 + $0x378] sm:$0xff]
        %v404 = vld [vmem:[#allocation7 + $0x380] sm:$0xff]
        %v405 = vld [vmem:[#allocation7 + $0x388] sm:$0xff]
        %v406 = vld [vmem:[#allocation7 + $0x390] sm:$0xff]
        %v407 = vld [vmem:[#allocation7 + $0x398] sm:$0xff]
        %v408 = vld [vmem:[#allocation7 + $0x3a0] sm:$0xff]
        %v409 = vld [vmem:[#allocation7 + $0x3a8] sm:$0xff]
        %v410 = vld [vmem:[#allocation7 + $0x3b0] sm:$0xff]
        %v411 = vld [vmem:[#allocation7 + $0x3b8] sm:$0xff]
        %v412 = vld [vmem:[#allocation7 + $0x3c0] sm:$0xff]
        %v413 = vld [vmem:[#allocation7 + $0x3c8] sm:$0xff]
        %v414 = vld [vmem:[#allocation7 + $0x3d0] sm:$0xff]
        %v415 = vld [vmem:[#allocation7 + $0x3d8] sm:$0xff]
        %v416 = vld [vmem:[#allocation7 + $0x3e0] sm:$0xff]
        %v417 = vld [vmem:[#allocation7 + $0x3e8] sm:$0xff]
        %v418 = vld [vmem:[#allocation7 + $0x3f0] sm:$0xff]
        %v419 = vld [vmem:[#allocation7 + $0x3f8] sm:$0xff]
        %v420 = vld [vmem:[#allocation7 + $0x400] sm:$0xff]
        %v421 = vld [vmem:[#allocation7 + $0x408] sm:$0xff]
        %v422 = vld [vmem:[#allocation7 + $0x410] sm:$0xff]
        %v423 = vld [vmem:[#allocation7 + $0x418] sm:$0xff]
        %v424 = vld [vmem:[#allocation7 + $0x420] sm:$0xff]
        %v425 = vld [vmem:[#allocation7 + $0x428] sm:$0xff]
        %v426 = vld [vmem:[#allocation7 + $0x430] sm:$0xff]
        %v427 = vld [vmem:[#allocation7 + $0x438] sm:$0xff]
        %v428 = vld [vmem:[#allocation7 + $0x440] sm:$0xff]
        %v429 = vld [vmem:[#allocation7 + $0x448] sm:$0xff]
        %v430 = vld [vmem:[#allocation7 + $0x450] sm:$0xff]
        %v431 = vld [vmem:[#allocation7 + $0x458] sm:$0xff]
        %v432 = vld [vmem:[#allocation7 + $0x460] sm:$0xff]
        %v433 = vld [vmem:[#allocation7 + $0x468] sm:$0xff]
        %v434 = vld [vmem:[#allocation7 + $0x470] sm:$0xff]
        %v435 = vld [vmem:[#allocation7 + $0x478] sm:$0xff]
        %v436 = vld [vmem:[#allocation7 + $0x480] sm:$0xff]
        %v437 = vld [vmem:[#allocation7 + $0x488] sm:$0xff]
        %v438 = vld [vmem:[#allocation7 + $0x490] sm:$0xff]
        %v439 = vld [vmem:[#allocation7 + $0x498] sm:$0xff]
        %v440 = vld [vmem:[#allocation7 + $0x4a0] sm:$0xff]
        %v441 = vld [vmem:[#allocation7 + $0x4a8] sm:$0xff]
        %v442 = vld [vmem:[#allocation7 + $0x4b0] sm:$0xff]
        %v443 = vld [vmem:[#allocation7 + $0x4b8] sm:$0xff]
        %v444 = vld [vmem:[#allocation7 + $0x4c0] sm:$0xff]
        %v445 = vld [vmem:[#allocation7 + $0x4c8] sm:$0xff]
        %v446 = vld [vmem:[#allocation7 + $0x4d0] sm:$0xff]
        %v447 = vld [vmem:[#allocation7 + $0x4d8] sm:$0xff]
        %v448 = vld [vmem:[#allocation7 + $0x4e0] sm:$0xff]
        %v449 = vld [vmem:[#allocation7 + $0x4e8] sm:$0xff]
        %v450 = vld [vmem:[#allocation7 + $0x4f0] sm:$0xff]
        %v451 = vld [vmem:[#allocation7 + $0x4f8] sm:$0xff]
        %v452 = vld [vmem:[#allocation7 + $0x500] sm:$0xff]
        %v453 = vld [vmem:[#allocation7 + $0x508] sm:$0xff]
        %v454 = vld [vmem:[#allocation7 + $0x510] sm:$0xff]
        %v455 = vld [vmem:[#allocation7 + $0x518] sm:$0xff]
        %v456 = vld [vmem:[#allocation7 + $0x520] sm:$0xff]
        %v457 = vld [vmem:[#allocation7 + $0x528] sm:$0xff]
        %v458 = vld [vmem:[#allocation7 + $0x530] sm:$0xff]
        %v459 = vld [vmem:[#allocation7 + $0x538] sm:$0xff]
        %v460 = vld [vmem:[#allocation7 + $0x540] sm:$0xff]
        %v461 = vld [vmem:[#allocation7 + $0x548] sm:$0xff]
        %v462 = vld [vmem:[#allocation7 + $0x550] sm:$0xff]
        %v463 = vld [vmem:[#allocation7 + $0x558] sm:$0xff]
        %v464 = vld [vmem:[#allocation7 + $0x560] sm:$0xff]
        %v465 = vld [vmem:[#allocation7 + $0x568] sm:$0xff]
        %v466 = vld [vmem:[#allocation7 + $0x570] sm:$0xff]
        %v467 = vld [vmem:[#allocation7 + $0x578] sm:$0xff]
        %v468 = vld [vmem:[#allocation7 + $0x580] sm:$0xff]
        %v469 = vld [vmem:[#allocation7 + $0x588] sm:$0xff]
        %v470 = vld [vmem:[#allocation7 + $0x590] sm:$0xff]
        %v471 = vld [vmem:[#allocation7 + $0x598] sm:$0xff]
        %v472 = vld [vmem:[#allocation7 + $0x5a0] sm:$0xff]
        %v473 = vld [vmem:[#allocation7 + $0x5a8] sm:$0xff]
        %v474 = vld [vmem:[#allocation7 + $0x5b0] sm:$0xff]
        %v475 = vld [vmem:[#allocation7 + $0x5b8] sm:$0xff]
        %v476 = vld [vmem:[#allocation7 + $0x5c0] sm:$0xff]
        %v477 = vld [vmem:[#allocation7 + $0x5c8] sm:$0xff]
        %v478 = vld [vmem:[#allocation7 + $0x5d0] sm:$0xff]
        %v479 = vld [vmem:[#allocation7 + $0x5d8] sm:$0xff]
        %v480 = vld [vmem:[#allocation7 + $0x5e0] sm:$0xff]
        %v481 = vld [vmem:[#allocation7 + $0x5e8] sm:$0xff]
        %v482 = vld [vmem:[#allocation7 + $0x5f0] sm:$0xff]
        %v483 = vld [vmem:[#allocation7 + $0x5f8] sm:$0xff]
        %v484 = vld [vmem:[#allocation7 + $0x600] sm:$0xff]
        %v485 = vld [vmem:[#allocation7 + $0x608] sm:$0xff]
        %v486 = vld [vmem:[#allocation7 + $0x610] sm:$0xff]
        %v487 = vld [vmem:[#allocation7 + $0x618] sm:$0xff]
        %v488 = vld [vmem:[#allocation7 + $0x620] sm:$0xff]
        %v489 = vld [vmem:[#allocation7 + $0x628] sm:$0xff]
        %v490 = vld [vmem:[#allocation7 + $0x630] sm:$0xff]
        %v491 = vld [vmem:[#allocation7 + $0x638] sm:$0xff]
        %v492 = vld [vmem:[#allocation7 + $0x640] sm:$0xff]
        %v493 = vld [vmem:[#allocation7 + $0x648] sm:$0xff]
        %v494 = vld [vmem:[#allocation7 + $0x650] sm:$0xff]
        %v495 = vld [vmem:[#allocation7 + $0x658] sm:$0xff]
        %v496 = vld [vmem:[#allocation7 + $0x660] sm:$0xff]
        %v497 = vld [vmem:[#allocation7 + $0x668] sm:$0xff]
        %v498 = vld [vmem:[#allocation7 + $0x670] sm:$0xff]
        %v499 = vld [vmem:[#allocation7 + $0x678] sm:$0xff]
        %v500 = vld [vmem:[#allocation7 + $0x680] sm:$0xff]
        %v501 = vld [vmem:[#allocation7 + $0x688] sm:$0xff]
        %v502 = vld [vmem:[#allocation7 + $0x690] sm:$0xff]
        %v503 = vld [vmem:[#allocation7 + $0x698] sm:$0xff]
        %v504 = vld [vmem:[#allocation7 + $0x6a0] sm:$0xff]
        %v505 = vld [vmem:[#allocation7 + $0x6a8] sm:$0xff]
        %v506 = vld [vmem:[#allocation7 + $0x6b0] sm:$0xff]
        %v507 = vld [vmem:[#allocation7 + $0x6b8] sm:$0xff]
        %v508 = vld [vmem:[#allocation7 + $0x6c0] sm:$0xff]
        %v509 = vld [vmem:[#allocation7 + $0x6c8] sm:$0xff]
        %v510 = vld [vmem:[#allocation7 + $0x6d0] sm:$0xff]
        %v511 = vld [vmem:[#allocation7 + $0x6d8] sm:$0xff]
        %v512 = vld [vmem:[#allocation7 + $0x6e0] sm:$0xff]
        %v513 = vld [vmem:[#allocation7 + $0x6e8] sm:$0xff]
        %v514 = vld [vmem:[#allocation7 + $0x6f0] sm:$0xff]
        %v515 = vld [vmem:[#allocation7 + $0x6f8] sm:$0xff]
        %v516 = vld [vmem:[#allocation7 + $0x700] sm:$0xff]
        %v517 = vld [vmem:[#allocation7 + $0x708] sm:$0xff]
        %v518 = vld [vmem:[#allocation7 + $0x710] sm:$0xff]
        %v519 = vld [vmem:[#allocation7 + $0x718] sm:$0xff]
        %v520 = vld [vmem:[#allocation7 + $0x720] sm:$0xff]
        %v521 = vld [vmem:[#allocation7 + $0x728] sm:$0xff]
        %v522 = vld [vmem:[#allocation7 + $0x730] sm:$0xff]
        %v523 = vld [vmem:[#allocation7 + $0x738] sm:$0xff]
        %v524 = vld [vmem:[#allocation7 + $0x740] sm:$0xff]
        %v525 = vld [vmem:[#allocation7 + $0x748] sm:$0xff]
        %v526 = vld [vmem:[#allocation7 + $0x750] sm:$0xff]
        %v527 = vld [vmem:[#allocation7 + $0x758] sm:$0xff]
        %v528 = vld [vmem:[#allocation7 + $0x760] sm:$0xff]
        %v529 = vld [vmem:[#allocation7 + $0x768] sm:$0xff]
        %v530 = vld [vmem:[#allocation7 + $0x770] sm:$0xff]
        %v531 = vld [vmem:[#allocation7 + $0x778] sm:$0xff]
        %v532 = vld [vmem:[#allocation7 + $0x780] sm:$0xff]
        %v533 = vld [vmem:[#allocation7 + $0x788] sm:$0xff]
        %v534 = vld [vmem:[#allocation7 + $0x790] sm:$0xff]
        %v535 = vld [vmem:[#allocation7 + $0x798] sm:$0xff]
        %v536 = vld [vmem:[#allocation7 + $0x7a0] sm:$0xff]
        %v537 = vld [vmem:[#allocation7 + $0x7a8] sm:$0xff]
        %v538 = vld [vmem:[#allocation7 + $0x7b0] sm:$0xff]
        %v539 = vld [vmem:[#allocation7 + $0x7b8] sm:$0xff]
        %v540 = vld [vmem:[#allocation7 + $0x7c0] sm:$0xff]
        %v541 = vld [vmem:[#allocation7 + $0x7c8] sm:$0xff]
        %v542 = vld [vmem:[#allocation7 + $0x7d0] sm:$0xff]
        %v543 = vld [vmem:[#allocation7 + $0x7d8] sm:$0xff]
        %v544 = vld [vmem:[#allocation7 + $0x7e0] sm:$0xff]
        %v545 = vld [vmem:[#allocation7 + $0x7e8] sm:$0xff]
        %v546 = vld [vmem:[#allocation7 + $0x7f0] sm:$0xff]
        %v547 = vld [vmem:[#allocation7 + $0x7f8] sm:$0xff]
        %v548 = vld [vmem:[#allocation7 + $0x800] sm:$0xff]
        %v549 = vld [vmem:[#allocation7 + $0x808] sm:$0xff]
        %v550 = vld [vmem:[#allocation7 + $0x810] sm:$0xff]
        %v551 = vld [vmem:[#allocation7 + $0x818] sm:$0xff]
        %v552 = vld [vmem:[#allocation7 + $0x820] sm:$0xff]
        %v553 = vld [vmem:[#allocation7 + $0x828] sm:$0xff]
        %v554 = vld [vmem:[#allocation7 + $0x830] sm:$0xff]
        %v555 = vld [vmem:[#allocation7 + $0x838] sm:$0xff]
        %v556 = vld [vmem:[#allocation7 + $0x840] sm:$0xff]
        %v557 = vld [vmem:[#allocation7 + $0x848] sm:$0xff]
        %v558 = vld [vmem:[#allocation7 + $0x850] sm:$0xff]
        %v559 = vld [vmem:[#allocation7 + $0x858] sm:$0xff]
        %v560 = vld [vmem:[#allocation7 + $0x860] sm:$0xff]
        %v561 = vld [vmem:[#allocation7 + $0x868] sm:$0xff]
        %v562 = vld [vmem:[#allocation7 + $0x870] sm:$0xff]
        %v563 = vld [vmem:[#allocation7 + $0x878] sm:$0xff]
        %v564 = vld [vmem:[#allocation7 + $0x880] sm:$0xff]
        %v565 = vld [vmem:[#allocation7 + $0x888] sm:$0xff]
        %v566 = vld [vmem:[#allocation7 + $0x890] sm:$0xff]
        %v567 = vld [vmem:[#allocation7 + $0x898] sm:$0xff]
        %v568 = vld [vmem:[#allocation7 + $0x8a0] sm:$0xff]
        %v569 = vld [vmem:[#allocation7 + $0x8a8] sm:$0xff]
        %v570 = vld [vmem:[#allocation7 + $0x8b0] sm:$0xff]
        %v571 = vld [vmem:[#allocation7 + $0x8b8] sm:$0xff]
        %v572 = vld [vmem:[#allocation7 + $0x8c0] sm:$0xff]
        %v573 = vld [vmem:[#allocation7 + $0x8c8] sm:$0xff]
        %v574 = vld [vmem:[#allocation7 + $0x8d0] sm:$0xff]
        %v575 = vld [vmem:[#allocation7 + $0x8d8] sm:$0xff]
        %v576 = vld [vmem:[#allocation7 + $0x8e0] sm:$0xff]
        %v577 = vld [vmem:[#allocation7 + $0x8e8] sm:$0xff]
        %v578 = vld [vmem:[#allocation7 + $0x8f0] sm:$0xff]
        %v579 = vld [vmem:[#allocation7 + $0x8f8] sm:$0xff]
        %v580 = vld [vmem:[#allocation7 + $0x900] sm:$0xff]
        %v581 = vld [vmem:[#allocation7 + $0x908] sm:$0xff]
        %v582 = vld [vmem:[#allocation7 + $0x910] sm:$0xff]
        %v583 = vld [vmem:[#allocation7 + $0x918] sm:$0xff]
        %v584 = vld [vmem:[#allocation7 + $0x920] sm:$0xff]
        %v585 = vld [vmem:[#allocation7 + $0x928] sm:$0xff]
        %v586 = vld [vmem:[#allocation7 + $0x930] sm:$0xff]
        %v587 = vld [vmem:[#allocation7 + $0x938] sm:$0xff]
        %v588 = vld [vmem:[#allocation7 + $0x940] sm:$0xff]
        %v589 = vld [vmem:[#allocation7 + $0x948] sm:$0xff]
        %v590 = vld [vmem:[#allocation7 + $0x950] sm:$0xff]
        %v591 = vld [vmem:[#allocation7 + $0x958] sm:$0xff]
        %v592 = vld [vmem:[#allocation7 + $0x960] sm:$0xff]
        %v593 = vld [vmem:[#allocation7 + $0x968] sm:$0xff]
        %v594 = vld [vmem:[#allocation7 + $0x970] sm:$0xff]
        %v595 = vld [vmem:[#allocation7 + $0x978] sm:$0xff]
        %v596 = vld [vmem:[#allocation7 + $0x980] sm:$0xff]
        %v597 = vld [vmem:[#allocation7 + $0x988] sm:$0xff]
        %v598 = vld [vmem:[#allocation7 + $0x990] sm:$0xff]
        %v599 = vld [vmem:[#allocation7 + $0x998] sm:$0xff]
        %v600 = vld [vmem:[#allocation7 + $0x9a0] sm:$0xff]
        %v601 = vld [vmem:[#allocation7 + $0x9a8] sm:$0xff]
        %v602 = vld [vmem:[#allocation7 + $0x9b0] sm:$0xff]
        %v603 = vld [vmem:[#allocation7 + $0x9b8] sm:$0xff]
        %v604 = vld [vmem:[#allocation7 + $0x9c0] sm:$0xff]
        %v605 = vld [vmem:[#allocation7 + $0x9c8] sm:$0xff]
        %v606 = vld [vmem:[#allocation7 + $0x9d0] sm:$0xff]
        %v607 = vld [vmem:[#allocation7 + $0x9d8] sm:$0xff]
        %v608 = vld [vmem:[#allocation7 + $0x9e0] sm:$0xff]
        %v609 = vld [vmem:[#allocation7 + $0x9e8] sm:$0xff]
        %v610 = vld [vmem:[#allocation7 + $0x9f0] sm:$0xff]
        %v611 = vld [vmem:[#allocation7 + $0x9f8] sm:$0xff]
        %v612 = vld [vmem:[#allocation7 + $0xa00] sm:$0xff]
        %v613 = vld [vmem:[#allocation7 + $0xa08] sm:$0xff]
        %v614 = vld [vmem:[#allocation7 + $0xa10] sm:$0xff]
        %v615 = vld [vmem:[#allocation7 + $0xa18] sm:$0xff]
        %v616 = vld [vmem:[#allocation7 + $0xa20] sm:$0xff]
        %v617 = vld [vmem:[#allocation7 + $0xa28] sm:$0xff]
        %v618 = vld [vmem:[#allocation7 + $0xa30] sm:$0xff]
        %v619 = vld [vmem:[#allocation7 + $0xa38] sm:$0xff]
        %v620 = vld [vmem:[#allocation7 + $0xa40] sm:$0xff]
        %v621 = vld [vmem:[#allocation7 + $0xa48] sm:$0xff]
        %v622 = vld [vmem:[#allocation7 + $0xa50] sm:$0xff]
        %v623 = vld [vmem:[#allocation7 + $0xa58] sm:$0xff]
        %v624 = vld [vmem:[#allocation7 + $0xa60] sm:$0xff]
        %v625 = vld [vmem:[#allocation7 + $0xa68] sm:$0xff]
        %v626 = vld [vmem:[#allocation7 + $0xa70] sm:$0xff]
        %v627 = vld [vmem:[#allocation7 + $0xa78] sm:$0xff]
        %v628 = vld [vmem:[#allocation7 + $0xa80] sm:$0xff]
        %v629 = vld [vmem:[#allocation7 + $0xa88] sm:$0xff]
        %v630 = vld [vmem:[#allocation7 + $0xa90] sm:$0xff]
        %v631 = vld [vmem:[#allocation7 + $0xa98] sm:$0xff]
        %v632 = vld [vmem:[#allocation7 + $0xaa0] sm:$0xff]
        %v633 = vld [vmem:[#allocation7 + $0xaa8] sm:$0xff]
        %v634 = vld [vmem:[#allocation7 + $0xab0] sm:$0xff]
        %v635 = vld [vmem:[#allocation7 + $0xab8] sm:$0xff]
        %v636 = vld [vmem:[#allocation7 + $0xac0] sm:$0xff]
        %v637 = vld [vmem:[#allocation7 + $0xac8] sm:$0xff]
        %v638 = vld [vmem:[#allocation7 + $0xad0] sm:$0xff]
        %v639 = vld [vmem:[#allocation7 + $0xad8] sm:$0xff]
        %v640 = vld [vmem:[#allocation7 + $0xae0] sm:$0xff]
        %v641 = vld [vmem:[#allocation7 + $0xae8] sm:$0xff]
        %v642 = vld [vmem:[#allocation7 + $0xaf0] sm:$0xff]
        %v643 = vld [vmem:[#allocation7 + $0xaf8] sm:$0xff]
        %v644 = vld [vmem:[#allocation7 + $0xb00] sm:$0xff]
        %v645 = vld [vmem:[#allocation7 + $0xb08] sm:$0xff]
        %v646 = vld [vmem:[#allocation7 + $0xb10] sm:$0xff]
        %v647 = vld [vmem:[#allocation7 + $0xb18] sm:$0xff]
        %v648 = vld [vmem:[#allocation7 + $0xb20] sm:$0xff]
        %v649 = vld [vmem:[#allocation7 + $0xb28] sm:$0xff]
        %v650 = vld [vmem:[#allocation7 + $0xb30] sm:$0xff]
        %v651 = vld [vmem:[#allocation7 + $0xb38] sm:$0xff]
        %v652 = vld [vmem:[#allocation7 + $0xb40] sm:$0xff]
        %v653 = vld [vmem:[#allocation7 + $0xb48] sm:$0xff]
        %v654 = vld [vmem:[#allocation7 + $0xb50] sm:$0xff]
        %v655 = vld [vmem:[#allocation7 + $0xb58] sm:$0xff]
        %v656 = vld [vmem:[#allocation7 + $0xb60] sm:$0xff]
        %v657 = vld [vmem:[#allocation7 + $0xb68] sm:$0xff]
        %v658 = vld [vmem:[#allocation7 + $0xb70] sm:$0xff]
        %v659 = vld [vmem:[#allocation7 + $0xb78] sm:$0xff]
        %v660 = vld [vmem:[#allocation7 + $0xb80] sm:$0xff]
        %v661 = vld [vmem:[#allocation7 + $0xb88] sm:$0xff]
        %v662 = vld [vmem:[#allocation7 + $0xb90] sm:$0xff]
        %v663 = vld [vmem:[#allocation7 + $0xb98] sm:$0xff]
        %v664 = vld [vmem:[#allocation7 + $0xba0] sm:$0xff]
        %v665 = vld [vmem:[#allocation7 + $0xba8] sm:$0xff]
        %v666 = vld [vmem:[#allocation7 + $0xbb0] sm:$0xff]
        %v667 = vld [vmem:[#allocation7 + $0xbb8] sm:$0xff]
        %v668 = vld [vmem:[#allocation7 + $0xbc0] sm:$0xff]
        %v669 = vld [vmem:[#allocation7 + $0xbc8] sm:$0xff]
        %v670 = vld [vmem:[#allocation7 + $0xbd0] sm:$0xff]
        %v671 = vld [vmem:[#allocation7 + $0xbd8] sm:$0xff]
        %v672 = vld [vmem:[#allocation7 + $0xbe0] sm:$0xff]
        %v673 = vld [vmem:[#allocation7 + $0xbe8] sm:$0xff]
        %v674 = vld [vmem:[#allocation7 + $0xbf0] sm:$0xff]
        %v675 = vld [vmem:[#allocation7 + $0xbf8] sm:$0xff]
        %v676 = vld [vmem:[#allocation7 + $0xc00] sm:$0xff]
        %v677 = vld [vmem:[#allocation7 + $0xc08] sm:$0xff]
        %v678 = vld [vmem:[#allocation7 + $0xc10] sm:$0xff]
        %v679 = vld [vmem:[#allocation7 + $0xc18] sm:$0xff]
        %v680 = vld [vmem:[#allocation7 + $0xc20] sm:$0xff]
        %v681 = vld [vmem:[#allocation7 + $0xc28] sm:$0xff]
        %v682 = vld [vmem:[#allocation7 + $0xc30] sm:$0xff]
        %v683 = vld [vmem:[#allocation7 + $0xc38] sm:$0xff]
        %v684 = vld [vmem:[#allocation7 + $0xc40] sm:$0xff]
        %v685 = vld [vmem:[#allocation7 + $0xc48] sm:$0xff]
        %v686 = vld [vmem:[#allocation7 + $0xc50] sm:$0xff]
        %v687 = vld [vmem:[#allocation7 + $0xc58] sm:$0xff]
        %v688 = vld [vmem:[#allocation7 + $0xc60] sm:$0xff]
        %v689 = vld [vmem:[#allocation7 + $0xc68] sm:$0xff]
        %v690 = vld [vmem:[#allocation7 + $0xc70] sm:$0xff]
        %v691 = vld [vmem:[#allocation7 + $0xc78] sm:$0xff]
        %v692 = vld [vmem:[#allocation7 + $0xc80] sm:$0xff]
        %v693 = vld [vmem:[#allocation7 + $0xc88] sm:$0xff]
        %v694 = vld [vmem:[#allocation7 + $0xc90] sm:$0xff]
        %v695 = vld [vmem:[#allocation7 + $0xc98] sm:$0xff]
        %v696 = vld [vmem:[#allocation7 + $0xca0] sm:$0xff]
        %v697 = vld [vmem:[#allocation7 + $0xca8] sm:$0xff]
        %v698 = vld [vmem:[#allocation7 + $0xcb0] sm:$0xff]
        %v699 = vld [vmem:[#allocation7 + $0xcb8] sm:$0xff]
        %v700 = vld [vmem:[#allocation7 + $0xcc0] sm:$0xff]
        %v701 = vld [vmem:[#allocation7 + $0xcc8] sm:$0xff]
        %v702 = vld [vmem:[#allocation7 + $0xcd0] sm:$0xff]
        %v703 = vld [vmem:[#allocation7 + $0xcd8] sm:$0xff]
        %v704 = vld [vmem:[#allocation7 + $0xce0] sm:$0xff]
        %v705 = vld [vmem:[#allocation7 + $0xce8] sm:$0xff]
        %v706 = vld [vmem:[#allocation7 + $0xcf0] sm:$0xff]
        %v707 = vld [vmem:[#allocation7 + $0xcf8] sm:$0xff]
        %v708 = vld [vmem:[#allocation7 + $0xd00] sm:$0xff]
        %v709 = vld [vmem:[#allocation7 + $0xd08] sm:$0xff]
        %v710 = vld [vmem:[#allocation7 + $0xd10] sm:$0xff]
        %v711 = vld [vmem:[#allocation7 + $0xd18] sm:$0xff]
        %v712 = vld [vmem:[#allocation7 + $0xd20] sm:$0xff]
        %v713 = vld [vmem:[#allocation7 + $0xd28] sm:$0xff]
        %v714 = vld [vmem:[#allocation7 + $0xd30] sm:$0xff]
        %v715 = vld [vmem:[#allocation7 + $0xd38] sm:$0xff]
        %v716 = vld [vmem:[#allocation7 + $0xd40] sm:$0xff]
        %v717 = vld [vmem:[#allocation7 + $0xd48] sm:$0xff]
        %v718 = vld [vmem:[#allocation7 + $0xd50] sm:$0xff]
        %v719 = vld [vmem:[#allocation7 + $0xd58] sm:$0xff]
        %v720 = vld [vmem:[#allocation7 + $0xd60] sm:$0xff]
        %v721 = vld [vmem:[#allocation7 + $0xd68] sm:$0xff]
        %v722 = vld [vmem:[#allocation7 + $0xd70] sm:$0xff]
        %v723 = vld [vmem:[#allocation7 + $0xd78] sm:$0xff]
        %v724 = vld [vmem:[#allocation7 + $0xd80] sm:$0xff]
        %v725 = vld [vmem:[#allocation7 + $0xd88] sm:$0xff]
        %v726 = vld [vmem:[#allocation7 + $0xd90] sm:$0xff]
        %v727 = vld [vmem:[#allocation7 + $0xd98] sm:$0xff]
        %v728 = vld [vmem:[#allocation7 + $0xda0] sm:$0xff]
        %v729 = vld [vmem:[#allocation7 + $0xda8] sm:$0xff]
        %v730 = vld [vmem:[#allocation7 + $0xdb0] sm:$0xff]
        %v731 = vld [vmem:[#allocation7 + $0xdb8] sm:$0xff]
        %v732 = vld [vmem:[#allocation7 + $0xdc0] sm:$0xff]
        %v733 = vld [vmem:[#allocation7 + $0xdc8] sm:$0xff]
        %v734 = vld [vmem:[#allocation7 + $0xdd0] sm:$0xff]
        %v735 = vld [vmem:[#allocation7 + $0xdd8] sm:$0xff]
        %v736 = vld [vmem:[#allocation7 + $0xde0] sm:$0xff]
        %v737 = vld [vmem:[#allocation7 + $0xde8] sm:$0xff]
        %v738 = vld [vmem:[#allocation7 + $0xdf0] sm:$0xff]
        %v739 = vld [vmem:[#allocation7 + $0xdf8] sm:$0xff]
        %v740 = vld [vmem:[#allocation7 + $0xe00] sm:$0xff]
        %v741 = vld [vmem:[#allocation7 + $0xe08] sm:$0xff]
        %v742 = vld [vmem:[#allocation7 + $0xe10] sm:$0xff]
        %v743 = vld [vmem:[#allocation7 + $0xe18] sm:$0xff]
        %v744 = vld [vmem:[#allocation7 + $0xe20] sm:$0xff]
        %v745 = vld [vmem:[#allocation7 + $0xe28] sm:$0xff]
        %v746 = vld [vmem:[#allocation7 + $0xe30] sm:$0xff]
        %v747 = vld [vmem:[#allocation7 + $0xe38] sm:$0xff]
        %v748 = vld [vmem:[#allocation7 + $0xe40] sm:$0xff]
        %v749 = vld [vmem:[#allocation7 + $0xe48] sm:$0xff]
        %v750 = vld [vmem:[#allocation7 + $0xe50] sm:$0xff]
        %v751 = vld [vmem:[#allocation7 + $0xe58] sm:$0xff]
        %v752 = vld [vmem:[#allocation7 + $0xe60] sm:$0xff]
        %v753 = vld [vmem:[#allocation7 + $0xe68] sm:$0xff]
        %v754 = vld [vmem:[#allocation7 + $0xe70] sm:$0xff]
        %v755 = vld [vmem:[#allocation7 + $0xe78] sm:$0xff]
        %v756 = vld [vmem:[#allocation7 + $0xe80] sm:$0xff]
        %v757 = vld [vmem:[#allocation7 + $0xe88] sm:$0xff]
        %v758 = vld [vmem:[#allocation7 + $0xe90] sm:$0xff]
        %v759 = vld [vmem:[#allocation7 + $0xe98] sm:$0xff]
        %v760 = vld [vmem:[#allocation7 + $0xea0] sm:$0xff]
        %v761 = vld [vmem:[#allocation7 + $0xea8] sm:$0xff]
        %v762 = vld [vmem:[#allocation7 + $0xeb0] sm:$0xff]
        %v763 = vld [vmem:[#allocation7 + $0xeb8] sm:$0xff]
        %v764 = vld [vmem:[#allocation7 + $0xec0] sm:$0xff]
        %v765 = vld [vmem:[#allocation7 + $0xec8] sm:$0xff]
        %v766 = vld [vmem:[#allocation7 + $0xed0] sm:$0xff]
        %v767 = vld [vmem:[#allocation7 + $0xed8] sm:$0xff]
        %v768 = vld [vmem:[#allocation7 + $0xee0] sm:$0xff]
        %v769 = vld [vmem:[#allocation7 + $0xee8] sm:$0xff]
        %v770 = vld [vmem:[#allocation7 + $0xef0] sm:$0xff]
        %v771 = vld [vmem:[#allocation7 + $0xef8] sm:$0xff]
        %v772 = vld [vmem:[#allocation7 + $0xf00] sm:$0xff]
        %v773 = vld [vmem:[#allocation7 + $0xf08] sm:$0xff]
        %v774 = vld [vmem:[#allocation7 + $0xf10] sm:$0xff]
        %v775 = vld [vmem:[#allocation7 + $0xf18] sm:$0xff]
        %v776 = vld [vmem:[#allocation7 + $0xf20] sm:$0xff]
        %v777 = vld [vmem:[#allocation7 + $0xf28] sm:$0xff]
        %v778 = vld [vmem:[#allocation7 + $0xf30] sm:$0xff]
        %v779 = vld [vmem:[#allocation7 + $0xf38] sm:$0xff]
        %v780 = vld [vmem:[#allocation7 + $0xf40] sm:$0xff]
        %v781 = vld [vmem:[#allocation7 + $0xf48] sm:$0xff]
        %v782 = vld [vmem:[#allocation7 + $0xf50] sm:$0xff]
        %v783 = vld [vmem:[#allocation7 + $0xf58] sm:$0xff]
        %v784 = vld [vmem:[#allocation7 + $0xf60] sm:$0xff]
        %v785 = vld [vmem:[#allocation7 + $0xf68] sm:$0xff]
        %v786 = vld [vmem:[#allocation7 + $0xf70] sm:$0xff]
        %v787 = vld [vmem:[#allocation7 + $0xf78] sm:$0xff]
        %v788 = vld [vmem:[#allocation7 + $0xf80] sm:$0xff]
        %v789 = vld [vmem:[#allocation7 + $0xf88] sm:$0xff]
        %v790 = vld [vmem:[#allocation7 + $0xf90] sm:$0xff]
        %v791 = vld [vmem:[#allocation7 + $0xf98] sm:$0xff]
        %v792 = vld [vmem:[#allocation7 + $0xfa0] sm:$0xff]
        %v793 = vld [vmem:[#allocation7 + $0xfa8] sm:$0xff]
        %v794 = vld [vmem:[#allocation7 + $0xfb0] sm:$0xff]
        %v795 = vld [vmem:[#allocation7 + $0xfb8] sm:$0xff]
        %v796 = vld [vmem:[#allocation7 + $0xfc0] sm:$0xff]
        %v797 = vld [vmem:[#allocation7 + $0xfc8] sm:$0xff]
        %v798 = vld [vmem:[#allocation7 + $0xfd0] sm:$0xff]
        %v799 = vld [vmem:[#allocation7 + $0xfd8] sm:$0xff]
        %v800 = vld [vmem:[#allocation7 + $0xfe0] sm:$0xff]
        %v801 = vld [vmem:[#allocation7 + $0xfe8] sm:$0xff]
        %v802 = vld [vmem:[#allocation7 + $0xff0] sm:$0xff]
        %v803 = vld [vmem:[#allocation7 + $0xff8] sm:$0xff]
        %v804 = vld [vmem:[#allocation7 + $0x1000] sm:$0xff]
        %v805 = vld [vmem:[#allocation7 + $0x1008] sm:$0xff]
        %v806 = vld [vmem:[#allocation7 + $0x1010] sm:$0xff]
        %v807 = vld [vmem:[#allocation7 + $0x1018] sm:$0xff]
        %v808 = vld [vmem:[#allocation7 + $0x1020] sm:$0xff]
        %v809 = vld [vmem:[#allocation7 + $0x1028] sm:$0xff]
        %v810 = vld [vmem:[#allocation7 + $0x1030] sm:$0xff]
        %v811 = vld [vmem:[#allocation7 + $0x1038] sm:$0xff]
        %v812 = vld [vmem:[#allocation7 + $0x1040] sm:$0xff]
        %v813 = vld [vmem:[#allocation7 + $0x1048] sm:$0xff]
        %v814 = vld [vmem:[#allocation7 + $0x1050] sm:$0xff]
        %v815 = vld [vmem:[#allocation7 + $0x1058] sm:$0xff]
        %v816 = vld [vmem:[#allocation7 + $0x1060] sm:$0xff]
        %v817 = vld [vmem:[#allocation7 + $0x1068] sm:$0xff]
        %v818 = vld [vmem:[#allocation7 + $0x1070] sm:$0xff]
        %v819 = vld [vmem:[#allocation7 + $0x1078] sm:$0xff]
        %v820 = vld [vmem:[#allocation7 + $0x1080] sm:$0xff]
        %v821 = vld [vmem:[#allocation7 + $0x1088] sm:$0xff]
        %v822 = vld [vmem:[#allocation7 + $0x1090] sm:$0xff]
        %v823 = vld [vmem:[#allocation7 + $0x1098] sm:$0xff]
        %v824 = vld [vmem:[#allocation7 + $0x10a0] sm:$0xff]
        %v825 = vld [vmem:[#allocation7 + $0x10a8] sm:$0xff]
        %v826 = vld [vmem:[#allocation7 + $0x10b0] sm:$0xff]
        %v827 = vld [vmem:[#allocation7 + $0x10b8] sm:$0xff]
        %v828 = vld [vmem:[#allocation7 + $0x10c0] sm:$0xff]
        %v829 = vld [vmem:[#allocation7 + $0x10c8] sm:$0xff]
        %v830 = vld [vmem:[#allocation7 + $0x10d0] sm:$0xff]
        %v831 = vld [vmem:[#allocation7 + $0x10d8] sm:$0xff]
        %v832 = vld [vmem:[#allocation7 + $0x10e0] sm:$0xff]
        %v833 = vld [vmem:[#allocation7 + $0x10e8] sm:$0xff]
        %v834 = vld [vmem:[#allocation7 + $0x10f0] sm:$0xff]
        %v835 = vld [vmem:[#allocation7 + $0x10f8] sm:$0xff]
        %v836 = vld [vmem:[#allocation7 + $0x1100] sm:$0xff]
        %v837 = vld [vmem:[#allocation7 + $0x1108] sm:$0xff]
        %v838 = vld [vmem:[#allocation7 + $0x1110] sm:$0xff]
        %v839 = vld [vmem:[#allocation7 + $0x1118] sm:$0xff]
        %v840 = vld [vmem:[#allocation7 + $0x1120] sm:$0xff]
        %v841 = vld [vmem:[#allocation7 + $0x1128] sm:$0xff]
        %v842 = vld [vmem:[#allocation7 + $0x1130] sm:$0xff]
        %v843 = vld [vmem:[#allocation7 + $0x1138] sm:$0xff]
        %v844 = vld [vmem:[#allocation7 + $0x1140] sm:$0xff]
        %v845 = vld [vmem:[#allocation7 + $0x1148] sm:$0xff]
        %v846 = vld [vmem:[#allocation7 + $0x1150] sm:$0xff]
        %v847 = vld [vmem:[#allocation7 + $0x1158] sm:$0xff]
        %v848 = vld [vmem:[#allocation7 + $0x1160] sm:$0xff]
        %v849 = vld [vmem:[#allocation7 + $0x1168] sm:$0xff]
        %v850 = vld [vmem:[#allocation7 + $0x1170] sm:$0xff]
        %v851 = vld [vmem:[#allocation7 + $0x1178] sm:$0xff]
        %v852 = vld [vmem:[#allocation7 + $0x1180] sm:$0xff]
        %v853 = vld [vmem:[#allocation7 + $0x1188] sm:$0xff]
        %v854 = vld [vmem:[#allocation7 + $0x1190] sm:$0xff]
        %v855 = vld [vmem:[#allocation7 + $0x1198] sm:$0xff]
        %v856 = vld [vmem:[#allocation7 + $0x11a0] sm:$0xff]
        %v857 = vld [vmem:[#allocation7 + $0x11a8] sm:$0xff]
        %v858 = vld [vmem:[#allocation7 + $0x11b0] sm:$0xff]
        %v859 = vld [vmem:[#allocation7 + $0x11b8] sm:$0xff]
        %v860 = vld [vmem:[#allocation7 + $0x11c0] sm:$0xff]
        %v861 = vld [vmem:[#allocation7 + $0x11c8] sm:$0xff]
        %v862 = vld [vmem:[#allocation7 + $0x11d0] sm:$0xff]
        %v863 = vld [vmem:[#allocation7 + $0x11d8] sm:$0xff]
        %v864 = vld [vmem:[#allocation7 + $0x11e0] sm:$0xff]
        %v865 = vld [vmem:[#allocation7 + $0x11e8] sm:$0xff]
        %v866 = vld [vmem:[#allocation7 + $0x11f0] sm:$0xff]
        %v867 = vld [vmem:[#allocation7 + $0x11f8] sm:$0xff]
        %v868 = vld [vmem:[#allocation7 + $0x1200] sm:$0xff]
        %v869 = vld [vmem:[#allocation7 + $0x1208] sm:$0xff]
        %v870 = vld [vmem:[#allocation7 + $0x1210] sm:$0xff]
        %v871 = vld [vmem:[#allocation7 + $0x1218] sm:$0xff]
        %v872 = vld [vmem:[#allocation7 + $0x1220] sm:$0xff]
        %v873 = vld [vmem:[#allocation7 + $0x1228] sm:$0xff]
        %v874 = vld [vmem:[#allocation7 + $0x1230] sm:$0xff]
        %v875 = vld [vmem:[#allocation7 + $0x1238] sm:$0xff]
        %v876 = vld [vmem:[#allocation7 + $0x1240] sm:$0xff]
        %v877 = vld [vmem:[#allocation7 + $0x1248] sm:$0xff]
        %v878 = vld [vmem:[#allocation7 + $0x1250] sm:$0xff]
        %v879 = vld [vmem:[#allocation7 + $0x1258] sm:$0xff]
        %v880 = vld [vmem:[#allocation7 + $0x1260] sm:$0xff]
        %v881 = vld [vmem:[#allocation7 + $0x1268] sm:$0xff]
        %v882 = vld [vmem:[#allocation7 + $0x1270] sm:$0xff]
        %v883 = vld [vmem:[#allocation7 + $0x1278] sm:$0xff]
        %v884 = vld [vmem:[#allocation7 + $0x1280] sm:$0xff]
        %v885 = vld [vmem:[#allocation7 + $0x1288] sm:$0xff]
        %v886 = vld [vmem:[#allocation7 + $0x1290] sm:$0xff]
        %v887 = vld [vmem:[#allocation7 + $0x1298] sm:$0xff]
        %v888 = vld [vmem:[#allocation7 + $0x12a0] sm:$0xff]
        %v889 = vld [vmem:[#allocation7 + $0x12a8] sm:$0xff]
        %v890 = vld [vmem:[#allocation7 + $0x12b0] sm:$0xff]
        %v891 = vld [vmem:[#allocation7 + $0x12b8] sm:$0xff]
        %v892 = vld [vmem:[#allocation7 + $0x12c0] sm:$0xff]
        %v893 = vld [vmem:[#allocation7 + $0x12c8] sm:$0xff]
        %v894 = vld [vmem:[#allocation7 + $0x12d0] sm:$0xff]
        %v895 = vld [vmem:[#allocation7 + $0x12d8] sm:$0xff]
        %v896 = vld [vmem:[#allocation7 + $0x12e0] sm:$0xff]
        %v897 = vld [vmem:[#allocation7 + $0x12e8] sm:$0xff]
        %v898 = vld [vmem:[#allocation7 + $0x12f0] sm:$0xff]
        %v899 = vld [vmem:[#allocation7 + $0x12f8] sm:$0xff]
        %v900 = vld [vmem:[#allocation7 + $0x1300] sm:$0xff]
        %v901 = vld [vmem:[#allocation7 + $0x1308] sm:$0xff]
        %v902 = vld [vmem:[#allocation7 + $0x1310] sm:$0xff]
        %v903 = vld [vmem:[#allocation7 + $0x1318] sm:$0xff]
        %v904 = vld [vmem:[#allocation7 + $0x1320] sm:$0xff]
        %v905 = vld [vmem:[#allocation7 + $0x1328] sm:$0xff]
        %v906 = vld [vmem:[#allocation7 + $0x1330] sm:$0xff]
        %v907 = vld [vmem:[#allocation7 + $0x1338] sm:$0xff]
        %v908 = vld [vmem:[#allocation7 + $0x1340] sm:$0xff]
        %v909 = vld [vmem:[#allocation7 + $0x1348] sm:$0xff]
        %v910 = vld [vmem:[#allocation7 + $0x1350] sm:$0xff]
        %v911 = vld [vmem:[#allocation7 + $0x1358] sm:$0xff]
        %v912 = vld [vmem:[#allocation7 + $0x1360] sm:$0xff]
        %v913 = vld [vmem:[#allocation7 + $0x1368] sm:$0xff]
        %v914 = vld [vmem:[#allocation7 + $0x1370] sm:$0xff]
        %v915 = vld [vmem:[#allocation7 + $0x1378] sm:$0xff]
        %v916 = vld [vmem:[#allocation7 + $0x1380] sm:$0xff]
        %v917 = vld [vmem:[#allocation7 + $0x1388] sm:$0xff]
        %v918 = vld [vmem:[#allocation7 + $0x1390] sm:$0xff]
        %v919 = vld [vmem:[#allocation7 + $0x1398] sm:$0xff]
        %v920 = vld [vmem:[#allocation7 + $0x13a0] sm:$0xff]
        %v921 = vld [vmem:[#allocation7 + $0x13a8] sm:$0xff]
        %v922 = vld [vmem:[#allocation7 + $0x13b0] sm:$0xff]
        %v923 = vld [vmem:[#allocation7 + $0x13b8] sm:$0xff]
        %v924 = vld [vmem:[#allocation7 + $0x13c0] sm:$0xff]
        %v925 = vld [vmem:[#allocation7 + $0x13c8] sm:$0xff]
        %v926 = vld [vmem:[#allocation7 + $0x13d0] sm:$0xff]
        %v927 = vld [vmem:[#allocation7 + $0x13d8] sm:$0xff]
        %v928 = vld [vmem:[#allocation7 + $0x13e0] sm:$0xff]
        %v929 = vld [vmem:[#allocation7 + $0x13e8] sm:$0xff]
        %v930 = vld [vmem:[#allocation7 + $0x13f0] sm:$0xff]
        %v931 = vld [vmem:[#allocation7 + $0x13f8] sm:$0xff]
        %v932 = vld [vmem:[#allocation7 + $0x1400] sm:$0xff]
        %v933 = vld [vmem:[#allocation7 + $0x1408] sm:$0xff]
        %v934 = vld [vmem:[#allocation7 + $0x1410] sm:$0xff]
        %v935 = vld [vmem:[#allocation7 + $0x1418] sm:$0xff]
        %v936 = vld [vmem:[#allocation7 + $0x1420] sm:$0xff]
        %v937 = vld [vmem:[#allocation7 + $0x1428] sm:$0xff]
        %v938 = vld [vmem:[#allocation7 + $0x1430] sm:$0xff]
        %v939 = vld [vmem:[#allocation7 + $0x1438] sm:$0xff]
        %v940 = vld [vmem:[#allocation7 + $0x1440] sm:$0xff]
        %v941 = vld [vmem:[#allocation7 + $0x1448] sm:$0xff]
        %v942 = vld [vmem:[#allocation7 + $0x1450] sm:$0xff]
        %v943 = vld [vmem:[#allocation7 + $0x1458] sm:$0xff]
        %v944 = vld [vmem:[#allocation7 + $0x1460] sm:$0xff]
        %v945 = vld [vmem:[#allocation7 + $0x1468] sm:$0xff]
        %v946 = vld [vmem:[#allocation7 + $0x1470] sm:$0xff]
        %v947 = vld [vmem:[#allocation7 + $0x1478] sm:$0xff]
        %v948 = vld [vmem:[#allocation7 + $0x1480] sm:$0xff]
        %v949 = vld [vmem:[#allocation7 + $0x1488] sm:$0xff]
        %v950 = vld [vmem:[#allocation7 + $0x1490] sm:$0xff]
        %v951 = vld [vmem:[#allocation7 + $0x1498] sm:$0xff]
        %v952 = vld [vmem:[#allocation7 + $0x14a0] sm:$0xff]
        %v953 = vld [vmem:[#allocation7 + $0x14a8] sm:$0xff]
        %v954 = vld [vmem:[#allocation7 + $0x14b0] sm:$0xff]
        %v955 = vld [vmem:[#allocation7 + $0x14b8] sm:$0xff]
        %v956 = vld [vmem:[#allocation7 + $0x14c0] sm:$0xff]
        %v957 = vld [vmem:[#allocation7 + $0x14c8] sm:$0xff]
        %v958 = vld [vmem:[#allocation7 + $0x14d0] sm:$0xff]
        %v959 = vld [vmem:[#allocation7 + $0x14d8] sm:$0xff]
        %v960 = vld [vmem:[#allocation7 + $0x14e0] sm:$0xff]
        %v961 = vld [vmem:[#allocation7 + $0x14e8] sm:$0xff]
        %v962 = vld [vmem:[#allocation7 + $0x14f0] sm:$0xff]
        %v963 = vld [vmem:[#allocation7 + $0x14f8] sm:$0xff]
        %v964 = vld [vmem:[#allocation7 + $0x1500] sm:$0xff]
        %v965 = vld [vmem:[#allocation7 + $0x1508] sm:$0xff]
        %v966 = vld [vmem:[#allocation7 + $0x1510] sm:$0xff]
        %v967 = vld [vmem:[#allocation7 + $0x1518] sm:$0xff]
        %v968 = vld [vmem:[#allocation7 + $0x1520] sm:$0xff]
        %v969 = vld [vmem:[#allocation7 + $0x1528] sm:$0xff]
        %v970 = vld [vmem:[#allocation7 + $0x1530] sm:$0xff]
        %v971 = vld [vmem:[#allocation7 + $0x1538] sm:$0xff]
        %v972 = vld [vmem:[#allocation7 + $0x1540] sm:$0xff]
        %v973 = vld [vmem:[#allocation7 + $0x1548] sm:$0xff]
        %v974 = vld [vmem:[#allocation7 + $0x1550] sm:$0xff]
        %v975 = vld [vmem:[#allocation7 + $0x1558] sm:$0xff]
        %v976 = vld [vmem:[#allocation7 + $0x1560] sm:$0xff]
        %v977 = vld [vmem:[#allocation7 + $0x1568] sm:$0xff]
        %v978 = vld [vmem:[#allocation7 + $0x1570] sm:$0xff]
        %v979 = vld [vmem:[#allocation7 + $0x1578] sm:$0xff]
        %v980 = vld [vmem:[#allocation7 + $0x1580] sm:$0xff]
        %v981 = vld [vmem:[#allocation7 + $0x1588] sm:$0xff]
        %v982 = vld [vmem:[#allocation7 + $0x1590] sm:$0xff]
        %v983 = vld [vmem:[#allocation7 + $0x1598] sm:$0xff]
        %v984 = vld [vmem:[#allocation7 + $0x15a0] sm:$0xff]
        %v985 = vld [vmem:[#allocation7 + $0x15a8] sm:$0xff]
        %v986 = vld [vmem:[#allocation7 + $0x15b0] sm:$0xff]
        %v987 = vld [vmem:[#allocation7 + $0x15b8] sm:$0xff]
        %v988 = vld [vmem:[#allocation7 + $0x15c0] sm:$0xff]
        %v989 = vld [vmem:[#allocation7 + $0x15c8] sm:$0xff]
        %v990 = vld [vmem:[#allocation7 + $0x15d0] sm:$0xff]
        %v991 = vld [vmem:[#allocation7 + $0x15d8] sm:$0xff]
        %v992 = vld [vmem:[#allocation7 + $0x15e0] sm:$0xff]
        %v993 = vld [vmem:[#allocation7 + $0x15e8] sm:$0xff]
        %v994 = vld [vmem:[#allocation7 + $0x15f0] sm:$0xff]
        %v995 = vld [vmem:[#allocation7 + $0x15f8] sm:$0xff]
        %v996 = vld [vmem:[#allocation7 + $0x1600] sm:$0xff]
        %v997 = vld [vmem:[#allocation7 + $0x1608] sm:$0xff]
        %v998 = vld [vmem:[#allocation7 + $0x1610] sm:$0xff]
        %v999 = vld [vmem:[#allocation7 + $0x1618] sm:$0xff]
        %v1000 = vld [vmem:[#allocation7 + $0x1620] sm:$0xff]
        %v1001 = vld [vmem:[#allocation7 + $0x1628] sm:$0xff]
        %v1002 = vld [vmem:[#allocation7 + $0x1630] sm:$0xff]
        %v1003 = vld [vmem:[#allocation7 + $0x1638] sm:$0xff]
        %v1004 = vld [vmem:[#allocation7 + $0x1640] sm:$0xff]
        %v1005 = vld [vmem:[#allocation7 + $0x1648] sm:$0xff]
        %v1006 = vld [vmem:[#allocation7 + $0x1650] sm:$0xff]
        %v1007 = vld [vmem:[#allocation7 + $0x1658] sm:$0xff]
        %v1008 = vld [vmem:[#allocation7 + $0x1660] sm:$0xff]
        %v1009 = vld [vmem:[#allocation7 + $0x1668] sm:$0xff]
        %v1010 = vld [vmem:[#allocation7 + $0x1670] sm:$0xff]
        %v1011 = vld [vmem:[#allocation7 + $0x1678] sm:$0xff]
        %v1012 = vld [vmem:[#allocation7 + $0x1680] sm:$0xff]
        %v1013 = vld [vmem:[#allocation7 + $0x1688] sm:$0xff]
        %v1014 = vld [vmem:[#allocation7 + $0x1690] sm:$0xff]
        %v1015 = vld [vmem:[#allocation7 + $0x1698] sm:$0xff]
        %v1016 = vld [vmem:[#allocation7 + $0x16a0] sm:$0xff]
        %v1017 = vld [vmem:[#allocation7 + $0x16a8] sm:$0xff]
        %v1018 = vld [vmem:[#allocation7 + $0x16b0] sm:$0xff]
        %v1019 = vld [vmem:[#allocation7 + $0x16b8] sm:$0xff]
        %v1020 = vld [vmem:[#allocation7 + $0x16c0] sm:$0xff]
        %v1021 = vld [vmem:[#allocation7 + $0x16c8] sm:$0xff]
        %v1022 = vld [vmem:[#allocation7 + $0x16d0] sm:$0xff]
        %v1023 = vld [vmem:[#allocation7 + $0x16d8] sm:$0xff]
        %v1024 = vld [vmem:[#allocation7 + $0x16e0] sm:$0xff]
        %v1025 = vld [vmem:[#allocation7 + $0x16e8] sm:$0xff]
        %v1026 = vld [vmem:[#allocation7 + $0x16f0] sm:$0xff]
        %v1027 = vld [vmem:[#allocation7 + $0x16f8] sm:$0xff]
        %v1028 = vld [vmem:[#allocation7 + $0x1700] sm:$0xff]
        %v1029 = vld [vmem:[#allocation7 + $0x1708] sm:$0xff]
        %v1030 = vld [vmem:[#allocation7 + $0x1710] sm:$0xff]
        %v1031 = vld [vmem:[#allocation7 + $0x1718] sm:$0xff]
        %v1032 = vld [vmem:[#allocation7 + $0x1720] sm:$0xff]
        %v1033 = vld [vmem:[#allocation7 + $0x1728] sm:$0xff]
        %v1034 = vld [vmem:[#allocation7 + $0x1730] sm:$0xff]
        %v1035 = vld [vmem:[#allocation7 + $0x1738] sm:$0xff]
        %v1036 = vld [vmem:[#allocation7 + $0x1740] sm:$0xff]
        %v1037 = vld [vmem:[#allocation7 + $0x1748] sm:$0xff]
        %v1038 = vld [vmem:[#allocation7 + $0x1750] sm:$0xff]
        %v1039 = vld [vmem:[#allocation7 + $0x1758] sm:$0xff]
        %v1040 = vld [vmem:[#allocation7 + $0x1760] sm:$0xff]
        %v1041 = vld [vmem:[#allocation7 + $0x1768] sm:$0xff]
        %v1042 = vld [vmem:[#allocation7 + $0x1770] sm:$0xff]
        %v1043 = vld [vmem:[#allocation7 + $0x1778] sm:$0xff]
        %v1044 = vld [vmem:[#allocation7 + $0x1780] sm:$0xff]
        %v1045 = vld [vmem:[#allocation7 + $0x1788] sm:$0xff]
        %v1046 = vld [vmem:[#allocation7 + $0x1790] sm:$0xff]
        %v1047 = vld [vmem:[#allocation7 + $0x1798] sm:$0xff]
        %v1048 = vld [vmem:[#allocation7 + $0x17a0] sm:$0xff]
        %v1049 = vld [vmem:[#allocation7 + $0x17a8] sm:$0xff]
        %v1050 = vld [vmem:[#allocation7 + $0x17b0] sm:$0xff]
        %v1051 = vld [vmem:[#allocation7 + $0x17b8] sm:$0xff]
        %v1052 = vld [vmem:[#allocation7 + $0x17c0] sm:$0xff]
        %v1053 = vld [vmem:[#allocation7 + $0x17c8] sm:$0xff]
        %v1054 = vld [vmem:[#allocation7 + $0x17d0] sm:$0xff]
        %v1055 = vld [vmem:[#allocation7 + $0x17d8] sm:$0xff]
        %v1056 = vld [vmem:[#allocation7 + $0x17e0] sm:$0xff]
        %v1057 = vld [vmem:[#allocation7 + $0x17e8] sm:$0xff]
        %v1058 = vld [vmem:[#allocation7 + $0x17f0] sm:$0xff]
        %v1059 = vld [vmem:[#allocation7 + $0x17f8] sm:$0xff]
        %v1060 = vld [vmem:[#allocation7 + $0x1800] sm:$0xff]
        %v1061 = vld [vmem:[#allocation7 + $0x1808] sm:$0xff]
        %v1062 = vld [vmem:[#allocation7 + $0x1810] sm:$0xff]
        %v1063 = vld [vmem:[#allocation7 + $0x1818] sm:$0xff]
        %v1064 = vld [vmem:[#allocation7 + $0x1820] sm:$0xff]
        %v1065 = vld [vmem:[#allocation7 + $0x1828] sm:$0xff]
        %v1066 = vld [vmem:[#allocation7 + $0x1830] sm:$0xff]
        %v1067 = vld [vmem:[#allocation7 + $0x1838] sm:$0xff]
        %v1068 = vld [vmem:[#allocation7 + $0x1840] sm:$0xff]
        %v1069 = vld [vmem:[#allocation7 + $0x1848] sm:$0xff]
        %v1070 = vld [vmem:[#allocation7 + $0x1850] sm:$0xff]
        %v1071 = vld [vmem:[#allocation7 + $0x1858] sm:$0xff]
        %v1072 = vld [vmem:[#allocation7 + $0x1860] sm:$0xff]
        %v1073 = vld [vmem:[#allocation7 + $0x1868] sm:$0xff]
        %v1074 = vld [vmem:[#allocation7 + $0x1870] sm:$0xff]
        %v1075 = vld [vmem:[#allocation7 + $0x1878] sm:$0xff]
        %v1076 = vld [vmem:[#allocation7 + $0x1880] sm:$0xff]
        %v1077 = vld [vmem:[#allocation7 + $0x1888] sm:$0xff]
        %v1078 = vld [vmem:[#allocation7 + $0x1890] sm:$0xff]
        %v1079 = vld [vmem:[#allocation7 + $0x1898] sm:$0xff]
        %v1080 = vld [vmem:[#allocation7 + $0x18a0] sm:$0xff]
        %v1081 = vld [vmem:[#allocation7 + $0x18a8] sm:$0xff]
        %v1082 = vld [vmem:[#allocation7 + $0x18b0] sm:$0xff]
        %v1083 = vld [vmem:[#allocation7 + $0x18b8] sm:$0xff]
        %v1084 = vld [vmem:[#allocation7 + $0x18c0] sm:$0xff]
        %v1085 = vld [vmem:[#allocation7 + $0x18c8] sm:$0xff]
        %v1086 = vld [vmem:[#allocation7 + $0x18d0] sm:$0xff]
        %v1087 = vld [vmem:[#allocation7 + $0x18d8] sm:$0xff]
        %v1088 = vld [vmem:[#allocation7 + $0x18e0] sm:$0xff]
        %v1089 = vld [vmem:[#allocation7 + $0x18e8] sm:$0xff]
        %v1090 = vld [vmem:[#allocation7 + $0x18f0] sm:$0xff]
        %v1091 = vld [vmem:[#allocation7 + $0x18f8] sm:$0xff]
        %v1092 = vld [vmem:[#allocation7 + $0x1900] sm:$0xff]
        %v1093 = vld [vmem:[#allocation7 + $0x1908] sm:$0xff]
        %v1094 = vld [vmem:[#allocation7 + $0x1910] sm:$0xff]
        %v1095 = vld [vmem:[#allocation7 + $0x1918] sm:$0xff]
        %v1096 = vld [vmem:[#allocation7 + $0x1920] sm:$0xff]
        %v1097 = vld [vmem:[#allocation7 + $0x1928] sm:$0xff]
        %v1098 = vld [vmem:[#allocation7 + $0x1930] sm:$0xff]
        %v1099 = vld [vmem:[#allocation7 + $0x1938] sm:$0xff]
        %v1100 = vld [vmem:[#allocation7 + $0x1940] sm:$0xff]
        %v1101 = vld [vmem:[#allocation7 + $0x1948] sm:$0xff]
        %v1102 = vld [vmem:[#allocation7 + $0x1950] sm:$0xff]
        %v1103 = vld [vmem:[#allocation7 + $0x1958] sm:$0xff]
        %v1104 = vld [vmem:[#allocation7 + $0x1960] sm:$0xff]
        %v1105 = vld [vmem:[#allocation7 + $0x1968] sm:$0xff]
        %v1106 = vld [vmem:[#allocation7 + $0x1970] sm:$0xff]
        %v1107 = vld [vmem:[#allocation7 + $0x1978] sm:$0xff]
        %v1108 = vld [vmem:[#allocation7 + $0x1980] sm:$0xff]
        %v1109 = vld [vmem:[#allocation7 + $0x1988] sm:$0xff]
        %v1110 = vld [vmem:[#allocation7 + $0x1990] sm:$0xff]
        %v1111 = vld [vmem:[#allocation7 + $0x1998] sm:$0xff]
        %v1112 = vld [vmem:[#allocation7 + $0x19a0] sm:$0xff]
        %v1113 = vld [vmem:[#allocation7 + $0x19a8] sm:$0xff]
        %v1114 = vld [vmem:[#allocation7 + $0x19b0] sm:$0xff]
        %v1115 = vld [vmem:[#allocation7 + $0x19b8] sm:$0xff]
        %v1116 = vld [vmem:[#allocation7 + $0x19c0] sm:$0xff]
        %v1117 = vld [vmem:[#allocation7 + $0x19c8] sm:$0xff]
        %v1118 = vld [vmem:[#allocation7 + $0x19d0] sm:$0xff]
        %v1119 = vld [vmem:[#allocation7 + $0x19d8] sm:$0xff]
        %v1120 = vld [vmem:[#allocation7 + $0x19e0] sm:$0xff]
        %v1121 = vld [vmem:[#allocation7 + $0x19e8] sm:$0xff]
        %v1122 = vld [vmem:[#allocation7 + $0x19f0] sm:$0xff]
        %v1123 = vld [vmem:[#allocation7 + $0x19f8] sm:$0xff]
        %v1124 = vld [vmem:[#allocation7 + $0x1a00] sm:$0xff]
        %v1125 = vld [vmem:[#allocation7 + $0x1a08] sm:$0xff]
        %v1126 = vld [vmem:[#allocation7 + $0x1a10] sm:$0xff]
        %v1127 = vld [vmem:[#allocation7 + $0x1a18] sm:$0xff]
        %v1128 = vld [vmem:[#allocation7 + $0x1a20] sm:$0xff]
        %v1129 = vld [vmem:[#allocation7 + $0x1a28] sm:$0xff]
        %v1130 = vld [vmem:[#allocation7 + $0x1a30] sm:$0xff]
        %v1131 = vld [vmem:[#allocation7 + $0x1a38] sm:$0xff]
        %v1132 = vld [vmem:[#allocation7 + $0x1a40] sm:$0xff]
        %v1133 = vld [vmem:[#allocation7 + $0x1a48] sm:$0xff]
        %v1134 = vld [vmem:[#allocation7 + $0x1a50] sm:$0xff]
        %v1135 = vld [vmem:[#allocation7 + $0x1a58] sm:$0xff]
        %v1136 = vld [vmem:[#allocation7 + $0x1a60] sm:$0xff]
        %v1137 = vld [vmem:[#allocation7 + $0x1a68] sm:$0xff]
        %v1138 = vld [vmem:[#allocation7 + $0x1a70] sm:$0xff]
        %v1139 = vld [vmem:[#allocation7 + $0x1a78] sm:$0xff]
        %v1140 = vld [vmem:[#allocation7 + $0x1a80] sm:$0xff]
        %v1141 = vld [vmem:[#allocation7 + $0x1a88] sm:$0xff]
        %v1142 = vld [vmem:[#allocation7 + $0x1a90] sm:$0xff]
        %v1143 = vld [vmem:[#allocation7 + $0x1a98] sm:$0xff]
        %v1144 = vld [vmem:[#allocation7 + $0x1aa0] sm:$0xff]
        %v1145 = vld [vmem:[#allocation7 + $0x1aa8] sm:$0xff]
        %v1146 = vld [vmem:[#allocation7 + $0x1ab0] sm:$0xff]
        %v1147 = vld [vmem:[#allocation7 + $0x1ab8] sm:$0xff]
        %v1148 = vld [vmem:[#allocation7 + $0x1ac0] sm:$0xff]
        %v1149 = vld [vmem:[#allocation7 + $0x1ac8] sm:$0xff]
        %v1150 = vld [vmem:[#allocation7 + $0x1ad0] sm:$0xff]
        %v1151 = vld [vmem:[#allocation7 + $0x1ad8] sm:$0xff]
        %v1152 = vld [vmem:[#allocation7 + $0x1ae0] sm:$0xff]
        %v1153 = vld [vmem:[#allocation7 + $0x1ae8] sm:$0xff]
        %v1154 = vld [vmem:[#allocation7 + $0x1af0] sm:$0xff]
        %v1155 = vld [vmem:[#allocation7 + $0x1af8] sm:$0xff]
        %v1156 = vld [vmem:[#allocation7 + $0x1b00] sm:$0xff]
        %v1157 = vld [vmem:[#allocation7 + $0x1b08] sm:$0xff]
        %v1158 = vld [vmem:[#allocation7 + $0x1b10] sm:$0xff]
        %v1159 = vld [vmem:[#allocation7 + $0x1b18] sm:$0xff]
        %v1160 = vld [vmem:[#allocation7 + $0x1b20] sm:$0xff]
        %v1161 = vld [vmem:[#allocation7 + $0x1b28] sm:$0xff]
        %v1162 = vld [vmem:[#allocation7 + $0x1b30] sm:$0xff]
        %v1163 = vld [vmem:[#allocation7 + $0x1b38] sm:$0xff]
        %v1164 = vld [vmem:[#allocation7 + $0x1b40] sm:$0xff]
        %v1165 = vld [vmem:[#allocation7 + $0x1b48] sm:$0xff]
        %v1166 = vld [vmem:[#allocation7 + $0x1b50] sm:$0xff]
        %v1167 = vld [vmem:[#allocation7 + $0x1b58] sm:$0xff]
        %v1168 = vld [vmem:[#allocation7 + $0x1b60] sm:$0xff]
        %v1169 = vld [vmem:[#allocation7 + $0x1b68] sm:$0xff]
        %v1170 = vld [vmem:[#allocation7 + $0x1b70] sm:$0xff]
        %v1171 = vld [vmem:[#allocation7 + $0x1b78] sm:$0xff]
        %v1172 = vld [vmem:[#allocation7 + $0x1b80] sm:$0xff]
        %v1173 = vld [vmem:[#allocation7 + $0x1b88] sm:$0xff]
        %v1174 = vld [vmem:[#allocation7 + $0x1b90] sm:$0xff]
        %v1175 = vld [vmem:[#allocation7 + $0x1b98] sm:$0xff]
        %v1176 = vld [vmem:[#allocation7 + $0x1ba0] sm:$0xff]
        %v1177 = vld [vmem:[#allocation7 + $0x1ba8] sm:$0xff]
        %v1178 = vld [vmem:[#allocation7 + $0x1bb0] sm:$0xff]
        %v1179 = vld [vmem:[#allocation7 + $0x1bb8] sm:$0xff]
        %v1180 = vld [vmem:[#allocation7 + $0x1bc0] sm:$0xff]
        %v1181 = vld [vmem:[#allocation7 + $0x1bc8] sm:$0xff]
        %v1182 = vld [vmem:[#allocation7 + $0x1bd0] sm:$0xff]
        %v1183 = vld [vmem:[#allocation7 + $0x1bd8] sm:$0xff]
        %v1184 = vld [vmem:[#allocation7 + $0x1be0] sm:$0xff]
        %v1185 = vld [vmem:[#allocation7 + $0x1be8] sm:$0xff]
        %v1186 = vld [vmem:[#allocation7 + $0x1bf0] sm:$0xff]
        %v1187 = vld [vmem:[#allocation7 + $0x1bf8] sm:$0xff]
        %v1188 = vld [vmem:[#allocation7 + $0x1c00] sm:$0xff]
        %v1189 = vld [vmem:[#allocation7 + $0x1c08] sm:$0xff]
        %v1190 = vld [vmem:[#allocation7 + $0x1c10] sm:$0xff]
        %v1191 = vld [vmem:[#allocation7 + $0x1c18] sm:$0xff]
        %v1192 = vld [vmem:[#allocation7 + $0x1c20] sm:$0xff]
        %v1193 = vld [vmem:[#allocation7 + $0x1c28] sm:$0xff]
        %v1194 = vld [vmem:[#allocation7 + $0x1c30] sm:$0xff]
        %v1195 = vld [vmem:[#allocation7 + $0x1c38] sm:$0xff]
        %v1196 = vld [vmem:[#allocation7 + $0x1c40] sm:$0xff]
        %v1197 = vld [vmem:[#allocation7 + $0x1c48] sm:$0xff]
        %v1198 = vld [vmem:[#allocation7 + $0x1c50] sm:$0xff]
        %v1199 = vld [vmem:[#allocation7 + $0x1c58] sm:$0xff]
        %v1200 = vld [vmem:[#allocation7 + $0x1c60] sm:$0xff]
        %v1201 = vld [vmem:[#allocation7 + $0x1c68] sm:$0xff]
        %v1202 = vld [vmem:[#allocation7 + $0x1c70] sm:$0xff]
        %v1203 = vld [vmem:[#allocation7 + $0x1c78] sm:$0xff]
        %v1204 = vld [vmem:[#allocation7 + $0x1c80] sm:$0xff]
        %v1205 = vld [vmem:[#allocation7 + $0x1c88] sm:$0xff]
        %v1206 = vld [vmem:[#allocation7 + $0x1c90] sm:$0xff]
        %v1207 = vld [vmem:[#allocation7 + $0x1c98] sm:$0xff]
        %v1208 = vld [vmem:[#allocation7 + $0x1ca0] sm:$0xff]
        %v1209 = vld [vmem:[#allocation7 + $0x1ca8] sm:$0xff]
        %v1210 = vld [vmem:[#allocation7 + $0x1cb0] sm:$0xff]
        %v1211 = vld [vmem:[#allocation7 + $0x1cb8] sm:$0xff]
        %v1212 = vld [vmem:[#allocation7 + $0x1cc0] sm:$0xff]
        %v1213 = vld [vmem:[#allocation7 + $0x1cc8] sm:$0xff]
        %v1214 = vld [vmem:[#allocation7 + $0x1cd0] sm:$0xff]
        %v1215 = vld [vmem:[#allocation7 + $0x1cd8] sm:$0xff]
        %v1216 = vld [vmem:[#allocation7 + $0x1ce0] sm:$0xff]
        %v1217 = vld [vmem:[#allocation7 + $0x1ce8] sm:$0xff]
        %v1218 = vld [vmem:[#allocation7 + $0x1cf0] sm:$0xff]
        %v1219 = vld [vmem:[#allocation7 + $0x1cf8] sm:$0xff]
        %v1220 = vld [vmem:[#allocation7 + $0x1d00] sm:$0xff]
        %v1221 = vld [vmem:[#allocation7 + $0x1d08] sm:$0xff]
        %v1222 = vld [vmem:[#allocation7 + $0x1d10] sm:$0xff]
        %v1223 = vld [vmem:[#allocation7 + $0x1d18] sm:$0xff]
        %v1224 = vld [vmem:[#allocation7 + $0x1d20] sm:$0xff]
        %v1225 = vld [vmem:[#allocation7 + $0x1d28] sm:$0xff]
        %v1226 = vld [vmem:[#allocation7 + $0x1d30] sm:$0xff]
        %v1227 = vld [vmem:[#allocation7 + $0x1d38] sm:$0xff]
        %v1228 = vld [vmem:[#allocation7 + $0x1d40] sm:$0xff]
        %v1229 = vld [vmem:[#allocation7 + $0x1d48] sm:$0xff]
        %v1230 = vld [vmem:[#allocation7 + $0x1d50] sm:$0xff]
        %v1231 = vld [vmem:[#allocation7 + $0x1d58] sm:$0xff]
        %v1232 = vld [vmem:[#allocation7 + $0x1d60] sm:$0xff]
        %v1233 = vld [vmem:[#allocation7 + $0x1d68] sm:$0xff]
        %v1234 = vld [vmem:[#allocation7 + $0x1d70] sm:$0xff]
        %v1235 = vld [vmem:[#allocation7 + $0x1d78] sm:$0xff]
        %v1236 = vld [vmem:[#allocation7 + $0x1d80] sm:$0xff]
        %v1237 = vld [vmem:[#allocation7 + $0x1d88] sm:$0xff]
        %v1238 = vld [vmem:[#allocation7 + $0x1d90] sm:$0xff]
        %v1239 = vld [vmem:[#allocation7 + $0x1d98] sm:$0xff]
        %v1240 = vld [vmem:[#allocation7 + $0x1da0] sm:$0xff]
        %v1241 = vld [vmem:[#allocation7 + $0x1da8] sm:$0xff]
        %v1242 = vld [vmem:[#allocation7 + $0x1db0] sm:$0xff]
        %v1243 = vld [vmem:[#allocation7 + $0x1db8] sm:$0xff]
        %v1244 = vld [vmem:[#allocation7 + $0x1dc0] sm:$0xff]
        %v1245 = vld [vmem:[#allocation7 + $0x1dc8] sm:$0xff]
        %v1246 = vld [vmem:[#allocation7 + $0x1dd0] sm:$0xff]
        %v1247 = vld [vmem:[#allocation7 + $0x1dd8] sm:$0xff]
        %v1248 = vld [vmem:[#allocation7 + $0x1de0] sm:$0xff]
        %v1249 = vld [vmem:[#allocation7 + $0x1de8] sm:$0xff]
        %v1250 = vld [vmem:[#allocation7 + $0x1df0] sm:$0xff]
        %v1251 = vld [vmem:[#allocation7 + $0x1df8] sm:$0xff]
        %v1252 = vld [vmem:[#allocation7 + $0x1e00] sm:$0xff]
        %v1253 = vld [vmem:[#allocation7 + $0x1e08] sm:$0xff]
        %v1254 = vld [vmem:[#allocation7 + $0x1e10] sm:$0xff]
        %v1255 = vld [vmem:[#allocation7 + $0x1e18] sm:$0xff]
        %v1256 = vld [vmem:[#allocation7 + $0x1e20] sm:$0xff]
        %v1257 = vld [vmem:[#allocation7 + $0x1e28] sm:$0xff]
        %v1258 = vld [vmem:[#allocation7 + $0x1e30] sm:$0xff]
        %v1259 = vld [vmem:[#allocation7 + $0x1e38] sm:$0xff]
        %v1260 = vld [vmem:[#allocation7 + $0x1e40] sm:$0xff]
        %v1261 = vld [vmem:[#allocation7 + $0x1e48] sm:$0xff]
        %v1262 = vld [vmem:[#allocation7 + $0x1e50] sm:$0xff]
        %v1263 = vld [vmem:[#allocation7 + $0x1e58] sm:$0xff]
        %v1264 = vld [vmem:[#allocation7 + $0x1e60] sm:$0xff]
        %v1265 = vld [vmem:[#allocation7 + $0x1e68] sm:$0xff]
        %v1266 = vld [vmem:[#allocation7 + $0x1e70] sm:$0xff]
        %v1267 = vld [vmem:[#allocation7 + $0x1e78] sm:$0xff]
        %v1268 = vld [vmem:[#allocation7 + $0x1e80] sm:$0xff]
        %v1269 = vld [vmem:[#allocation7 + $0x1e88] sm:$0xff]
        %v1270 = vld [vmem:[#allocation7 + $0x1e90] sm:$0xff]
        %v1271 = vld [vmem:[#allocation7 + $0x1e98] sm:$0xff]
        %v1272 = vld [vmem:[#allocation7 + $0x1ea0] sm:$0xff]
        %v1273 = vld [vmem:[#allocation7 + $0x1ea8] sm:$0xff]
        %v1274 = vld [vmem:[#allocation7 + $0x1eb0] sm:$0xff]
        %v1275 = vld [vmem:[#allocation7 + $0x1eb8] sm:$0xff]
        %v1276 = vld [vmem:[#allocation7 + $0x1ec0] sm:$0xff]
        %v1277 = vld [vmem:[#allocation7 + $0x1ec8] sm:$0xff]
        %v1278 = vld [vmem:[#allocation7 + $0x1ed0] sm:$0xff]
        %v1279 = vld [vmem:[#allocation7 + $0x1ed8] sm:$0xff]
        %v1280 = vld [vmem:[#allocation7 + $0x1ee0] sm:$0xff]
        %v1281 = vld [vmem:[#allocation7 + $0x1ee8] sm:$0xff]
        %v1282 = vld [vmem:[#allocation7 + $0x1ef0] sm:$0xff]
        %v1283 = vld [vmem:[#allocation7 + $0x1ef8] sm:$0xff]
        %v1284 = vld [vmem:[#allocation7 + $0x1f00] sm:$0xff]
        %v1285 = vld [vmem:[#allocation7 + $0x1f08] sm:$0xff]
        %v1286 = vld [vmem:[#allocation7 + $0x1f10] sm:$0xff]
        %v1287 = vld [vmem:[#allocation7 + $0x1f18] sm:$0xff]
        %v1288 = vld [vmem:[#allocation7 + $0x1f20] sm:$0xff]
        %v1289 = vld [vmem:[#allocation7 + $0x1f28] sm:$0xff]
        %v1290 = vld [vmem:[#allocation7 + $0x1f30] sm:$0xff]
        %v1291 = vld [vmem:[#allocation7 + $0x1f38] sm:$0xff]
        %v1292 = vld [vmem:[#allocation7 + $0x1f40] sm:$0xff]
        %v1293 = vld [vmem:[#allocation7 + $0x1f48] sm:$0xff]
        %v1294 = vld [vmem:[#allocation7 + $0x1f50] sm:$0xff]
        %v1295 = vld [vmem:[#allocation7 + $0x1f58] sm:$0xff]
        %v1296 = vld [vmem:[#allocation7 + $0x1f60] sm:$0xff]
        %v1297 = vld [vmem:[#allocation7 + $0x1f68] sm:$0xff]
        %v1298 = vld [vmem:[#allocation7 + $0x1f70] sm:$0xff]
        %v1299 = vld [vmem:[#allocation7 + $0x1f78] sm:$0xff]
        %v1300 = vld [vmem:[#allocation7 + $0x1f80] sm:$0xff]
        %v1301 = vld [vmem:[#allocation7 + $0x1f88] sm:$0xff]
        %v1302 = vld [vmem:[#allocation7 + $0x1f90] sm:$0xff]
        %v1303 = vld [vmem:[#allocation7 + $0x1f98] sm:$0xff]
        %v1304 = vld [vmem:[#allocation7 + $0x1fa0] sm:$0xff]
        %v1305 = vld [vmem:[#allocation7 + $0x1fa8] sm:$0xff]
        %v1306 = vld [vmem:[#allocation7 + $0x1fb0] sm:$0xff]
        %v1307 = vld [vmem:[#allocation7 + $0x1fb8] sm:$0xff]
        %v1308 = vld [vmem:[#allocation7 + $0x1fc0] sm:$0xff]
        %v1309 = vld [vmem:[#allocation7 + $0x1fc8] sm:$0xff]
        %v1310 = vld [vmem:[#allocation7 + $0x1fd0] sm:$0xff]
        %v1311 = vld [vmem:[#allocation7 + $0x1fd8] sm:$0xff]
        %v1312 = vld [vmem:[#allocation7 + $0x1fe0] sm:$0xff]
        %v1313 = vld [vmem:[#allocation7 + $0x1fe8] sm:$0xff]
        %v1314 = vld [vmem:[#allocation7 + $0x1ff0] sm:$0xff]
        %v1315 = vld [vmem:[#allocation7 + $0x1ff8] sm:$0xff]
        %1316 = vmatpush.msra.mxu0 %v772
        %1317 = vmatpush.msra.mxu0 %v740
        %1318 = vmatpush.msra.mxu0 %v708
        %1319 = vmatpush.msra.mxu0 %v676
        %1320 = vmatpush.msra.mxu0 %v644
        %1321 = vmatpush.msra.mxu0 %v612
        %1322 = vmatpush.msra.mxu0 %v580
        %1323 = vmatpush.msra.mxu0 %v548
        %1324 = vmatpush.msra.mxu0 %v516
        %1325 = vmatpush.msra.mxu0 %v484
        %1326 = vmatpush.msra.mxu0 %v452
        %1327 = vmatpush.msra.mxu0 %v420
        %1328 = vmatpush.msra.mxu0 %v388
        %1329 = vmatpush.msra.mxu0 %v356
        %1330 = vmatpush.msra.mxu0 %v324
        %1331 = vmatpush.msra.mxu0 %v292
        %1332 = vmatmul.f32.gmra.mxu0 %v270
        %v1333 = vpop.f32.mrf.mxu0
        %v1334 = vadd.f32 0.0, %v1333
        %1335 = vdwg.mxu0
        %1336 = vmatpush.msra.mxu0 %v1284
        %1337 = vmatpush.msra.mxu0 %v1252
        %1338 = vmatpush.msra.mxu0 %v1220
        %1339 = vmatpush.msra.mxu0 %v1188
        %1340 = vmatpush.msra.mxu0 %v1156
        %1341 = vmatpush.msra.mxu0 %v1124
        %1342 = vmatpush.msra.mxu0 %v1092
        %1343 = vmatpush.msra.mxu0 %v1060
        %1344 = vmatpush.msra.mxu0 %v1028
        %1345 = vmatpush.msra.mxu0 %v996
        %1346 = vmatpush.msra.mxu0 %v964
        %1347 = vmatpush.msra.mxu0 %v932
        %1348 = vmatpush.msra.mxu0 %v900
        %1349 = vmatpush.msra.mxu0 %v868
        %1350 = vmatpush.msra.mxu0 %v836
        %1351 = vmatpush.msra.mxu0 %v804
        %1352 = vmatmul.f32.gmra.mxu0 %v290
        %v1353 = vpop.f32.mrf.mxu0
        %v1354 = vadd.f32 %v1334, %v1353
        %1355 = vdwg.mxu0
        %1356 = vmatpush.msra.mxu0 %v773
        %1357 = vmatpush.msra.mxu0 %v741
        %1358 = vmatpush.msra.mxu0 %v709
        %1359 = vmatpush.msra.mxu0 %v677
        %1360 = vmatpush.msra.mxu0 %v645
        %1361 = vmatpush.msra.mxu0 %v613
        %1362 = vmatpush.msra.mxu0 %v581
        %1363 = vmatpush.msra.mxu0 %v549
        %1364 = vmatpush.msra.mxu0 %v517
        %1365 = vmatpush.msra.mxu0 %v485
        %1366 = vmatpush.msra.mxu0 %v453
        %1367 = vmatpush.msra.mxu0 %v421
        %1368 = vmatpush.msra.mxu0 %v389
        %1369 = vmatpush.msra.mxu0 %v357
        %1370 = vmatpush.msra.mxu0 %v325
        %1371 = vmatpush.msra.mxu0 %v293
        %1372 = vmatmul.f32.gmra.mxu0 %v270
        %v1373 = vpop.f32.mrf.mxu0
        %v1374 = vadd.f32 0.0, %v1373
        %1375 = vdwg.mxu0
        %1376 = vmatpush.msra.mxu0 %v1285
        %1377 = vmatpush.msra.mxu0 %v1253
        %1378 = vmatpush.msra.mxu0 %v1221
        %1379 = vmatpush.msra.mxu0 %v1189
        %1380 = vmatpush.msra.mxu0 %v1157
        %1381 = vmatpush.msra.mxu0 %v1125
        %1382 = vmatpush.msra.mxu0 %v1093
        %1383 = vmatpush.msra.mxu0 %v1061
        %1384 = vmatpush.msra.mxu0 %v1029
        %1385 = vmatpush.msra.mxu0 %v997
        %1386 = vmatpush.msra.mxu0 %v965
        %1387 = vmatpush.msra.mxu0 %v933
        %1388 = vmatpush.msra.mxu0 %v901
        %1389 = vmatpush.msra.mxu0 %v869
        %1390 = vmatpush.msra.mxu0 %v837
        %1391 = vmatpush.msra.mxu0 %v805
        %1392 = vmatmul.f32.gmra.mxu0 %v290
        %v1393 = vpop.f32.mrf.mxu0
        %v1394 = vadd.f32 %v1374, %v1393
        %1395 = vdwg.mxu0
        %1396 = vmatpush.msra.mxu0 %v774
        %1397 = vmatpush.msra.mxu0 %v742
        %1398 = vmatpush.msra.mxu0 %v710
        %1399 = vmatpush.msra.mxu0 %v678
        %1400 = vmatpush.msra.mxu0 %v646
        %1401 = vmatpush.msra.mxu0 %v614
        %1402 = vmatpush.msra.mxu0 %v582
        %1403 = vmatpush.msra.mxu0 %v550
        %1404 = vmatpush.msra.mxu0 %v518
        %1405 = vmatpush.msra.mxu0 %v486
        %1406 = vmatpush.msra.mxu0 %v454
        %1407 = vmatpush.msra.mxu0 %v422
        %1408 = vmatpush.msra.mxu0 %v390
        %1409 = vmatpush.msra.mxu0 %v358
        %1410 = vmatpush.msra.mxu0 %v326
        %1411 = vmatpush.msra.mxu0 %v294
        %1412 = vmatmul.f32.gmra.mxu0 %v270
        %v1413 = vpop.f32.mrf.mxu0
        %v1414 = vadd.f32 0.0, %v1413
        %1415 = vdwg.mxu0
        %1416 = vmatpush.msra.mxu0 %v1286
        %1417 = vmatpush.msra.mxu0 %v1254
        %1418 = vmatpush.msra.mxu0 %v1222
        %1419 = vmatpush.msra.mxu0 %v1190
        %1420 = vmatpush.msra.mxu0 %v1158
        %1421 = vmatpush.msra.mxu0 %v1126
        %1422 = vmatpush.msra.mxu0 %v1094
        %1423 = vmatpush.msra.mxu0 %v1062
        %1424 = vmatpush.msra.mxu0 %v1030
        %1425 = vmatpush.msra.mxu0 %v998
        %1426 = vmatpush.msra.mxu0 %v966
        %1427 = vmatpush.msra.mxu0 %v934
        %1428 = vmatpush.msra.mxu0 %v902
        %1429 = vmatpush.msra.mxu0 %v870
        %1430 = vmatpush.msra.mxu0 %v838
        %1431 = vmatpush.msra.mxu0 %v806
        %1432 = vmatmul.f32.gmra.mxu0 %v290
        %v1433 = vpop.f32.mrf.mxu0
        %v1434 = vadd.f32 %v1414, %v1433
        %1435 = vdwg.mxu0
        %1436 = vmatpush.msra.mxu0 %v775
        %1437 = vmatpush.msra.mxu0 %v743
        %1438 = vmatpush.msra.mxu0 %v711
        %1439 = vmatpush.msra.mxu0 %v679
        %1440 = vmatpush.msra.mxu0 %v647
        %1441 = vmatpush.msra.mxu0 %v615
        %1442 = vmatpush.msra.mxu0 %v583
        %1443 = vmatpush.msra.mxu0 %v551
        %1444 = vmatpush.msra.mxu0 %v519
        %1445 = vmatpush.msra.mxu0 %v487
        %1446 = vmatpush.msra.mxu0 %v455
        %1447 = vmatpush.msra.mxu0 %v423
        %1448 = vmatpush.msra.mxu0 %v391
        %1449 = vmatpush.msra.mxu0 %v359
        %1450 = vmatpush.msra.mxu0 %v327
        %1451 = vmatpush.msra.mxu0 %v295
        %1452 = vmatmul.f32.gmra.mxu0 %v270
        %v1453 = vpop.f32.mrf.mxu0
        %v1454 = vadd.f32 0.0, %v1453
        %1455 = vdwg.mxu0
        %1456 = vmatpush.msra.mxu0 %v1287
        %1457 = vmatpush.msra.mxu0 %v1255
        %1458 = vmatpush.msra.mxu0 %v1223
        %1459 = vmatpush.msra.mxu0 %v1191
        %1460 = vmatpush.msra.mxu0 %v1159
        %1461 = vmatpush.msra.mxu0 %v1127
        %1462 = vmatpush.msra.mxu0 %v1095
        %1463 = vmatpush.msra.mxu0 %v1063
        %1464 = vmatpush.msra.mxu0 %v1031
        %1465 = vmatpush.msra.mxu0 %v999
        %1466 = vmatpush.msra.mxu0 %v967
        %1467 = vmatpush.msra.mxu0 %v935
        %1468 = vmatpush.msra.mxu0 %v903
        %1469 = vmatpush.msra.mxu0 %v871
        %1470 = vmatpush.msra.mxu0 %v839
        %1471 = vmatpush.msra.mxu0 %v807
        %1472 = vmatmul.f32.gmra.mxu0 %v290
        %v1473 = vpop.f32.mrf.mxu0
        %v1474 = vadd.f32 %v1454, %v1473
        %1475 = vdwg.mxu0
        %1476 = vmatpush.msra.mxu0 %v776
        %1477 = vmatpush.msra.mxu0 %v744
        %1478 = vmatpush.msra.mxu0 %v712
        %1479 = vmatpush.msra.mxu0 %v680
        %1480 = vmatpush.msra.mxu0 %v648
        %1481 = vmatpush.msra.mxu0 %v616
        %1482 = vmatpush.msra.mxu0 %v584
        %1483 = vmatpush.msra.mxu0 %v552
        %1484 = vmatpush.msra.mxu0 %v520
        %1485 = vmatpush.msra.mxu0 %v488
        %1486 = vmatpush.msra.mxu0 %v456
        %1487 = vmatpush.msra.mxu0 %v424
        %1488 = vmatpush.msra.mxu0 %v392
        %1489 = vmatpush.msra.mxu0 %v360
        %1490 = vmatpush.msra.mxu0 %v328
        %1491 = vmatpush.msra.mxu0 %v296
        %1492 = vmatmul.f32.gmra.mxu0 %v270
        %v1493 = vpop.f32.mrf.mxu0
        %v1494 = vadd.f32 0.0, %v1493
        %1495 = vdwg.mxu0
        %1496 = vmatpush.msra.mxu0 %v1288
        %1497 = vmatpush.msra.mxu0 %v1256
        %1498 = vmatpush.msra.mxu0 %v1224
        %1499 = vmatpush.msra.mxu0 %v1192
        %1500 = vmatpush.msra.mxu0 %v1160
        %1501 = vmatpush.msra.mxu0 %v1128
        %1502 = vmatpush.msra.mxu0 %v1096
        %1503 = vmatpush.msra.mxu0 %v1064
        %1504 = vmatpush.msra.mxu0 %v1032
        %1505 = vmatpush.msra.mxu0 %v1000
        %1506 = vmatpush.msra.mxu0 %v968
        %1507 = vmatpush.msra.mxu0 %v936
        %1508 = vmatpush.msra.mxu0 %v904
        %1509 = vmatpush.msra.mxu0 %v872
        %1510 = vmatpush.msra.mxu0 %v840
        %1511 = vmatpush.msra.mxu0 %v808
        %1512 = vmatmul.f32.gmra.mxu0 %v290
        %v1513 = vpop.f32.mrf.mxu0
        %v1514 = vadd.f32 %v1494, %v1513
        %1515 = vdwg.mxu0
        %1516 = vmatpush.msra.mxu0 %v777
        %1517 = vmatpush.msra.mxu0 %v745
        %1518 = vmatpush.msra.mxu0 %v713
        %1519 = vmatpush.msra.mxu0 %v681
        %1520 = vmatpush.msra.mxu0 %v649
        %1521 = vmatpush.msra.mxu0 %v617
        %1522 = vmatpush.msra.mxu0 %v585
        %1523 = vmatpush.msra.mxu0 %v553
        %1524 = vmatpush.msra.mxu0 %v521
        %1525 = vmatpush.msra.mxu0 %v489
        %1526 = vmatpush.msra.mxu0 %v457
        %1527 = vmatpush.msra.mxu0 %v425
        %1528 = vmatpush.msra.mxu0 %v393
        %1529 = vmatpush.msra.mxu0 %v361
        %1530 = vmatpush.msra.mxu0 %v329
        %1531 = vmatpush.msra.mxu0 %v297
        %1532 = vmatmul.f32.gmra.mxu0 %v270
        %v1533 = vpop.f32.mrf.mxu0
        %v1534 = vadd.f32 0.0, %v1533
        %1535 = vdwg.mxu0
        %1536 = vmatpush.msra.mxu0 %v1289
        %1537 = vmatpush.msra.mxu0 %v1257
        %1538 = vmatpush.msra.mxu0 %v1225
        %1539 = vmatpush.msra.mxu0 %v1193
        %1540 = vmatpush.msra.mxu0 %v1161
        %1541 = vmatpush.msra.mxu0 %v1129
        %1542 = vmatpush.msra.mxu0 %v1097
        %1543 = vmatpush.msra.mxu0 %v1065
        %1544 = vmatpush.msra.mxu0 %v1033
        %1545 = vmatpush.msra.mxu0 %v1001
        %1546 = vmatpush.msra.mxu0 %v969
        %1547 = vmatpush.msra.mxu0 %v937
        %1548 = vmatpush.msra.mxu0 %v905
        %1549 = vmatpush.msra.mxu0 %v873
        %1550 = vmatpush.msra.mxu0 %v841
        %1551 = vmatpush.msra.mxu0 %v809
        %1552 = vmatmul.f32.gmra.mxu0 %v290
        %v1553 = vpop.f32.mrf.mxu0
        %v1554 = vadd.f32 %v1534, %v1553
        %1555 = vdwg.mxu0
        %1556 = vmatpush.msra.mxu0 %v778
        %1557 = vmatpush.msra.mxu0 %v746
        %1558 = vmatpush.msra.mxu0 %v714
        %1559 = vmatpush.msra.mxu0 %v682
        %1560 = vmatpush.msra.mxu0 %v650
        %1561 = vmatpush.msra.mxu0 %v618
        %1562 = vmatpush.msra.mxu0 %v586
        %1563 = vmatpush.msra.mxu0 %v554
        %1564 = vmatpush.msra.mxu0 %v522
        %1565 = vmatpush.msra.mxu0 %v490
        %1566 = vmatpush.msra.mxu0 %v458
        %1567 = vmatpush.msra.mxu0 %v426
        %1568 = vmatpush.msra.mxu0 %v394
        %1569 = vmatpush.msra.mxu0 %v362
        %1570 = vmatpush.msra.mxu0 %v330
        %1571 = vmatpush.msra.mxu0 %v298
        %1572 = vmatmul.f32.gmra.mxu0 %v270
        %v1573 = vpop.f32.mrf.mxu0
        %v1574 = vadd.f32 0.0, %v1573
        %1575 = vdwg.mxu0
        %1576 = vmatpush.msra.mxu0 %v1290
        %1577 = vmatpush.msra.mxu0 %v1258
        %1578 = vmatpush.msra.mxu0 %v1226
        %1579 = vmatpush.msra.mxu0 %v1194
        %1580 = vmatpush.msra.mxu0 %v1162
        %1581 = vmatpush.msra.mxu0 %v1130
        %1582 = vmatpush.msra.mxu0 %v1098
        %1583 = vmatpush.msra.mxu0 %v1066
        %1584 = vmatpush.msra.mxu0 %v1034
        %1585 = vmatpush.msra.mxu0 %v1002
        %1586 = vmatpush.msra.mxu0 %v970
        %1587 = vmatpush.msra.mxu0 %v938
        %1588 = vmatpush.msra.mxu0 %v906
        %1589 = vmatpush.msra.mxu0 %v874
        %1590 = vmatpush.msra.mxu0 %v842
        %1591 = vmatpush.msra.mxu0 %v810
        %1592 = vmatmul.f32.gmra.mxu0 %v290
        %v1593 = vpop.f32.mrf.mxu0
        %v1594 = vadd.f32 %v1574, %v1593
        %1595 = vdwg.mxu0
        %1596 = vmatpush.msra.mxu0 %v779
        %1597 = vmatpush.msra.mxu0 %v747
        %1598 = vmatpush.msra.mxu0 %v715
        %1599 = vmatpush.msra.mxu0 %v683
        %1600 = vmatpush.msra.mxu0 %v651
        %1601 = vmatpush.msra.mxu0 %v619
        %1602 = vmatpush.msra.mxu0 %v587
        %1603 = vmatpush.msra.mxu0 %v555
        %1604 = vmatpush.msra.mxu0 %v523
        %1605 = vmatpush.msra.mxu0 %v491
        %1606 = vmatpush.msra.mxu0 %v459
        %1607 = vmatpush.msra.mxu0 %v427
        %1608 = vmatpush.msra.mxu0 %v395
        %1609 = vmatpush.msra.mxu0 %v363
        %1610 = vmatpush.msra.mxu0 %v331
        %1611 = vmatpush.msra.mxu0 %v299
        %1612 = vmatmul.f32.gmra.mxu0 %v270
        %v1613 = vpop.f32.mrf.mxu0
        %v1614 = vadd.f32 0.0, %v1613
        %1615 = vdwg.mxu0
        %1616 = vmatpush.msra.mxu0 %v1291
        %1617 = vmatpush.msra.mxu0 %v1259
        %1618 = vmatpush.msra.mxu0 %v1227
        %1619 = vmatpush.msra.mxu0 %v1195
        %1620 = vmatpush.msra.mxu0 %v1163
        %1621 = vmatpush.msra.mxu0 %v1131
        %1622 = vmatpush.msra.mxu0 %v1099
        %1623 = vmatpush.msra.mxu0 %v1067
        %1624 = vmatpush.msra.mxu0 %v1035
        %1625 = vmatpush.msra.mxu0 %v1003
        %1626 = vmatpush.msra.mxu0 %v971
        %1627 = vmatpush.msra.mxu0 %v939
        %1628 = vmatpush.msra.mxu0 %v907
        %1629 = vmatpush.msra.mxu0 %v875
        %1630 = vmatpush.msra.mxu0 %v843
        %1631 = vmatpush.msra.mxu0 %v811
        %1632 = vmatmul.f32.gmra.mxu0 %v290
        %v1633 = vpop.f32.mrf.mxu0
        %v1634 = vadd.f32 %v1614, %v1633
        %1635 = vdwg.mxu0
        %1636 = vmatpush.msra.mxu0 %v780
        %1637 = vmatpush.msra.mxu0 %v748
        %1638 = vmatpush.msra.mxu0 %v716
        %1639 = vmatpush.msra.mxu0 %v684
        %1640 = vmatpush.msra.mxu0 %v652
        %1641 = vmatpush.msra.mxu0 %v620
        %1642 = vmatpush.msra.mxu0 %v588
        %1643 = vmatpush.msra.mxu0 %v556
        %1644 = vmatpush.msra.mxu0 %v524
        %1645 = vmatpush.msra.mxu0 %v492
        %1646 = vmatpush.msra.mxu0 %v460
        %1647 = vmatpush.msra.mxu0 %v428
        %1648 = vmatpush.msra.mxu0 %v396
        %1649 = vmatpush.msra.mxu0 %v364
        %1650 = vmatpush.msra.mxu0 %v332
        %1651 = vmatpush.msra.mxu0 %v300
        %1652 = vmatmul.f32.gmra.mxu0 %v270
        %v1653 = vpop.f32.mrf.mxu0
        %v1654 = vadd.f32 0.0, %v1653
        %1655 = vdwg.mxu0
        %1656 = vmatpush.msra.mxu0 %v1292
        %1657 = vmatpush.msra.mxu0 %v1260
        %1658 = vmatpush.msra.mxu0 %v1228
        %1659 = vmatpush.msra.mxu0 %v1196
        %1660 = vmatpush.msra.mxu0 %v1164
        %1661 = vmatpush.msra.mxu0 %v1132
        %1662 = vmatpush.msra.mxu0 %v1100
        %1663 = vmatpush.msra.mxu0 %v1068
        %1664 = vmatpush.msra.mxu0 %v1036
        %1665 = vmatpush.msra.mxu0 %v1004
        %1666 = vmatpush.msra.mxu0 %v972
        %1667 = vmatpush.msra.mxu0 %v940
        %1668 = vmatpush.msra.mxu0 %v908
        %1669 = vmatpush.msra.mxu0 %v876
        %1670 = vmatpush.msra.mxu0 %v844
        %1671 = vmatpush.msra.mxu0 %v812
        %1672 = vmatmul.f32.gmra.mxu0 %v290
        %v1673 = vpop.f32.mrf.mxu0
        %v1674 = vadd.f32 %v1654, %v1673
        %1675 = vdwg.mxu0
        %1676 = vmatpush.msra.mxu0 %v781
        %1677 = vmatpush.msra.mxu0 %v749
        %1678 = vmatpush.msra.mxu0 %v717
        %1679 = vmatpush.msra.mxu0 %v685
        %1680 = vmatpush.msra.mxu0 %v653
        %1681 = vmatpush.msra.mxu0 %v621
        %1682 = vmatpush.msra.mxu0 %v589
        %1683 = vmatpush.msra.mxu0 %v557
        %1684 = vmatpush.msra.mxu0 %v525
        %1685 = vmatpush.msra.mxu0 %v493
        %1686 = vmatpush.msra.mxu0 %v461
        %1687 = vmatpush.msra.mxu0 %v429
        %1688 = vmatpush.msra.mxu0 %v397
        %1689 = vmatpush.msra.mxu0 %v365
        %1690 = vmatpush.msra.mxu0 %v333
        %1691 = vmatpush.msra.mxu0 %v301
        %1692 = vmatmul.f32.gmra.mxu0 %v270
        %v1693 = vpop.f32.mrf.mxu0
        %v1694 = vadd.f32 0.0, %v1693
        %1695 = vdwg.mxu0
        %1696 = vmatpush.msra.mxu0 %v1293
        %1697 = vmatpush.msra.mxu0 %v1261
        %1698 = vmatpush.msra.mxu0 %v1229
        %1699 = vmatpush.msra.mxu0 %v1197
        %1700 = vmatpush.msra.mxu0 %v1165
        %1701 = vmatpush.msra.mxu0 %v1133
        %1702 = vmatpush.msra.mxu0 %v1101
        %1703 = vmatpush.msra.mxu0 %v1069
        %1704 = vmatpush.msra.mxu0 %v1037
        %1705 = vmatpush.msra.mxu0 %v1005
        %1706 = vmatpush.msra.mxu0 %v973
        %1707 = vmatpush.msra.mxu0 %v941
        %1708 = vmatpush.msra.mxu0 %v909
        %1709 = vmatpush.msra.mxu0 %v877
        %1710 = vmatpush.msra.mxu0 %v845
        %1711 = vmatpush.msra.mxu0 %v813
        %1712 = vmatmul.f32.gmra.mxu0 %v290
        %v1713 = vpop.f32.mrf.mxu0
        %v1714 = vadd.f32 %v1694, %v1713
        %1715 = vdwg.mxu0
        %1716 = vmatpush.msra.mxu0 %v782
        %1717 = vmatpush.msra.mxu0 %v750
        %1718 = vmatpush.msra.mxu0 %v718
        %1719 = vmatpush.msra.mxu0 %v686
        %1720 = vmatpush.msra.mxu0 %v654
        %1721 = vmatpush.msra.mxu0 %v622
        %1722 = vmatpush.msra.mxu0 %v590
        %1723 = vmatpush.msra.mxu0 %v558
        %1724 = vmatpush.msra.mxu0 %v526
        %1725 = vmatpush.msra.mxu0 %v494
        %1726 = vmatpush.msra.mxu0 %v462
        %1727 = vmatpush.msra.mxu0 %v430
        %1728 = vmatpush.msra.mxu0 %v398
        %1729 = vmatpush.msra.mxu0 %v366
        %1730 = vmatpush.msra.mxu0 %v334
        %1731 = vmatpush.msra.mxu0 %v302
        %1732 = vmatmul.f32.gmra.mxu0 %v270
        %v1733 = vpop.f32.mrf.mxu0
        %v1734 = vadd.f32 0.0, %v1733
        %1735 = vdwg.mxu0
        %1736 = vmatpush.msra.mxu0 %v1294
        %1737 = vmatpush.msra.mxu0 %v1262
        %1738 = vmatpush.msra.mxu0 %v1230
        %1739 = vmatpush.msra.mxu0 %v1198
        %1740 = vmatpush.msra.mxu0 %v1166
        %1741 = vmatpush.msra.mxu0 %v1134
        %1742 = vmatpush.msra.mxu0 %v1102
        %1743 = vmatpush.msra.mxu0 %v1070
        %1744 = vmatpush.msra.mxu0 %v1038
        %1745 = vmatpush.msra.mxu0 %v1006
        %1746 = vmatpush.msra.mxu0 %v974
        %1747 = vmatpush.msra.mxu0 %v942
        %1748 = vmatpush.msra.mxu0 %v910
        %1749 = vmatpush.msra.mxu0 %v878
        %1750 = vmatpush.msra.mxu0 %v846
        %1751 = vmatpush.msra.mxu0 %v814
        %1752 = vmatmul.f32.gmra.mxu0 %v290
        %v1753 = vpop.f32.mrf.mxu0
        %v1754 = vadd.f32 %v1734, %v1753
        %1755 = vdwg.mxu0
        %1756 = vmatpush.msra.mxu0 %v783
        %1757 = vmatpush.msra.mxu0 %v751
        %1758 = vmatpush.msra.mxu0 %v719
        %1759 = vmatpush.msra.mxu0 %v687
        %1760 = vmatpush.msra.mxu0 %v655
        %1761 = vmatpush.msra.mxu0 %v623
        %1762 = vmatpush.msra.mxu0 %v591
        %1763 = vmatpush.msra.mxu0 %v559
        %1764 = vmatpush.msra.mxu0 %v527
        %1765 = vmatpush.msra.mxu0 %v495
        %1766 = vmatpush.msra.mxu0 %v463
        %1767 = vmatpush.msra.mxu0 %v431
        %1768 = vmatpush.msra.mxu0 %v399
        %1769 = vmatpush.msra.mxu0 %v367
        %1770 = vmatpush.msra.mxu0 %v335
        %1771 = vmatpush.msra.mxu0 %v303
        %1772 = vmatmul.f32.gmra.mxu0 %v270
        %v1773 = vpop.f32.mrf.mxu0
        %v1774 = vadd.f32 0.0, %v1773
        %1775 = vdwg.mxu0
        %1776 = vmatpush.msra.mxu0 %v1295
        %1777 = vmatpush.msra.mxu0 %v1263
        %1778 = vmatpush.msra.mxu0 %v1231
        %1779 = vmatpush.msra.mxu0 %v1199
        %1780 = vmatpush.msra.mxu0 %v1167
        %1781 = vmatpush.msra.mxu0 %v1135
        %1782 = vmatpush.msra.mxu0 %v1103
        %1783 = vmatpush.msra.mxu0 %v1071
        %1784 = vmatpush.msra.mxu0 %v1039
        %1785 = vmatpush.msra.mxu0 %v1007
        %1786 = vmatpush.msra.mxu0 %v975
        %1787 = vmatpush.msra.mxu0 %v943
        %1788 = vmatpush.msra.mxu0 %v911
        %1789 = vmatpush.msra.mxu0 %v879
        %1790 = vmatpush.msra.mxu0 %v847
        %1791 = vmatpush.msra.mxu0 %v815
        %1792 = vmatmul.f32.gmra.mxu0 %v290
        %v1793 = vpop.f32.mrf.mxu0
        %v1794 = vadd.f32 %v1774, %v1793
        %1795 = vdwg.mxu0
        %1796 = vmatpush.msra.mxu0 %v784
        %1797 = vmatpush.msra.mxu0 %v752
        %1798 = vmatpush.msra.mxu0 %v720
        %1799 = vmatpush.msra.mxu0 %v688
        %1800 = vmatpush.msra.mxu0 %v656
        %1801 = vmatpush.msra.mxu0 %v624
        %1802 = vmatpush.msra.mxu0 %v592
        %1803 = vmatpush.msra.mxu0 %v560
        %1804 = vmatpush.msra.mxu0 %v528
        %1805 = vmatpush.msra.mxu0 %v496
        %1806 = vmatpush.msra.mxu0 %v464
        %1807 = vmatpush.msra.mxu0 %v432
        %1808 = vmatpush.msra.mxu0 %v400
        %1809 = vmatpush.msra.mxu0 %v368
        %1810 = vmatpush.msra.mxu0 %v336
        %1811 = vmatpush.msra.mxu0 %v304
        %1812 = vmatmul.f32.gmra.mxu0 %v270
        %v1813 = vpop.f32.mrf.mxu0
        %v1814 = vadd.f32 0.0, %v1813
        %1815 = vdwg.mxu0
        %1816 = vmatpush.msra.mxu0 %v1296
        %1817 = vmatpush.msra.mxu0 %v1264
        %1818 = vmatpush.msra.mxu0 %v1232
        %1819 = vmatpush.msra.mxu0 %v1200
        %1820 = vmatpush.msra.mxu0 %v1168
        %1821 = vmatpush.msra.mxu0 %v1136
        %1822 = vmatpush.msra.mxu0 %v1104
        %1823 = vmatpush.msra.mxu0 %v1072
        %1824 = vmatpush.msra.mxu0 %v1040
        %1825 = vmatpush.msra.mxu0 %v1008
        %1826 = vmatpush.msra.mxu0 %v976
        %1827 = vmatpush.msra.mxu0 %v944
        %1828 = vmatpush.msra.mxu0 %v912
        %1829 = vmatpush.msra.mxu0 %v880
        %1830 = vmatpush.msra.mxu0 %v848
        %1831 = vmatpush.msra.mxu0 %v816
        %1832 = vmatmul.f32.gmra.mxu0 %v290
        %v1833 = vpop.f32.mrf.mxu0
        %v1834 = vadd.f32 %v1814, %v1833
        %1835 = vdwg.mxu0
        %1836 = vmatpush.msra.mxu0 %v785
        %1837 = vmatpush.msra.mxu0 %v753
        %1838 = vmatpush.msra.mxu0 %v721
        %1839 = vmatpush.msra.mxu0 %v689
        %1840 = vmatpush.msra.mxu0 %v657
        %1841 = vmatpush.msra.mxu0 %v625
        %1842 = vmatpush.msra.mxu0 %v593
        %1843 = vmatpush.msra.mxu0 %v561
        %1844 = vmatpush.msra.mxu0 %v529
        %1845 = vmatpush.msra.mxu0 %v497
        %1846 = vmatpush.msra.mxu0 %v465
        %1847 = vmatpush.msra.mxu0 %v433
        %1848 = vmatpush.msra.mxu0 %v401
        %1849 = vmatpush.msra.mxu0 %v369
        %1850 = vmatpush.msra.mxu0 %v337
        %1851 = vmatpush.msra.mxu0 %v305
        %1852 = vmatmul.f32.gmra.mxu0 %v270
        %v1853 = vpop.f32.mrf.mxu0
        %v1854 = vadd.f32 0.0, %v1853
        %1855 = vdwg.mxu0
        %1856 = vmatpush.msra.mxu0 %v1297
        %1857 = vmatpush.msra.mxu0 %v1265
        %1858 = vmatpush.msra.mxu0 %v1233
        %1859 = vmatpush.msra.mxu0 %v1201
        %1860 = vmatpush.msra.mxu0 %v1169
        %1861 = vmatpush.msra.mxu0 %v1137
        %1862 = vmatpush.msra.mxu0 %v1105
        %1863 = vmatpush.msra.mxu0 %v1073
        %1864 = vmatpush.msra.mxu0 %v1041
        %1865 = vmatpush.msra.mxu0 %v1009
        %1866 = vmatpush.msra.mxu0 %v977
        %1867 = vmatpush.msra.mxu0 %v945
        %1868 = vmatpush.msra.mxu0 %v913
        %1869 = vmatpush.msra.mxu0 %v881
        %1870 = vmatpush.msra.mxu0 %v849
        %1871 = vmatpush.msra.mxu0 %v817
        %1872 = vmatmul.f32.gmra.mxu0 %v290
        %v1873 = vpop.f32.mrf.mxu0
        %v1874 = vadd.f32 %v1854, %v1873
        %1875 = vdwg.mxu0
        %1876 = vmatpush.msra.mxu0 %v786
        %1877 = vmatpush.msra.mxu0 %v754
        %1878 = vmatpush.msra.mxu0 %v722
        %1879 = vmatpush.msra.mxu0 %v690
        %1880 = vmatpush.msra.mxu0 %v658
        %1881 = vmatpush.msra.mxu0 %v626
        %1882 = vmatpush.msra.mxu0 %v594
        %1883 = vmatpush.msra.mxu0 %v562
        %1884 = vmatpush.msra.mxu0 %v530
        %1885 = vmatpush.msra.mxu0 %v498
        %1886 = vmatpush.msra.mxu0 %v466
        %1887 = vmatpush.msra.mxu0 %v434
        %1888 = vmatpush.msra.mxu0 %v402
        %1889 = vmatpush.msra.mxu0 %v370
        %1890 = vmatpush.msra.mxu0 %v338
        %1891 = vmatpush.msra.mxu0 %v306
        %1892 = vmatmul.f32.gmra.mxu0 %v270
        %v1893 = vpop.f32.mrf.mxu0
        %v1894 = vadd.f32 0.0, %v1893
        %1895 = vdwg.mxu0
        %1896 = vmatpush.msra.mxu0 %v1298
        %1897 = vmatpush.msra.mxu0 %v1266
        %1898 = vmatpush.msra.mxu0 %v1234
        %1899 = vmatpush.msra.mxu0 %v1202
        %1900 = vmatpush.msra.mxu0 %v1170
        %1901 = vmatpush.msra.mxu0 %v1138
        %1902 = vmatpush.msra.mxu0 %v1106
        %1903 = vmatpush.msra.mxu0 %v1074
        %1904 = vmatpush.msra.mxu0 %v1042
        %1905 = vmatpush.msra.mxu0 %v1010
        %1906 = vmatpush.msra.mxu0 %v978
        %1907 = vmatpush.msra.mxu0 %v946
        %1908 = vmatpush.msra.mxu0 %v914
        %1909 = vmatpush.msra.mxu0 %v882
        %1910 = vmatpush.msra.mxu0 %v850
        %1911 = vmatpush.msra.mxu0 %v818
        %1912 = vmatmul.f32.gmra.mxu0 %v290
        %v1913 = vpop.f32.mrf.mxu0
        %v1914 = vadd.f32 %v1894, %v1913
        %1915 = vdwg.mxu0
        %1916 = vmatpush.msra.mxu0 %v787
        %1917 = vmatpush.msra.mxu0 %v755
        %1918 = vmatpush.msra.mxu0 %v723
        %1919 = vmatpush.msra.mxu0 %v691
        %1920 = vmatpush.msra.mxu0 %v659
        %1921 = vmatpush.msra.mxu0 %v627
        %1922 = vmatpush.msra.mxu0 %v595
        %1923 = vmatpush.msra.mxu0 %v563
        %1924 = vmatpush.msra.mxu0 %v531
        %1925 = vmatpush.msra.mxu0 %v499
        %1926 = vmatpush.msra.mxu0 %v467
        %1927 = vmatpush.msra.mxu0 %v435
        %1928 = vmatpush.msra.mxu0 %v403
        %1929 = vmatpush.msra.mxu0 %v371
        %1930 = vmatpush.msra.mxu0 %v339
        %1931 = vmatpush.msra.mxu0 %v307
        %1932 = vmatmul.f32.gmra.mxu0 %v270
        %v1933 = vpop.f32.mrf.mxu0
        %v1934 = vadd.f32 0.0, %v1933
        %1935 = vdwg.mxu0
        %1936 = vmatpush.msra.mxu0 %v1299
        %1937 = vmatpush.msra.mxu0 %v1267
        %1938 = vmatpush.msra.mxu0 %v1235
        %1939 = vmatpush.msra.mxu0 %v1203
        %1940 = vmatpush.msra.mxu0 %v1171
        %1941 = vmatpush.msra.mxu0 %v1139
        %1942 = vmatpush.msra.mxu0 %v1107
        %1943 = vmatpush.msra.mxu0 %v1075
        %1944 = vmatpush.msra.mxu0 %v1043
        %1945 = vmatpush.msra.mxu0 %v1011
        %1946 = vmatpush.msra.mxu0 %v979
        %1947 = vmatpush.msra.mxu0 %v947
        %1948 = vmatpush.msra.mxu0 %v915
        %1949 = vmatpush.msra.mxu0 %v883
        %1950 = vmatpush.msra.mxu0 %v851
        %1951 = vmatpush.msra.mxu0 %v819
        %1952 = vmatmul.f32.gmra.mxu0 %v290
        %v1953 = vpop.f32.mrf.mxu0
        %v1954 = vadd.f32 %v1934, %v1953
        %1955 = vdwg.mxu0
        %1956 = vmatpush.msra.mxu0 %v788
        %1957 = vmatpush.msra.mxu0 %v756
        %1958 = vmatpush.msra.mxu0 %v724
        %1959 = vmatpush.msra.mxu0 %v692
        %1960 = vmatpush.msra.mxu0 %v660
        %1961 = vmatpush.msra.mxu0 %v628
        %1962 = vmatpush.msra.mxu0 %v596
        %1963 = vmatpush.msra.mxu0 %v564
        %1964 = vmatpush.msra.mxu0 %v532
        %1965 = vmatpush.msra.mxu0 %v500
        %1966 = vmatpush.msra.mxu0 %v468
        %1967 = vmatpush.msra.mxu0 %v436
        %1968 = vmatpush.msra.mxu0 %v404
        %1969 = vmatpush.msra.mxu0 %v372
        %1970 = vmatpush.msra.mxu0 %v340
        %1971 = vmatpush.msra.mxu0 %v308
        %1972 = vmatmul.f32.gmra.mxu0 %v270
        %v1973 = vpop.f32.mrf.mxu0
        %v1974 = vadd.f32 0.0, %v1973
        %1975 = vdwg.mxu0
        %1976 = vmatpush.msra.mxu0 %v1300
        %1977 = vmatpush.msra.mxu0 %v1268
        %1978 = vmatpush.msra.mxu0 %v1236
        %1979 = vmatpush.msra.mxu0 %v1204
        %1980 = vmatpush.msra.mxu0 %v1172
        %1981 = vmatpush.msra.mxu0 %v1140
        %1982 = vmatpush.msra.mxu0 %v1108
        %1983 = vmatpush.msra.mxu0 %v1076
        %1984 = vmatpush.msra.mxu0 %v1044
        %1985 = vmatpush.msra.mxu0 %v1012
        %1986 = vmatpush.msra.mxu0 %v980
        %1987 = vmatpush.msra.mxu0 %v948
        %1988 = vmatpush.msra.mxu0 %v916
        %1989 = vmatpush.msra.mxu0 %v884
        %1990 = vmatpush.msra.mxu0 %v852
        %1991 = vmatpush.msra.mxu0 %v820
        %1992 = vmatmul.f32.gmra.mxu0 %v290
        %v1993 = vpop.f32.mrf.mxu0
        %v1994 = vadd.f32 %v1974, %v1993
        %1995 = vdwg.mxu0
        %1996 = vmatpush.msra.mxu0 %v789
        %1997 = vmatpush.msra.mxu0 %v757
        %1998 = vmatpush.msra.mxu0 %v725
        %1999 = vmatpush.msra.mxu0 %v693
        %2000 = vmatpush.msra.mxu0 %v661
        %2001 = vmatpush.msra.mxu0 %v629
        %2002 = vmatpush.msra.mxu0 %v597
        %2003 = vmatpush.msra.mxu0 %v565
        %2004 = vmatpush.msra.mxu0 %v533
        %2005 = vmatpush.msra.mxu0 %v501
        %2006 = vmatpush.msra.mxu0 %v469
        %2007 = vmatpush.msra.mxu0 %v437
        %2008 = vmatpush.msra.mxu0 %v405
        %2009 = vmatpush.msra.mxu0 %v373
        %2010 = vmatpush.msra.mxu0 %v341
        %2011 = vmatpush.msra.mxu0 %v309
        %2012 = vmatmul.f32.gmra.mxu0 %v270
        %v2013 = vpop.f32.mrf.mxu0
        %v2014 = vadd.f32 0.0, %v2013
        %2015 = vdwg.mxu0
        %2016 = vmatpush.msra.mxu0 %v1301
        %2017 = vmatpush.msra.mxu0 %v1269
        %2018 = vmatpush.msra.mxu0 %v1237
        %2019 = vmatpush.msra.mxu0 %v1205
        %2020 = vmatpush.msra.mxu0 %v1173
        %2021 = vmatpush.msra.mxu0 %v1141
        %2022 = vmatpush.msra.mxu0 %v1109
        %2023 = vmatpush.msra.mxu0 %v1077
        %2024 = vmatpush.msra.mxu0 %v1045
        %2025 = vmatpush.msra.mxu0 %v1013
        %2026 = vmatpush.msra.mxu0 %v981
        %2027 = vmatpush.msra.mxu0 %v949
        %2028 = vmatpush.msra.mxu0 %v917
        %2029 = vmatpush.msra.mxu0 %v885
        %2030 = vmatpush.msra.mxu0 %v853
        %2031 = vmatpush.msra.mxu0 %v821
        %2032 = vmatmul.f32.gmra.mxu0 %v290
        %v2033 = vpop.f32.mrf.mxu0
        %v2034 = vadd.f32 %v2014, %v2033
        %2035 = vdwg.mxu0
        %2036 = vmatpush.msra.mxu0 %v790
        %2037 = vmatpush.msra.mxu0 %v758
        %2038 = vmatpush.msra.mxu0 %v726
        %2039 = vmatpush.msra.mxu0 %v694
        %2040 = vmatpush.msra.mxu0 %v662
        %2041 = vmatpush.msra.mxu0 %v630
        %2042 = vmatpush.msra.mxu0 %v598
        %2043 = vmatpush.msra.mxu0 %v566
        %2044 = vmatpush.msra.mxu0 %v534
        %2045 = vmatpush.msra.mxu0 %v502
        %2046 = vmatpush.msra.mxu0 %v470
        %2047 = vmatpush.msra.mxu0 %v438
        %2048 = vmatpush.msra.mxu0 %v406
        %2049 = vmatpush.msra.mxu0 %v374
        %2050 = vmatpush.msra.mxu0 %v342
        %2051 = vmatpush.msra.mxu0 %v310
        %2052 = vmatmul.f32.gmra.mxu0 %v270
        %v2053 = vpop.f32.mrf.mxu0
        %v2054 = vadd.f32 0.0, %v2053
        %2055 = vdwg.mxu0
        %2056 = vmatpush.msra.mxu0 %v1302
        %2057 = vmatpush.msra.mxu0 %v1270
        %2058 = vmatpush.msra.mxu0 %v1238
        %2059 = vmatpush.msra.mxu0 %v1206
        %2060 = vmatpush.msra.mxu0 %v1174
        %2061 = vmatpush.msra.mxu0 %v1142
        %2062 = vmatpush.msra.mxu0 %v1110
        %2063 = vmatpush.msra.mxu0 %v1078
        %2064 = vmatpush.msra.mxu0 %v1046
        %2065 = vmatpush.msra.mxu0 %v1014
        %2066 = vmatpush.msra.mxu0 %v982
        %2067 = vmatpush.msra.mxu0 %v950
        %2068 = vmatpush.msra.mxu0 %v918
        %2069 = vmatpush.msra.mxu0 %v886
        %2070 = vmatpush.msra.mxu0 %v854
        %2071 = vmatpush.msra.mxu0 %v822
        %2072 = vmatmul.f32.gmra.mxu0 %v290
        %v2073 = vpop.f32.mrf.mxu0
        %v2074 = vadd.f32 %v2054, %v2073
        %2075 = vdwg.mxu0
        %2076 = vmatpush.msra.mxu0 %v791
        %2077 = vmatpush.msra.mxu0 %v759
        %2078 = vmatpush.msra.mxu0 %v727
        %2079 = vmatpush.msra.mxu0 %v695
        %2080 = vmatpush.msra.mxu0 %v663
        %2081 = vmatpush.msra.mxu0 %v631
        %2082 = vmatpush.msra.mxu0 %v599
        %2083 = vmatpush.msra.mxu0 %v567
        %2084 = vmatpush.msra.mxu0 %v535
        %2085 = vmatpush.msra.mxu0 %v503
        %2086 = vmatpush.msra.mxu0 %v471
        %2087 = vmatpush.msra.mxu0 %v439
        %2088 = vmatpush.msra.mxu0 %v407
        %2089 = vmatpush.msra.mxu0 %v375
        %2090 = vmatpush.msra.mxu0 %v343
        %2091 = vmatpush.msra.mxu0 %v311
        %2092 = vmatmul.f32.gmra.mxu0 %v270
        %v2093 = vpop.f32.mrf.mxu0
        %v2094 = vadd.f32 0.0, %v2093
        %2095 = vdwg.mxu0
        %2096 = vmatpush.msra.mxu0 %v1303
        %2097 = vmatpush.msra.mxu0 %v1271
        %2098 = vmatpush.msra.mxu0 %v1239
        %2099 = vmatpush.msra.mxu0 %v1207
        %2100 = vmatpush.msra.mxu0 %v1175
        %2101 = vmatpush.msra.mxu0 %v1143
        %2102 = vmatpush.msra.mxu0 %v1111
        %2103 = vmatpush.msra.mxu0 %v1079
        %2104 = vmatpush.msra.mxu0 %v1047
        %2105 = vmatpush.msra.mxu0 %v1015
        %2106 = vmatpush.msra.mxu0 %v983
        %2107 = vmatpush.msra.mxu0 %v951
        %2108 = vmatpush.msra.mxu0 %v919
        %2109 = vmatpush.msra.mxu0 %v887
        %2110 = vmatpush.msra.mxu0 %v855
        %2111 = vmatpush.msra.mxu0 %v823
        %2112 = vmatmul.f32.gmra.mxu0 %v290
        %v2113 = vpop.f32.mrf.mxu0
        %v2114 = vadd.f32 %v2094, %v2113
        %2115 = vdwg.mxu0
        %2116 = vmatpush.msra.mxu0 %v792
        %2117 = vmatpush.msra.mxu0 %v760
        %2118 = vmatpush.msra.mxu0 %v728
        %2119 = vmatpush.msra.mxu0 %v696
        %2120 = vmatpush.msra.mxu0 %v664
        %2121 = vmatpush.msra.mxu0 %v632
        %2122 = vmatpush.msra.mxu0 %v600
        %2123 = vmatpush.msra.mxu0 %v568
        %2124 = vmatpush.msra.mxu0 %v536
        %2125 = vmatpush.msra.mxu0 %v504
        %2126 = vmatpush.msra.mxu0 %v472
        %2127 = vmatpush.msra.mxu0 %v440
        %2128 = vmatpush.msra.mxu0 %v408
        %2129 = vmatpush.msra.mxu0 %v376
        %2130 = vmatpush.msra.mxu0 %v344
        %2131 = vmatpush.msra.mxu0 %v312
        %2132 = vmatmul.f32.gmra.mxu0 %v270
        %v2133 = vpop.f32.mrf.mxu0
        %v2134 = vadd.f32 0.0, %v2133
        %2135 = vdwg.mxu0
        %2136 = vmatpush.msra.mxu0 %v1304
        %2137 = vmatpush.msra.mxu0 %v1272
        %2138 = vmatpush.msra.mxu0 %v1240
        %2139 = vmatpush.msra.mxu0 %v1208
        %2140 = vmatpush.msra.mxu0 %v1176
        %2141 = vmatpush.msra.mxu0 %v1144
        %2142 = vmatpush.msra.mxu0 %v1112
        %2143 = vmatpush.msra.mxu0 %v1080
        %2144 = vmatpush.msra.mxu0 %v1048
        %2145 = vmatpush.msra.mxu0 %v1016
        %2146 = vmatpush.msra.mxu0 %v984
        %2147 = vmatpush.msra.mxu0 %v952
        %2148 = vmatpush.msra.mxu0 %v920
        %2149 = vmatpush.msra.mxu0 %v888
        %2150 = vmatpush.msra.mxu0 %v856
        %2151 = vmatpush.msra.mxu0 %v824
        %2152 = vmatmul.f32.gmra.mxu0 %v290
        %v2153 = vpop.f32.mrf.mxu0
        %v2154 = vadd.f32 %v2134, %v2153
        %2155 = vdwg.mxu0
        %2156 = vmatpush.msra.mxu0 %v793
        %2157 = vmatpush.msra.mxu0 %v761
        %2158 = vmatpush.msra.mxu0 %v729
        %2159 = vmatpush.msra.mxu0 %v697
        %2160 = vmatpush.msra.mxu0 %v665
        %2161 = vmatpush.msra.mxu0 %v633
        %2162 = vmatpush.msra.mxu0 %v601
        %2163 = vmatpush.msra.mxu0 %v569
        %2164 = vmatpush.msra.mxu0 %v537
        %2165 = vmatpush.msra.mxu0 %v505
        %2166 = vmatpush.msra.mxu0 %v473
        %2167 = vmatpush.msra.mxu0 %v441
        %2168 = vmatpush.msra.mxu0 %v409
        %2169 = vmatpush.msra.mxu0 %v377
        %2170 = vmatpush.msra.mxu0 %v345
        %2171 = vmatpush.msra.mxu0 %v313
        %2172 = vmatmul.f32.gmra.mxu0 %v270
        %v2173 = vpop.f32.mrf.mxu0
        %v2174 = vadd.f32 0.0, %v2173
        %2175 = vdwg.mxu0
        %2176 = vmatpush.msra.mxu0 %v1305
        %2177 = vmatpush.msra.mxu0 %v1273
        %2178 = vmatpush.msra.mxu0 %v1241
        %2179 = vmatpush.msra.mxu0 %v1209
        %2180 = vmatpush.msra.mxu0 %v1177
        %2181 = vmatpush.msra.mxu0 %v1145
        %2182 = vmatpush.msra.mxu0 %v1113
        %2183 = vmatpush.msra.mxu0 %v1081
        %2184 = vmatpush.msra.mxu0 %v1049
        %2185 = vmatpush.msra.mxu0 %v1017
        %2186 = vmatpush.msra.mxu0 %v985
        %2187 = vmatpush.msra.mxu0 %v953
        %2188 = vmatpush.msra.mxu0 %v921
        %2189 = vmatpush.msra.mxu0 %v889
        %2190 = vmatpush.msra.mxu0 %v857
        %2191 = vmatpush.msra.mxu0 %v825
        %2192 = vmatmul.f32.gmra.mxu0 %v290
        %v2193 = vpop.f32.mrf.mxu0
        %v2194 = vadd.f32 %v2174, %v2193
        %2195 = vdwg.mxu0
        %2196 = vmatpush.msra.mxu0 %v794
        %2197 = vmatpush.msra.mxu0 %v762
        %2198 = vmatpush.msra.mxu0 %v730
        %2199 = vmatpush.msra.mxu0 %v698
        %2200 = vmatpush.msra.mxu0 %v666
        %2201 = vmatpush.msra.mxu0 %v634
        %2202 = vmatpush.msra.mxu0 %v602
        %2203 = vmatpush.msra.mxu0 %v570
        %2204 = vmatpush.msra.mxu0 %v538
        %2205 = vmatpush.msra.mxu0 %v506
        %2206 = vmatpush.msra.mxu0 %v474
        %2207 = vmatpush.msra.mxu0 %v442
        %2208 = vmatpush.msra.mxu0 %v410
        %2209 = vmatpush.msra.mxu0 %v378
        %2210 = vmatpush.msra.mxu0 %v346
        %2211 = vmatpush.msra.mxu0 %v314
        %2212 = vmatmul.f32.gmra.mxu0 %v270
        %v2213 = vpop.f32.mrf.mxu0
        %v2214 = vadd.f32 0.0, %v2213
        %2215 = vdwg.mxu0
        %2216 = vmatpush.msra.mxu0 %v1306
        %2217 = vmatpush.msra.mxu0 %v1274
        %2218 = vmatpush.msra.mxu0 %v1242
        %2219 = vmatpush.msra.mxu0 %v1210
        %2220 = vmatpush.msra.mxu0 %v1178
        %2221 = vmatpush.msra.mxu0 %v1146
        %2222 = vmatpush.msra.mxu0 %v1114
        %2223 = vmatpush.msra.mxu0 %v1082
        %2224 = vmatpush.msra.mxu0 %v1050
        %2225 = vmatpush.msra.mxu0 %v1018
        %2226 = vmatpush.msra.mxu0 %v986
        %2227 = vmatpush.msra.mxu0 %v954
        %2228 = vmatpush.msra.mxu0 %v922
        %2229 = vmatpush.msra.mxu0 %v890
        %2230 = vmatpush.msra.mxu0 %v858
        %2231 = vmatpush.msra.mxu0 %v826
        %2232 = vmatmul.f32.gmra.mxu0 %v290
        %v2233 = vpop.f32.mrf.mxu0
        %v2234 = vadd.f32 %v2214, %v2233
        %2235 = vdwg.mxu0
        %2236 = vmatpush.msra.mxu0 %v795
        %2237 = vmatpush.msra.mxu0 %v763
        %2238 = vmatpush.msra.mxu0 %v731
        %2239 = vmatpush.msra.mxu0 %v699
        %2240 = vmatpush.msra.mxu0 %v667
        %2241 = vmatpush.msra.mxu0 %v635
        %2242 = vmatpush.msra.mxu0 %v603
        %2243 = vmatpush.msra.mxu0 %v571
        %2244 = vmatpush.msra.mxu0 %v539
        %2245 = vmatpush.msra.mxu0 %v507
        %2246 = vmatpush.msra.mxu0 %v475
        %2247 = vmatpush.msra.mxu0 %v443
        %2248 = vmatpush.msra.mxu0 %v411
        %2249 = vmatpush.msra.mxu0 %v379
        %2250 = vmatpush.msra.mxu0 %v347
        %2251 = vmatpush.msra.mxu0 %v315
        %2252 = vmatmul.f32.gmra.mxu0 %v270
        %v2253 = vpop.f32.mrf.mxu0
        %v2254 = vadd.f32 0.0, %v2253
        %2255 = vdwg.mxu0
        %2256 = vmatpush.msra.mxu0 %v1307
        %2257 = vmatpush.msra.mxu0 %v1275
        %2258 = vmatpush.msra.mxu0 %v1243
        %2259 = vmatpush.msra.mxu0 %v1211
        %2260 = vmatpush.msra.mxu0 %v1179
        %2261 = vmatpush.msra.mxu0 %v1147
        %2262 = vmatpush.msra.mxu0 %v1115
        %2263 = vmatpush.msra.mxu0 %v1083
        %2264 = vmatpush.msra.mxu0 %v1051
        %2265 = vmatpush.msra.mxu0 %v1019
        %2266 = vmatpush.msra.mxu0 %v987
        %2267 = vmatpush.msra.mxu0 %v955
        %2268 = vmatpush.msra.mxu0 %v923
        %2269 = vmatpush.msra.mxu0 %v891
        %2270 = vmatpush.msra.mxu0 %v859
        %2271 = vmatpush.msra.mxu0 %v827
        %2272 = vmatmul.f32.gmra.mxu0 %v290
        %v2273 = vpop.f32.mrf.mxu0
        %v2274 = vadd.f32 %v2254, %v2273
        %2275 = vdwg.mxu0
        %2276 = vmatpush.msra.mxu0 %v796
        %2277 = vmatpush.msra.mxu0 %v764
        %2278 = vmatpush.msra.mxu0 %v732
        %2279 = vmatpush.msra.mxu0 %v700
        %2280 = vmatpush.msra.mxu0 %v668
        %2281 = vmatpush.msra.mxu0 %v636
        %2282 = vmatpush.msra.mxu0 %v604
        %2283 = vmatpush.msra.mxu0 %v572
        %2284 = vmatpush.msra.mxu0 %v540
        %2285 = vmatpush.msra.mxu0 %v508
        %2286 = vmatpush.msra.mxu0 %v476
        %2287 = vmatpush.msra.mxu0 %v444
        %2288 = vmatpush.msra.mxu0 %v412
        %2289 = vmatpush.msra.mxu0 %v380
        %2290 = vmatpush.msra.mxu0 %v348
        %2291 = vmatpush.msra.mxu0 %v316
        %2292 = vmatmul.f32.gmra.mxu0 %v270
        %v2293 = vpop.f32.mrf.mxu0
        %v2294 = vadd.f32 0.0, %v2293
        %2295 = vdwg.mxu0
        %2296 = vmatpush.msra.mxu0 %v1308
        %2297 = vmatpush.msra.mxu0 %v1276
        %2298 = vmatpush.msra.mxu0 %v1244
        %2299 = vmatpush.msra.mxu0 %v1212
        %2300 = vmatpush.msra.mxu0 %v1180
        %2301 = vmatpush.msra.mxu0 %v1148
        %2302 = vmatpush.msra.mxu0 %v1116
        %2303 = vmatpush.msra.mxu0 %v1084
        %2304 = vmatpush.msra.mxu0 %v1052
        %2305 = vmatpush.msra.mxu0 %v1020
        %2306 = vmatpush.msra.mxu0 %v988
        %2307 = vmatpush.msra.mxu0 %v956
        %2308 = vmatpush.msra.mxu0 %v924
        %2309 = vmatpush.msra.mxu0 %v892
        %2310 = vmatpush.msra.mxu0 %v860
        %2311 = vmatpush.msra.mxu0 %v828
        %2312 = vmatmul.f32.gmra.mxu0 %v290
        %v2313 = vpop.f32.mrf.mxu0
        %v2314 = vadd.f32 %v2294, %v2313
        %2315 = vdwg.mxu0
        %2316 = vmatpush.msra.mxu0 %v797
        %2317 = vmatpush.msra.mxu0 %v765
        %2318 = vmatpush.msra.mxu0 %v733
        %2319 = vmatpush.msra.mxu0 %v701
        %2320 = vmatpush.msra.mxu0 %v669
        %2321 = vmatpush.msra.mxu0 %v637
        %2322 = vmatpush.msra.mxu0 %v605
        %2323 = vmatpush.msra.mxu0 %v573
        %2324 = vmatpush.msra.mxu0 %v541
        %2325 = vmatpush.msra.mxu0 %v509
        %2326 = vmatpush.msra.mxu0 %v477
        %2327 = vmatpush.msra.mxu0 %v445
        %2328 = vmatpush.msra.mxu0 %v413
        %2329 = vmatpush.msra.mxu0 %v381
        %2330 = vmatpush.msra.mxu0 %v349
        %2331 = vmatpush.msra.mxu0 %v317
        %2332 = vmatmul.f32.gmra.mxu0 %v270
        %v2333 = vpop.f32.mrf.mxu0
        %v2334 = vadd.f32 0.0, %v2333
        %2335 = vdwg.mxu0
        %2336 = vmatpush.msra.mxu0 %v1309
        %2337 = vmatpush.msra.mxu0 %v1277
        %2338 = vmatpush.msra.mxu0 %v1245
        %2339 = vmatpush.msra.mxu0 %v1213
        %2340 = vmatpush.msra.mxu0 %v1181
        %2341 = vmatpush.msra.mxu0 %v1149
        %2342 = vmatpush.msra.mxu0 %v1117
        %2343 = vmatpush.msra.mxu0 %v1085
        %2344 = vmatpush.msra.mxu0 %v1053
        %2345 = vmatpush.msra.mxu0 %v1021
        %2346 = vmatpush.msra.mxu0 %v989
        %2347 = vmatpush.msra.mxu0 %v957
        %2348 = vmatpush.msra.mxu0 %v925
        %2349 = vmatpush.msra.mxu0 %v893
        %2350 = vmatpush.msra.mxu0 %v861
        %2351 = vmatpush.msra.mxu0 %v829
        %2352 = vmatmul.f32.gmra.mxu0 %v290
        %v2353 = vpop.f32.mrf.mxu0
        %v2354 = vadd.f32 %v2334, %v2353
        %2355 = vdwg.mxu0
        %2356 = vmatpush.msra.mxu0 %v798
        %2357 = vmatpush.msra.mxu0 %v766
        %2358 = vmatpush.msra.mxu0 %v734
        %2359 = vmatpush.msra.mxu0 %v702
        %2360 = vmatpush.msra.mxu0 %v670
        %2361 = vmatpush.msra.mxu0 %v638
        %2362 = vmatpush.msra.mxu0 %v606
        %2363 = vmatpush.msra.mxu0 %v574
        %2364 = vmatpush.msra.mxu0 %v542
        %2365 = vmatpush.msra.mxu0 %v510
        %2366 = vmatpush.msra.mxu0 %v478
        %2367 = vmatpush.msra.mxu0 %v446
        %2368 = vmatpush.msra.mxu0 %v414
        %2369 = vmatpush.msra.mxu0 %v382
        %2370 = vmatpush.msra.mxu0 %v350
        %2371 = vmatpush.msra.mxu0 %v318
        %2372 = vmatmul.f32.gmra.mxu0 %v270
        %v2373 = vpop.f32.mrf.mxu0
        %v2374 = vadd.f32 0.0, %v2373
        %2375 = vdwg.mxu0
        %2376 = vmatpush.msra.mxu0 %v1310
        %2377 = vmatpush.msra.mxu0 %v1278
        %2378 = vmatpush.msra.mxu0 %v1246
        %2379 = vmatpush.msra.mxu0 %v1214
        %2380 = vmatpush.msra.mxu0 %v1182
        %2381 = vmatpush.msra.mxu0 %v1150
        %2382 = vmatpush.msra.mxu0 %v1118
        %2383 = vmatpush.msra.mxu0 %v1086
        %2384 = vmatpush.msra.mxu0 %v1054
        %2385 = vmatpush.msra.mxu0 %v1022
        %2386 = vmatpush.msra.mxu0 %v990
        %2387 = vmatpush.msra.mxu0 %v958
        %2388 = vmatpush.msra.mxu0 %v926
        %2389 = vmatpush.msra.mxu0 %v894
        %2390 = vmatpush.msra.mxu0 %v862
        %2391 = vmatpush.msra.mxu0 %v830
        %2392 = vmatmul.f32.gmra.mxu0 %v290
        %v2393 = vpop.f32.mrf.mxu0
        %v2394 = vadd.f32 %v2374, %v2393
        %2395 = vdwg.mxu0
        %2396 = vmatpush.msra.mxu0 %v799
        %2397 = vmatpush.msra.mxu0 %v767
        %2398 = vmatpush.msra.mxu0 %v735
        %2399 = vmatpush.msra.mxu0 %v703
        %2400 = vmatpush.msra.mxu0 %v671
        %2401 = vmatpush.msra.mxu0 %v639
        %2402 = vmatpush.msra.mxu0 %v607
        %2403 = vmatpush.msra.mxu0 %v575
        %2404 = vmatpush.msra.mxu0 %v543
        %2405 = vmatpush.msra.mxu0 %v511
        %2406 = vmatpush.msra.mxu0 %v479
        %2407 = vmatpush.msra.mxu0 %v447
        %2408 = vmatpush.msra.mxu0 %v415
        %2409 = vmatpush.msra.mxu0 %v383
        %2410 = vmatpush.msra.mxu0 %v351
        %2411 = vmatpush.msra.mxu0 %v319
        %2412 = vmatmul.f32.gmra.mxu0 %v270
        %v2413 = vpop.f32.mrf.mxu0
        %v2414 = vadd.f32 0.0, %v2413
        %2415 = vdwg.mxu0
        %2416 = vmatpush.msra.mxu0 %v1311
        %2417 = vmatpush.msra.mxu0 %v1279
        %2418 = vmatpush.msra.mxu0 %v1247
        %2419 = vmatpush.msra.mxu0 %v1215
        %2420 = vmatpush.msra.mxu0 %v1183
        %2421 = vmatpush.msra.mxu0 %v1151
        %2422 = vmatpush.msra.mxu0 %v1119
        %2423 = vmatpush.msra.mxu0 %v1087
        %2424 = vmatpush.msra.mxu0 %v1055
        %2425 = vmatpush.msra.mxu0 %v1023
        %2426 = vmatpush.msra.mxu0 %v991
        %2427 = vmatpush.msra.mxu0 %v959
        %2428 = vmatpush.msra.mxu0 %v927
        %2429 = vmatpush.msra.mxu0 %v895
        %2430 = vmatpush.msra.mxu0 %v863
        %2431 = vmatpush.msra.mxu0 %v831
        %2432 = vmatmul.f32.gmra.mxu0 %v290
        %v2433 = vpop.f32.mrf.mxu0
        %v2434 = vadd.f32 %v2414, %v2433
        %2435 = vdwg.mxu0
        %2436 = vmatpush.msra.mxu0 %v800
        %2437 = vmatpush.msra.mxu0 %v768
        %2438 = vmatpush.msra.mxu0 %v736
        %2439 = vmatpush.msra.mxu0 %v704
        %2440 = vmatpush.msra.mxu0 %v672
        %2441 = vmatpush.msra.mxu0 %v640
        %2442 = vmatpush.msra.mxu0 %v608
        %2443 = vmatpush.msra.mxu0 %v576
        %2444 = vmatpush.msra.mxu0 %v544
        %2445 = vmatpush.msra.mxu0 %v512
        %2446 = vmatpush.msra.mxu0 %v480
        %2447 = vmatpush.msra.mxu0 %v448
        %2448 = vmatpush.msra.mxu0 %v416
        %2449 = vmatpush.msra.mxu0 %v384
        %2450 = vmatpush.msra.mxu0 %v352
        %2451 = vmatpush.msra.mxu0 %v320
        %2452 = vmatmul.f32.gmra.mxu0 %v270
        %v2453 = vpop.f32.mrf.mxu0
        %v2454 = vadd.f32 0.0, %v2453
        %2455 = vdwg.mxu0
        %2456 = vmatpush.msra.mxu0 %v1312
        %2457 = vmatpush.msra.mxu0 %v1280
        %2458 = vmatpush.msra.mxu0 %v1248
        %2459 = vmatpush.msra.mxu0 %v1216
        %2460 = vmatpush.msra.mxu0 %v1184
        %2461 = vmatpush.msra.mxu0 %v1152
        %2462 = vmatpush.msra.mxu0 %v1120
        %2463 = vmatpush.msra.mxu0 %v1088
        %2464 = vmatpush.msra.mxu0 %v1056
        %2465 = vmatpush.msra.mxu0 %v1024
        %2466 = vmatpush.msra.mxu0 %v992
        %2467 = vmatpush.msra.mxu0 %v960
        %2468 = vmatpush.msra.mxu0 %v928
        %2469 = vmatpush.msra.mxu0 %v896
        %2470 = vmatpush.msra.mxu0 %v864
        %2471 = vmatpush.msra.mxu0 %v832
        %2472 = vmatmul.f32.gmra.mxu0 %v290
        %v2473 = vpop.f32.mrf.mxu0
        %v2474 = vadd.f32 %v2454, %v2473
        %2475 = vdwg.mxu0
        %2476 = vmatpush.msra.mxu0 %v801
        %2477 = vmatpush.msra.mxu0 %v769
        %2478 = vmatpush.msra.mxu0 %v737
        %2479 = vmatpush.msra.mxu0 %v705
        %2480 = vmatpush.msra.mxu0 %v673
        %2481 = vmatpush.msra.mxu0 %v641
        %2482 = vmatpush.msra.mxu0 %v609
        %2483 = vmatpush.msra.mxu0 %v577
        %2484 = vmatpush.msra.mxu0 %v545
        %2485 = vmatpush.msra.mxu0 %v513
        %2486 = vmatpush.msra.mxu0 %v481
        %2487 = vmatpush.msra.mxu0 %v449
        %2488 = vmatpush.msra.mxu0 %v417
        %2489 = vmatpush.msra.mxu0 %v385
        %2490 = vmatpush.msra.mxu0 %v353
        %2491 = vmatpush.msra.mxu0 %v321
        %2492 = vmatmul.f32.gmra.mxu0 %v270
        %v2493 = vpop.f32.mrf.mxu0
        %v2494 = vadd.f32 0.0, %v2493
        %2495 = vdwg.mxu0
        %2496 = vmatpush.msra.mxu0 %v1313
        %2497 = vmatpush.msra.mxu0 %v1281
        %2498 = vmatpush.msra.mxu0 %v1249
        %2499 = vmatpush.msra.mxu0 %v1217
        %2500 = vmatpush.msra.mxu0 %v1185
        %2501 = vmatpush.msra.mxu0 %v1153
        %2502 = vmatpush.msra.mxu0 %v1121
        %2503 = vmatpush.msra.mxu0 %v1089
        %2504 = vmatpush.msra.mxu0 %v1057
        %2505 = vmatpush.msra.mxu0 %v1025
        %2506 = vmatpush.msra.mxu0 %v993
        %2507 = vmatpush.msra.mxu0 %v961
        %2508 = vmatpush.msra.mxu0 %v929
        %2509 = vmatpush.msra.mxu0 %v897
        %2510 = vmatpush.msra.mxu0 %v865
        %2511 = vmatpush.msra.mxu0 %v833
        %2512 = vmatmul.f32.gmra.mxu0 %v290
        %v2513 = vpop.f32.mrf.mxu0
        %v2514 = vadd.f32 %v2494, %v2513
        %2515 = vdwg.mxu0
        %2516 = vmatpush.msra.mxu0 %v802
        %2517 = vmatpush.msra.mxu0 %v770
        %2518 = vmatpush.msra.mxu0 %v738
        %2519 = vmatpush.msra.mxu0 %v706
        %2520 = vmatpush.msra.mxu0 %v674
        %2521 = vmatpush.msra.mxu0 %v642
        %2522 = vmatpush.msra.mxu0 %v610
        %2523 = vmatpush.msra.mxu0 %v578
        %2524 = vmatpush.msra.mxu0 %v546
        %2525 = vmatpush.msra.mxu0 %v514
        %2526 = vmatpush.msra.mxu0 %v482
        %2527 = vmatpush.msra.mxu0 %v450
        %2528 = vmatpush.msra.mxu0 %v418
        %2529 = vmatpush.msra.mxu0 %v386
        %2530 = vmatpush.msra.mxu0 %v354
        %2531 = vmatpush.msra.mxu0 %v322
        %2532 = vmatmul.f32.gmra.mxu0 %v270
        %v2533 = vpop.f32.mrf.mxu0
        %v2534 = vadd.f32 0.0, %v2533
        %2535 = vdwg.mxu0
        %2536 = vmatpush.msra.mxu0 %v1314
        %2537 = vmatpush.msra.mxu0 %v1282
        %2538 = vmatpush.msra.mxu0 %v1250
        %2539 = vmatpush.msra.mxu0 %v1218
        %2540 = vmatpush.msra.mxu0 %v1186
        %2541 = vmatpush.msra.mxu0 %v1154
        %2542 = vmatpush.msra.mxu0 %v1122
        %2543 = vmatpush.msra.mxu0 %v1090
        %2544 = vmatpush.msra.mxu0 %v1058
        %2545 = vmatpush.msra.mxu0 %v1026
        %2546 = vmatpush.msra.mxu0 %v994
        %2547 = vmatpush.msra.mxu0 %v962
        %2548 = vmatpush.msra.mxu0 %v930
        %2549 = vmatpush.msra.mxu0 %v898
        %2550 = vmatpush.msra.mxu0 %v866
        %2551 = vmatpush.msra.mxu0 %v834
        %2552 = vmatmul.f32.gmra.mxu0 %v290
        %v2553 = vpop.f32.mrf.mxu0
        %v2554 = vadd.f32 %v2534, %v2553
        %2555 = vdwg.mxu0
        %2556 = vmatpush.msra.mxu0 %v803
        %2557 = vmatpush.msra.mxu0 %v771
        %2558 = vmatpush.msra.mxu0 %v739
        %2559 = vmatpush.msra.mxu0 %v707
        %2560 = vmatpush.msra.mxu0 %v675
        %2561 = vmatpush.msra.mxu0 %v643
        %2562 = vmatpush.msra.mxu0 %v611
        %2563 = vmatpush.msra.mxu0 %v579
        %2564 = vmatpush.msra.mxu0 %v547
        %2565 = vmatpush.msra.mxu0 %v515
        %2566 = vmatpush.msra.mxu0 %v483
        %2567 = vmatpush.msra.mxu0 %v451
        %2568 = vmatpush.msra.mxu0 %v419
        %2569 = vmatpush.msra.mxu0 %v387
        %2570 = vmatpush.msra.mxu0 %v355
        %2571 = vmatpush.msra.mxu0 %v323
        %2572 = vmatmul.f32.gmra.mxu0 %v270
        %v2573 = vpop.f32.mrf.mxu0
        %v2574 = vadd.f32 0.0, %v2573
        %2575 = vdwg.mxu0
        %2576 = vmatpush.msra.mxu0 %v1315
        %2577 = vmatpush.msra.mxu0 %v1283
        %2578 = vmatpush.msra.mxu0 %v1251
        %2579 = vmatpush.msra.mxu0 %v1219
        %2580 = vmatpush.msra.mxu0 %v1187
        %2581 = vmatpush.msra.mxu0 %v1155
        %2582 = vmatpush.msra.mxu0 %v1123
        %2583 = vmatpush.msra.mxu0 %v1091
        %2584 = vmatpush.msra.mxu0 %v1059
        %2585 = vmatpush.msra.mxu0 %v1027
        %2586 = vmatpush.msra.mxu0 %v995
        %2587 = vmatpush.msra.mxu0 %v963
        %2588 = vmatpush.msra.mxu0 %v931
        %2589 = vmatpush.msra.mxu0 %v899
        %2590 = vmatpush.msra.mxu0 %v867
        %2591 = vmatpush.msra.mxu0 %v835
        %2592 = vmatmul.f32.gmra.mxu0 %v290
        %v2593 = vpop.f32.mrf.mxu0
        %v2594 = vadd.f32 %v2574, %v2593
        %2595 = vdwg.mxu0
        %v2628 = vrot.slane %v1394, 4
        %v2629 = vrot.slane %v1474, 4
        %v2630 = vrot.slane %v1554, 4
        %v2631 = vrot.slane %v1634, 4
        %v2632 = vrot.slane %v1714, 4
        %v2633 = vrot.slane %v1794, 4
        %v2634 = vrot.slane %v1874, 4
        %v2635 = vrot.slane %v1954, 4
        %v2636 = vrot.slane %v2034, 4
        %v2637 = vrot.slane %v2114, 4
        %v2638 = vrot.slane %v2194, 4
        %v2639 = vrot.slane %v2274, 4
        %v2640 = vrot.slane %v2354, 4
        %v2641 = vrot.slane %v2434, 4
        %v2642 = vrot.slane %v2514, 4
        %v2643 = vrot.slane %v2594, 4
        %vm2644 = vcmask 1043456
        %v2645 = vsel %vm2644, %v1354, %v2628
        %v2646 = vsel %vm2644, %v1434, %v2629
        %v2647 = vsel %vm2644, %v1514, %v2630
        %v2648 = vsel %vm2644, %v1594, %v2631
        %v2649 = vsel %vm2644, %v1674, %v2632
        %v2650 = vsel %vm2644, %v1754, %v2633
        %v2651 = vsel %vm2644, %v1834, %v2634
        %v2652 = vsel %vm2644, %v1914, %v2635
        %v2653 = vsel %vm2644, %v1994, %v2636
        %v2654 = vsel %vm2644, %v2074, %v2637
        %v2655 = vsel %vm2644, %v2154, %v2638
        %v2656 = vsel %vm2644, %v2234, %v2639
        %v2657 = vsel %vm2644, %v2314, %v2640
        %v2658 = vsel %vm2644, %v2394, %v2641
        %v2659 = vsel %vm2644, %v2474, %v2642
        %v2660 = vsel %vm2644, %v2554, %v2643
        %2677 = vst [vmem:[%s242] sm:$0xff] %v2645
        %2678 = vst [vmem:[%s242 + $0x8] sm:$0xff] %v2646
        %2679 = vst [vmem:[%s242 + $0x10] sm:$0xff] %v2647
        %2680 = vst [vmem:[%s242 + $0x18] sm:$0xff] %v2648
        %2681 = vst [vmem:[%s242 + $0x20] sm:$0xff] %v2649
        %2682 = vst [vmem:[%s242 + $0x28] sm:$0xff] %v2650
        %2683 = vst [vmem:[%s242 + $0x30] sm:$0xff] %v2651
        %2684 = vst [vmem:[%s242 + $0x38] sm:$0xff] %v2652
        %2685 = vst [vmem:[%s242 + $0x40] sm:$0xff] %v2653
        %2686 = vst [vmem:[%s242 + $0x48] sm:$0xff] %v2654
        %2687 = vst [vmem:[%s242 + $0x50] sm:$0xff] %v2655
        %2688 = vst [vmem:[%s242 + $0x58] sm:$0xff] %v2656
        %2689 = vst [vmem:[%s242 + $0x60] sm:$0xff] %v2657
        %2690 = vst [vmem:[%s242 + $0x68] sm:$0xff] %v2658
        %2691 = vst [vmem:[%s242 + $0x70] sm:$0xff] %v2659
        %2692 = vst [vmem:[%s242 + $0x78] sm:$0xff] %v2660
        %s2693 = sand.u32 %s116, 1
        %s2694 = scalar_lea.sflag [#allocation4], %s2693
        %s2695 = sand.u32 %s116, 1
        %s2696 = smul.addr %s2695, 128
        %s2697 = scalar_lea.vmem [#allocation8], %s2696
        // Predicated region
        $region45: #{tpu_custom_call.1} parent=31 // pred_check
          %p2698 = pneg %p126
        $region46: #{tpu_custom_call.1} parent=31 // pred_check_branch
          %2700 = sbr.rel (%p2698) target = $region48
        $region47: #{tpu_custom_call.1} parent=31 // pred_region
          %2702 = vsyncadd %s2694, 0
          %s2703 = smul.addr %s26, 32
          %s2704 = smul.addr %s25, 32
          %s2705 = sadd.s32 %s2703, %s2704
          %s2706 = smul.addr %s2705, 4
          %s2707 = scalar_lea.hbm %s3, %s2706
          %s2709 = sshll.u32 %s2697, 4
          %s2710 = int_to_ptr.vmem [resolvable:$true] %s2709
          %s2711 = sshll.u32 %s2707, 4
          %s2712 = int_to_ptr.hbm [resolvable:$true] %s2711
          %2714 = dma.vmem_to_hbm [thread:$0]  %s2710, 2048, %s2712, %s2694
        $region48: #{tpu_custom_call.1} parent=31 // pred_fallthru
          _
      $region32: #{tpu_custom_call.1} parent=5 // pred_fallthru
        _
      %p2715 = scmp.le.s32.totalorder 2, %s16
      // Predicated region
      $region49: #{tpu_custom_call.1} parent=5 // pred_check
        %p2716 = pneg %p2715
      $region50: #{tpu_custom_call.1} parent=5 // pred_check_branch
        %2718 = sbr.rel (%p2716) target = $region52
      $region51: #{tpu_custom_call.1} parent=5 // pred_region
        %s2719 = ssub.s32 %s16, 2
        // Predicated region
        $region53: #{tpu_custom_call.1} parent=51 // pred_check
          %p2720 = pneg %p132
        $region54: #{tpu_custom_call.1} parent=51 // pred_check_branch
          %2722 = sbr.rel (%p2720) target = $region56
        $region55: #{tpu_custom_call.1} parent=51 // pred_region
          %s2723 = sand.u32 %s117, 1
          %s2724 = scalar_lea.sflag [#allocation4], %s2723
          %s2725 = sand.u32 %s117, 1
          %s2726 = smul.addr %s2725, 128
          %s2727 = scalar_lea.vmem [#allocation8], %s2726
          %2729 = dma.done %s2724, 2048
        $region56: #{tpu_custom_call.1} parent=51 // pred_fallthru
          _
      $region52: #{tpu_custom_call.1} parent=5 // pred_fallthru
        _
    $region6: #{tpu_custom_call.1} parent=1 // loop_footer
      %s20 = sadd.s32 1, %s16
    $region7: #{tpu_custom_call.1} parent=1 // loop_footer_branch
      %15 = sbr.rel target = $region3
    $region8: #{tpu_custom_call.1} parent=1 // loop_exit
      _
    %2730 = vsyncpa [#allocation3], 1
    %s2731 = scalar_lea.sflag [#allocation3], 1
    %2732 = vsyncpa %s2731, 1
    %2733 = vsyncpa [#allocation6], 1
    %2734 = vsyncpa [#allocation4], 1
    %s2735 = scalar_lea.sflag [#allocation4], 1
    %2736 = vsyncpa %s2735, 1

</llo_original>
